<compile_context>
chip_gen: v7x
topology: tpu7x:2x2x1
jax: 0.10.0
libtpu: 0.0.40
codegen_flags: <defaults>
</compile_context>

<pallas_src>
import jax
import jax.numpy as jnp
from jax.experimental import pallas as pl
from jax.experimental.pallas import tpu as pltpu


# -----------------------------------------------------------------------------
# Fused kernel: one grid step == one sample.
# -----------------------------------------------------------------------------
def lenet_kernel(x_ref, w1_ref, b1_ref, w2_ref, b2_ref,
                 fc1w_ref, fc1b_ref, fc2w_ref, fc2b_ref, fc3w_ref, fc3b_ref,
                 o_ref,
                 xpad, c1, p1, c2, p2):
    f32 = jnp.float32

    # ---- conv1 padding=2: build the (32, 32, 1) zero-padded image in VMEM ----
    xpad[...] = jnp.zeros_like(xpad)
    xpad[2:30, 2:30, :] = x_ref[0, :, :, :]

    # ---- conv1: 5x5, Cin=1 -> Cout=6, bias + ReLU (shift-and-FMA on VPU) ----
    @pl.loop(0, 28)
    def _(oh):
        acc = jnp.zeros((28, 6), f32)
        for ki in range(5):
            for kj in range(5):
                t = 5 * ki + kj
                xs = xpad[oh + ki, kj:kj + 28, :]        # (28, 1)
                wt = w1_ref[t:t + 1, :]                  # (1, 6)
                acc = acc + xs * wt
        c1[oh, :, :] = jnp.maximum(acc + b1_ref[...], 0.0)

    # ---- maxpool 2x2 stride 2: (28, 28, 6) -> (14, 14, 6) ----
    @pl.loop(0, 14)
    def _(oh):
        m = jnp.maximum(c1[2 * oh, :, :], c1[2 * oh + 1, :, :])      # (28, 6)
        cols = [jnp.maximum(m[2 * ow:2 * ow + 1, :],
                            m[2 * ow + 1:2 * ow + 2, :]) for ow in range(14)]
        p1[oh, :, :] = jnp.concatenate(cols, axis=0)                 # (14, 6)

    # ---- conv2: 5x5, 6 -> 16, bias + ReLU (per-tap MXU matmuls) ----
    @pl.loop(0, 10)
    def _(oh):
        acc = jnp.zeros((10, 16), f32)
        for ki in range(5):
            for kj in range(5):
                zs = p1[oh + ki, kj:kj + 10, :]          # (10, 6)
                wt = w2_ref[ki, kj, :, :]                # (6, 16)
                acc = acc + jnp.dot(zs, wt, preferred_element_type=f32)
        c2[oh, :, :] = jnp.maximum(acc + b2_ref[...], 0.0)

    # ---- maxpool 2x2 stride 2: (10, 10, 16) -> (5, 5, 16) ----
    @pl.loop(0, 5)
    def _(oh):
        m = jnp.maximum(c2[2 * oh, :, :], c2[2 * oh + 1, :, :])      # (10, 16)
        cols = [jnp.maximum(m[2 * ow:2 * ow + 1, :],
                            m[2 * ow + 1:2 * ow + 2, :]) for ow in range(5)]
        p2[oh, :, :] = jnp.concatenate(cols, axis=0)                 # (5, 16)

    # ---- flatten in (i, j, c) order (fc1 weight columns were pre-reordered) ----
    pieces = [p2[i, j:j + 1, :] for i in range(5) for j in range(5)]  # 25 x (1, 16)
    zf = jnp.concatenate(pieces, axis=1)                              # (1, 400)

    # ---- fc1 + ReLU, fc2 + ReLU, fc3 (MXU) ----
    h1 = jnp.maximum(
        jnp.dot(zf, fc1w_ref[...], preferred_element_type=f32) + fc1b_ref[...], 0.0)
    h2 = jnp.maximum(
        jnp.dot(h1, fc2w_ref[...], preferred_element_type=f32) + fc2b_ref[...], 0.0)
    out = jnp.dot(h2, fc3w_ref[...], preferred_element_type=f32) + fc3b_ref[...]
    o_ref[0, :, :] = out.astype(o_ref.dtype)


# -----------------------------------------------------------------------------
# Host wrapper
# -----------------------------------------------------------------------------
def lenet_forward(x, kp):
    """x: (B, 1, 28, 28) f32 (NCHW, like PyTorch). Returns (B, 10) logits."""
    B = x.shape[0]
    xn = jnp.transpose(x, (0, 2, 3, 1))      # (B, 28, 28, 1)  NHWC

    operands = (xn, kp["w1"], kp["b1"], kp["w2"], kp["b2"],
                kp["fc1_w"], kp["fc1_b"], kp["fc2_w"], kp["fc2_b"],
                kp["fc3_w"], kp["fc3_b"])

    def batch_spec(shape):       # one sample per grid step
        blk = (1,) + tuple(shape[1:])
        return pl.BlockSpec(blk, lambda b, n=len(shape): (b,) + (0,) * (n - 1))

    def whole_spec(shape):       # weights: constant block index -> fetched once
        return pl.BlockSpec(tuple(shape), lambda b, n=len(shape): (0,) * n)

    in_specs = [batch_spec(xn.shape)] + [whole_spec(o.shape) for o in operands[1:]]

    out = pl.pallas_call(
        lenet_kernel,
        out_shape=jax.ShapeDtypeStruct((B, 1, 10), jnp.float32),
        grid=(B,),
        in_specs=in_specs,
        out_specs=pl.BlockSpec((1, 1, 10), lambda b: (b, 0, 0)),
        scratch_shapes=[
            pltpu.VMEM((32, 32, 1), jnp.float32),   # padded conv1 input
            pltpu.VMEM((28, 28, 6), jnp.float32),   # conv1 output
            pltpu.VMEM((14, 14, 6), jnp.float32),   # pool1 output
            pltpu.VMEM((10, 10, 16), jnp.float32),  # conv2 output
            pltpu.VMEM((5, 5, 16), jnp.float32),    # pool2 output
        ],
        compiler_params=pltpu.CompilerParams(
            dimension_semantics=("parallel",)),
    )(*operands)
    return out.reshape(B, 10)


# -----------------------------------------------------------------------------
# Parameters: PyTorch layout at init, re-laid out ONCE for the kernel.
# -----------------------------------------------------------------------------
def init_lenet_params(key):
    keys = jax.random.split(key, 10)
    s = 0.1
    return {
        "w1": s * jax.random.normal(keys[0], (6, 1, 5, 5), jnp.float32),
        "b1": s * jax.random.normal(keys[1], (6,), jnp.float32),
        "w2": s * jax.random.normal(keys[2], (16, 6, 5, 5), jnp.float32),
        "b2": s * jax.random.normal(keys[3], (16,), jnp.float32),
        "fc1_w": s * jax.random.normal(keys[4], (120, 400), jnp.float32),
        "fc1_b": s * jax.random.normal(keys[5], (120,), jnp.float32),
        "fc2_w": s * jax.random.normal(keys[6], (84, 120), jnp.float32),
        "fc2_b": s * jax.random.normal(keys[7], (84,), jnp.float32),
        "fc3_w": s * jax.random.normal(keys[8], (10, 84), jnp.float32),
        "fc3_b": s * jax.random.normal(keys[9], (10,), jnp.float32),
    }


def prepare_params(p):
    """One-time re-layout of PyTorch-style params into kernel-facing layouts."""
    return {
        # conv1 (6,1,5,5) -> (25, 6): row = ki*5+kj, col = Cout
        "w1": p["w1"].transpose(2, 3, 1, 0).reshape(25, 6),
        "b1": p["b1"].reshape(1, 6),
        # conv2 (16,6,5,5) -> (5,5,6,16): [ki, kj] -> (Cin, Cout)
        "w2": p["w2"].transpose(2, 3, 1, 0),
        "b2": p["b2"].reshape(1, 16),
        # fc1 (120,400) -> (400,120) with rows reordered from torch's flatten
        # order (c*25 + i*5 + j) to the kernel's flatten order (i*80 + j*16 + c)
        "fc1_w": p["fc1_w"].reshape(120, 16, 5, 5).transpose(2, 3, 1, 0).reshape(400, 120),
        "fc1_b": p["fc1_b"].reshape(1, 120),
        "fc2_w": p["fc2_w"].T,               # (120, 84)
        "fc2_b": p["fc2_b"].reshape(1, 84),
        "fc3_w": p["fc3_w"].T,               # (84, 10)
        "fc3_b": p["fc3_b"].reshape(1, 10),
    }


# -----------------------------------------------------------------------------
# Pure-JAX reference (PyTorch semantics) for a numerical sanity check.
# -----------------------------------------------------------------------------
def lenet_reference(x, p):
    prec = jax.lax.Precision.HIGHEST
    dn = ("NCHW", "OIHW", "NCHW")
    y = jax.lax.conv_general_dilated(x, p["w1"], (1, 1), ((2, 2), (2, 2)),
                                     dimension_numbers=dn, precision=prec)
    y = jnp.maximum(y + p["b1"][None, :, None, None], 0.0)
    y = jax.lax.reduce_window(y, -jnp.inf, jax.lax.max,
                              (1, 1, 2, 2), (1, 1, 2, 2), "VALID")
    y = jax.lax.conv_general_dilated(y, p["w2"], (1, 1), ((0, 0), (0, 0)),
                                     dimension_numbers=dn, precision=prec)
    y = jnp.maximum(y + p["b2"][None, :, None, None], 0.0)
    y = jax.lax.reduce_window(y, -jnp.inf, jax.lax.max,
                              (1, 1, 2, 2), (1, 1, 2, 2), "VALID")
    y = y.reshape(y.shape[0], -1)
    y = jnp.maximum(jnp.dot(y, p["fc1_w"].T, precision=prec) + p["fc1_b"], 0.0)
    y = jnp.maximum(jnp.dot(y, p["fc2_w"].T, precision=prec) + p["fc2_b"], 0.0)
    return jnp.dot(y, p["fc3_w"].T, precision=prec) + p["fc3_b"]


if __name__ == "__main__":
    key = jax.random.PRNGKey(0)
    pkey, xkey = jax.random.split(key)
    params = init_lenet_params(pkey)
    kparams = prepare_params(params)            # one-time weight re-layout
    x = jax.random.normal(xkey, (2, 1, 28, 28), jnp.float32)

    fwd = jax.jit(lenet_forward)
    logits = fwd(x, kparams)
    jax.block_until_ready(logits)
    assert logits.shape == (2, 10) and logits.dtype == jnp.float32

    ref = lenet_reference(x, params)
    err = float(jnp.max(jnp.abs(logits - ref)))
    assert bool(jnp.allclose(logits, ref, atol=1e-3, rtol=1e-3)), err

    print("KERNEL_OK")
</pallas_src>

<mosaic_0001>
module attributes {stable_mosaic.version = 11 : i64} {
  func.func @lenet_kernel(%arg0: i32, %arg1: memref<1x28x28x1xf32, #tpu.memory_space<vmem>>, %arg2: memref<25x6xf32, #tpu.memory_space<vmem>>, %arg3: memref<1x6xf32, #tpu.memory_space<vmem>>, %arg4: memref<5x5x6x16xf32, #tpu.memory_space<vmem>>, %arg5: memref<1x16xf32, #tpu.memory_space<vmem>>, %arg6: memref<400x120xf32, #tpu.memory_space<vmem>>, %arg7: memref<1x120xf32, #tpu.memory_space<vmem>>, %arg8: memref<120x84xf32, #tpu.memory_space<vmem>>, %arg9: memref<1x84xf32, #tpu.memory_space<vmem>>, %arg10: memref<84x10xf32, #tpu.memory_space<vmem>>, %arg11: memref<1x10xf32, #tpu.memory_space<vmem>>, %arg12: memref<1x1x10xf32, #tpu.memory_space<vmem>>, %arg13: memref<32x32x1xf32, #tpu.memory_space<vmem>>, %arg14: memref<28x28x6xf32, #tpu.memory_space<vmem>>, %arg15: memref<14x14x6xf32, #tpu.memory_space<vmem>>, %arg16: memref<10x10x16xf32, #tpu.memory_space<vmem>>, %arg17: memref<5x5x16xf32, #tpu.memory_space<vmem>>) attributes {dimension_semantics = [#tpu.dimension_semantics<parallel>], iteration_bounds = array<i64: 2>, scalar_prefetch = 0 : i64, scratch_operands = 5 : i64, tpu.core_type = #tpu.core_type<tc>, window_params = [{transform_indices = @transform_0, window_bounds = array<i64: 1, 28, 28, 1>}, {pipeline_mode = #tpu.pipeline_mode<synchronous>, transform_indices = @transform_1, window_bounds = array<i64: 25, 6>}, {pipeline_mode = #tpu.pipeline_mode<synchronous>, transform_indices = @transform_2, window_bounds = array<i64: 1, 6>}, {pipeline_mode = #tpu.pipeline_mode<synchronous>, transform_indices = @transform_3, window_bounds = array<i64: 5, 5, 6, 16>}, {pipeline_mode = #tpu.pipeline_mode<synchronous>, transform_indices = @transform_4, window_bounds = array<i64: 1, 16>}, {pipeline_mode = #tpu.pipeline_mode<synchronous>, transform_indices = @transform_5, window_bounds = array<i64: 400, 120>}, {pipeline_mode = #tpu.pipeline_mode<synchronous>, transform_indices = @transform_6, window_bounds = array<i64: 1, 120>}, {pipeline_mode = #tpu.pipeline_mode<synchronous>, transform_indices = @transform_7, window_bounds = array<i64: 120, 84>}, {pipeline_mode = #tpu.pipeline_mode<synchronous>, transform_indices = @transform_8, window_bounds = array<i64: 1, 84>}, {pipeline_mode = #tpu.pipeline_mode<synchronous>, transform_indices = @transform_9, window_bounds = array<i64: 84, 10>}, {pipeline_mode = #tpu.pipeline_mode<synchronous>, transform_indices = @transform_10, window_bounds = array<i64: 1, 10>}, {transform_indices = @transform_11, window_bounds = array<i64: 1, 1, 10>}]} {
    %cst = arith.constant 0.000000e+00 : f32
    %0 = vector.broadcast %cst : f32 to vector<32x32x1xf32>
    %c0 = arith.constant 0 : index
    %c0_0 = arith.constant 0 : index
    %c0_1 = arith.constant 0 : index
    %1 = vector.load %arg13[%c0, %c0_0, %c0_1] : memref<32x32x1xf32, #tpu.memory_space<vmem>>, vector<32x32x1xf32>
    tpu.vector_store %arg13[%c0, %c0_0, %c0_1], %0 {strides = array<i32>} : memref<32x32x1xf32, #tpu.memory_space<vmem>>, vector<32x32x1xf32>,
    %c0_2 = arith.constant 0 : index
    %c0_3 = arith.constant 0 : index
    %c0_4 = arith.constant 0 : index
    %c0_5 = arith.constant 0 : index
    %2 = vector.load %arg1[%c0_2, %c0_3, %c0_4, %c0_5] : memref<1x28x28x1xf32, #tpu.memory_space<vmem>>, vector<1x28x28x1xf32>
    %3 = vector.shape_cast %2 : vector<1x28x28x1xf32> to vector<28x28x1xf32>
    %c2 = arith.constant 2 : index
    %c2_6 = arith.constant 2 : index
    %c0_7 = arith.constant 0 : index
    %4 = vector.load %arg13[%c2, %c2_6, %c0_7] : memref<32x32x1xf32, #tpu.memory_space<vmem>>, vector<28x28x1xf32>
    tpu.vector_store %arg13[%c2, %c2_6, %c0_7], %3 {strides = array<i32>} : memref<32x32x1xf32, #tpu.memory_space<vmem>>, vector<28x28x1xf32>,
    %c0_i32 = arith.constant 0 : i32
    %c28_i32 = arith.constant 28 : i32
    %5 = arith.addi %c0_i32, %c28_i32 : i32
    %c1_i32 = arith.constant 1 : i32
    scf.for %arg18 = %c0_i32 to %5 step %c1_i32  : i32 {
      %c1_i32_110 = arith.constant 1 : i32
      %81 = arith.muli %arg18, %c1_i32_110 : i32
      %c0_i32_111 = arith.constant 0 : i32
      %82 = arith.addi %c0_i32_111, %81 : i32
      %cst_112 = arith.constant 0.000000e+00 : f32
      %83 = vector.broadcast %cst_112 : f32 to vector<28x6xf32>
      %c0_i32_113 = arith.constant 0 : i32
      %84 = arith.addi %82, %c0_i32_113 : i32
      %85 = arith.index_cast %84 : i32 to index
      %c0_114 = arith.constant 0 : index
      %c0_115 = arith.constant 0 : index
      %86 = vector.load %arg13[%85, %c0_114, %c0_115] : memref<32x32x1xf32, #tpu.memory_space<vmem>>, vector<1x28x1xf32>
      %87 = vector.shape_cast %86 : vector<1x28x1xf32> to vector<28x1xf32>
      %c0_116 = arith.constant 0 : index
      %c0_117 = arith.constant 0 : index
      %88 = vector.load %arg2[%c0_116, %c0_117] : memref<25x6xf32, #tpu.memory_space<vmem>>, vector<1x6xf32>
      %89 = vector.broadcast %87 : vector<28x1xf32> to vector<28x6xf32>
      %90 = vector.broadcast %88 : vector<1x6xf32> to vector<28x6xf32>
      %91 = arith.mulf %89, %90 : vector<28x6xf32>
      %92 = arith.addf %83, %91 : vector<28x6xf32>
      %c0_i32_118 = arith.constant 0 : i32
      %93 = arith.addi %82, %c0_i32_118 : i32
      %94 = arith.index_cast %93 : i32 to index
      %c1_119 = arith.constant 1 : index
      %c0_120 = arith.constant 0 : index
      %95 = vector.load %arg13[%94, %c1_119, %c0_120] : memref<32x32x1xf32, #tpu.memory_space<vmem>>, vector<1x28x1xf32>
      %96 = vector.shape_cast %95 : vector<1x28x1xf32> to vector<28x1xf32>
      %c1_121 = arith.constant 1 : index
      %c0_122 = arith.constant 0 : index
      %97 = vector.load %arg2[%c1_121, %c0_122] : memref<25x6xf32, #tpu.memory_space<vmem>>, vector<1x6xf32>
      %98 = vector.broadcast %96 : vector<28x1xf32> to vector<28x6xf32>
      %99 = vector.broadcast %97 : vector<1x6xf32> to vector<28x6xf32>
      %100 = arith.mulf %98, %99 : vector<28x6xf32>
      %101 = arith.addf %92, %100 : vector<28x6xf32>
      %c0_i32_123 = arith.constant 0 : i32
      %102 = arith.addi %82, %c0_i32_123 : i32
      %103 = arith.index_cast %102 : i32 to index
      %c2_124 = arith.constant 2 : index
      %c0_125 = arith.constant 0 : index
      %104 = vector.load %arg13[%103, %c2_124, %c0_125] : memref<32x32x1xf32, #tpu.memory_space<vmem>>, vector<1x28x1xf32>
      %105 = vector.shape_cast %104 : vector<1x28x1xf32> to vector<28x1xf32>
      %c2_126 = arith.constant 2 : index
      %c0_127 = arith.constant 0 : index
      %106 = vector.load %arg2[%c2_126, %c0_127] : memref<25x6xf32, #tpu.memory_space<vmem>>, vector<1x6xf32>
      %107 = vector.broadcast %105 : vector<28x1xf32> to vector<28x6xf32>
      %108 = vector.broadcast %106 : vector<1x6xf32> to vector<28x6xf32>
      %109 = arith.mulf %107, %108 : vector<28x6xf32>
      %110 = arith.addf %101, %109 : vector<28x6xf32>
      %c0_i32_128 = arith.constant 0 : i32
      %111 = arith.addi %82, %c0_i32_128 : i32
      %112 = arith.index_cast %111 : i32 to index
      %c3_129 = arith.constant 3 : index
      %c0_130 = arith.constant 0 : index
      %113 = vector.load %arg13[%112, %c3_129, %c0_130] : memref<32x32x1xf32, #tpu.memory_space<vmem>>, vector<1x28x1xf32>
      %114 = vector.shape_cast %113 : vector<1x28x1xf32> to vector<28x1xf32>
      %c3_131 = arith.constant 3 : index
      %c0_132 = arith.constant 0 : index
      %115 = vector.load %arg2[%c3_131, %c0_132] : memref<25x6xf32, #tpu.memory_space<vmem>>, vector<1x6xf32>
      %116 = vector.broadcast %114 : vector<28x1xf32> to vector<28x6xf32>
      %117 = vector.broadcast %115 : vector<1x6xf32> to vector<28x6xf32>
      %118 = arith.mulf %116, %117 : vector<28x6xf32>
      %119 = arith.addf %110, %118 : vector<28x6xf32>
      %c0_i32_133 = arith.constant 0 : i32
      %120 = arith.addi %82, %c0_i32_133 : i32
      %121 = arith.index_cast %120 : i32 to index
      %c4_134 = arith.constant 4 : index
      %c0_135 = arith.constant 0 : index
      %122 = vector.load %arg13[%121, %c4_134, %c0_135] : memref<32x32x1xf32, #tpu.memory_space<vmem>>, vector<1x28x1xf32>
      %123 = vector.shape_cast %122 : vector<1x28x1xf32> to vector<28x1xf32>
      %c4_136 = arith.constant 4 : index
      %c0_137 = arith.constant 0 : index
      %124 = vector.load %arg2[%c4_136, %c0_137] : memref<25x6xf32, #tpu.memory_space<vmem>>, vector<1x6xf32>
      %125 = vector.broadcast %123 : vector<28x1xf32> to vector<28x6xf32>
      %126 = vector.broadcast %124 : vector<1x6xf32> to vector<28x6xf32>
      %127 = arith.mulf %125, %126 : vector<28x6xf32>
      %128 = arith.addf %119, %127 : vector<28x6xf32>
      %c1_i32_138 = arith.constant 1 : i32
      %129 = arith.addi %82, %c1_i32_138 : i32
      %130 = arith.index_cast %129 : i32 to index
      %c0_139 = arith.constant 0 : index
      %c0_140 = arith.constant 0 : index
      %131 = vector.load %arg13[%130, %c0_139, %c0_140] : memref<32x32x1xf32, #tpu.memory_space<vmem>>, vector<1x28x1xf32>
      %132 = vector.shape_cast %131 : vector<1x28x1xf32> to vector<28x1xf32>
      %c5 = arith.constant 5 : index
      %c0_141 = arith.constant 0 : index
      %133 = vector.load %arg2[%c5, %c0_141] : memref<25x6xf32, #tpu.memory_space<vmem>>, vector<1x6xf32>
      %134 = vector.broadcast %132 : vector<28x1xf32> to vector<28x6xf32>
      %135 = vector.broadcast %133 : vector<1x6xf32> to vector<28x6xf32>
      %136 = arith.mulf %134, %135 : vector<28x6xf32>
      %137 = arith.addf %128, %136 : vector<28x6xf32>
      %c1_i32_142 = arith.constant 1 : i32
      %138 = arith.addi %82, %c1_i32_142 : i32
      %139 = arith.index_cast %138 : i32 to index
      %c1_143 = arith.constant 1 : index
      %c0_144 = arith.constant 0 : index
      %140 = vector.load %arg13[%139, %c1_143, %c0_144] : memref<32x32x1xf32, #tpu.memory_space<vmem>>, vector<1x28x1xf32>
      %141 = vector.shape_cast %140 : vector<1x28x1xf32> to vector<28x1xf32>
      %c6 = arith.constant 6 : index
      %c0_145 = arith.constant 0 : index
      %142 = vector.load %arg2[%c6, %c0_145] : memref<25x6xf32, #tpu.memory_space<vmem>>, vector<1x6xf32>
      %143 = vector.broadcast %141 : vector<28x1xf32> to vector<28x6xf32>
      %144 = vector.broadcast %142 : vector<1x6xf32> to vector<28x6xf32>
      %145 = arith.mulf %143, %144 : vector<28x6xf32>
      %146 = arith.addf %137, %145 : vector<28x6xf32>
      %c1_i32_146 = arith.constant 1 : i32
      %147 = arith.addi %82, %c1_i32_146 : i32
      %148 = arith.index_cast %147 : i32 to index
      %c2_147 = arith.constant 2 : index
      %c0_148 = arith.constant 0 : index
      %149 = vector.load %arg13[%148, %c2_147, %c0_148] : memref<32x32x1xf32, #tpu.memory_space<vmem>>, vector<1x28x1xf32>
      %150 = vector.shape_cast %149 : vector<1x28x1xf32> to vector<28x1xf32>
      %c7 = arith.constant 7 : index
      %c0_149 = arith.constant 0 : index
      %151 = vector.load %arg2[%c7, %c0_149] : memref<25x6xf32, #tpu.memory_space<vmem>>, vector<1x6xf32>
      %152 = vector.broadcast %150 : vector<28x1xf32> to vector<28x6xf32>
      %153 = vector.broadcast %151 : vector<1x6xf32> to vector<28x6xf32>
      %154 = arith.mulf %152, %153 : vector<28x6xf32>
      %155 = arith.addf %146, %154 : vector<28x6xf32>
      %c1_i32_150 = arith.constant 1 : i32
      %156 = arith.addi %82, %c1_i32_150 : i32
      %157 = arith.index_cast %156 : i32 to index
      %c3_151 = arith.constant 3 : index
      %c0_152 = arith.constant 0 : index
      %158 = vector.load %arg13[%157, %c3_151, %c0_152] : memref<32x32x1xf32, #tpu.memory_space<vmem>>, vector<1x28x1xf32>
      %159 = vector.shape_cast %158 : vector<1x28x1xf32> to vector<28x1xf32>
      %c8 = arith.constant 8 : index
      %c0_153 = arith.constant 0 : index
      %160 = vector.load %arg2[%c8, %c0_153] : memref<25x6xf32, #tpu.memory_space<vmem>>, vector<1x6xf32>
      %161 = vector.broadcast %159 : vector<28x1xf32> to vector<28x6xf32>
      %162 = vector.broadcast %160 : vector<1x6xf32> to vector<28x6xf32>
      %163 = arith.mulf %161, %162 : vector<28x6xf32>
      %164 = arith.addf %155, %163 : vector<28x6xf32>
      %c1_i32_154 = arith.constant 1 : i32
      %165 = arith.addi %82, %c1_i32_154 : i32
      %166 = arith.index_cast %165 : i32 to index
      %c4_155 = arith.constant 4 : index
      %c0_156 = arith.constant 0 : index
      %167 = vector.load %arg13[%166, %c4_155, %c0_156] : memref<32x32x1xf32, #tpu.memory_space<vmem>>, vector<1x28x1xf32>
      %168 = vector.shape_cast %167 : vector<1x28x1xf32> to vector<28x1xf32>
      %c9 = arith.constant 9 : index
      %c0_157 = arith.constant 0 : index
      %169 = vector.load %arg2[%c9, %c0_157] : memref<25x6xf32, #tpu.memory_space<vmem>>, vector<1x6xf32>
      %170 = vector.broadcast %168 : vector<28x1xf32> to vector<28x6xf32>
      %171 = vector.broadcast %169 : vector<1x6xf32> to vector<28x6xf32>
      %172 = arith.mulf %170, %171 : vector<28x6xf32>
      %173 = arith.addf %164, %172 : vector<28x6xf32>
      %c2_i32 = arith.constant 2 : i32
      %174 = arith.addi %82, %c2_i32 : i32
      %175 = arith.index_cast %174 : i32 to index
      %c0_158 = arith.constant 0 : index
      %c0_159 = arith.constant 0 : index
      %176 = vector.load %arg13[%175, %c0_158, %c0_159] : memref<32x32x1xf32, #tpu.memory_space<vmem>>, vector<1x28x1xf32>
      %177 = vector.shape_cast %176 : vector<1x28x1xf32> to vector<28x1xf32>
      %c10 = arith.constant 10 : index
      %c0_160 = arith.constant 0 : index
      %178 = vector.load %arg2[%c10, %c0_160] : memref<25x6xf32, #tpu.memory_space<vmem>>, vector<1x6xf32>
      %179 = vector.broadcast %177 : vector<28x1xf32> to vector<28x6xf32>
      %180 = vector.broadcast %178 : vector<1x6xf32> to vector<28x6xf32>
      %181 = arith.mulf %179, %180 : vector<28x6xf32>
      %182 = arith.addf %173, %181 : vector<28x6xf32>
      %c2_i32_161 = arith.constant 2 : i32
      %183 = arith.addi %82, %c2_i32_161 : i32
      %184 = arith.index_cast %183 : i32 to index
      %c1_162 = arith.constant 1 : index
      %c0_163 = arith.constant 0 : index
      %185 = vector.load %arg13[%184, %c1_162, %c0_163] : memref<32x32x1xf32, #tpu.memory_space<vmem>>, vector<1x28x1xf32>
      %186 = vector.shape_cast %185 : vector<1x28x1xf32> to vector<28x1xf32>
      %c11 = arith.constant 11 : index
      %c0_164 = arith.constant 0 : index
      %187 = vector.load %arg2[%c11, %c0_164] : memref<25x6xf32, #tpu.memory_space<vmem>>, vector<1x6xf32>
      %188 = vector.broadcast %186 : vector<28x1xf32> to vector<28x6xf32>
      %189 = vector.broadcast %187 : vector<1x6xf32> to vector<28x6xf32>
      %190 = arith.mulf %188, %189 : vector<28x6xf32>
      %191 = arith.addf %182, %190 : vector<28x6xf32>
      %c2_i32_165 = arith.constant 2 : i32
      %192 = arith.addi %82, %c2_i32_165 : i32
      %193 = arith.index_cast %192 : i32 to index
      %c2_166 = arith.constant 2 : index
      %c0_167 = arith.constant 0 : index
      %194 = vector.load %arg13[%193, %c2_166, %c0_167] : memref<32x32x1xf32, #tpu.memory_space<vmem>>, vector<1x28x1xf32>
      %195 = vector.shape_cast %194 : vector<1x28x1xf32> to vector<28x1xf32>
      %c12 = arith.constant 12 : index
      %c0_168 = arith.constant 0 : index
      %196 = vector.load %arg2[%c12, %c0_168] : memref<25x6xf32, #tpu.memory_space<vmem>>, vector<1x6xf32>
      %197 = vector.broadcast %195 : vector<28x1xf32> to vector<28x6xf32>
      %198 = vector.broadcast %196 : vector<1x6xf32> to vector<28x6xf32>
      %199 = arith.mulf %197, %198 : vector<28x6xf32>
      %200 = arith.addf %191, %199 : vector<28x6xf32>
      %c2_i32_169 = arith.constant 2 : i32
      %201 = arith.addi %82, %c2_i32_169 : i32
      %202 = arith.index_cast %201 : i32 to index
      %c3_170 = arith.constant 3 : index
      %c0_171 = arith.constant 0 : index
      %203 = vector.load %arg13[%202, %c3_170, %c0_171] : memref<32x32x1xf32, #tpu.memory_space<vmem>>, vector<1x28x1xf32>
      %204 = vector.shape_cast %203 : vector<1x28x1xf32> to vector<28x1xf32>
      %c13 = arith.constant 13 : index
      %c0_172 = arith.constant 0 : index
      %205 = vector.load %arg2[%c13, %c0_172] : memref<25x6xf32, #tpu.memory_space<vmem>>, vector<1x6xf32>
      %206 = vector.broadcast %204 : vector<28x1xf32> to vector<28x6xf32>
      %207 = vector.broadcast %205 : vector<1x6xf32> to vector<28x6xf32>
      %208 = arith.mulf %206, %207 : vector<28x6xf32>
      %209 = arith.addf %200, %208 : vector<28x6xf32>
      %c2_i32_173 = arith.constant 2 : i32
      %210 = arith.addi %82, %c2_i32_173 : i32
      %211 = arith.index_cast %210 : i32 to index
      %c4_174 = arith.constant 4 : index
      %c0_175 = arith.constant 0 : index
      %212 = vector.load %arg13[%211, %c4_174, %c0_175] : memref<32x32x1xf32, #tpu.memory_space<vmem>>, vector<1x28x1xf32>
      %213 = vector.shape_cast %212 : vector<1x28x1xf32> to vector<28x1xf32>
      %c14 = arith.constant 14 : index
      %c0_176 = arith.constant 0 : index
      %214 = vector.load %arg2[%c14, %c0_176] : memref<25x6xf32, #tpu.memory_space<vmem>>, vector<1x6xf32>
      %215 = vector.broadcast %213 : vector<28x1xf32> to vector<28x6xf32>
      %216 = vector.broadcast %214 : vector<1x6xf32> to vector<28x6xf32>
      %217 = arith.mulf %215, %216 : vector<28x6xf32>
      %218 = arith.addf %209, %217 : vector<28x6xf32>
      %c3_i32 = arith.constant 3 : i32
      %219 = arith.addi %82, %c3_i32 : i32
      %220 = arith.index_cast %219 : i32 to index
      %c0_177 = arith.constant 0 : index
      %c0_178 = arith.constant 0 : index
      %221 = vector.load %arg13[%220, %c0_177, %c0_178] : memref<32x32x1xf32, #tpu.memory_space<vmem>>, vector<1x28x1xf32>
      %222 = vector.shape_cast %221 : vector<1x28x1xf32> to vector<28x1xf32>
      %c15 = arith.constant 15 : index
      %c0_179 = arith.constant 0 : index
      %223 = vector.load %arg2[%c15, %c0_179] : memref<25x6xf32, #tpu.memory_space<vmem>>, vector<1x6xf32>
      %224 = vector.broadcast %222 : vector<28x1xf32> to vector<28x6xf32>
      %225 = vector.broadcast %223 : vector<1x6xf32> to vector<28x6xf32>
      %226 = arith.mulf %224, %225 : vector<28x6xf32>
      %227 = arith.addf %218, %226 : vector<28x6xf32>
      %c3_i32_180 = arith.constant 3 : i32
      %228 = arith.addi %82, %c3_i32_180 : i32
      %229 = arith.index_cast %228 : i32 to index
      %c1_181 = arith.constant 1 : index
      %c0_182 = arith.constant 0 : index
      %230 = vector.load %arg13[%229, %c1_181, %c0_182] : memref<32x32x1xf32, #tpu.memory_space<vmem>>, vector<1x28x1xf32>
      %231 = vector.shape_cast %230 : vector<1x28x1xf32> to vector<28x1xf32>
      %c16 = arith.constant 16 : index
      %c0_183 = arith.constant 0 : index
      %232 = vector.load %arg2[%c16, %c0_183] : memref<25x6xf32, #tpu.memory_space<vmem>>, vector<1x6xf32>
      %233 = vector.broadcast %231 : vector<28x1xf32> to vector<28x6xf32>
      %234 = vector.broadcast %232 : vector<1x6xf32> to vector<28x6xf32>
      %235 = arith.mulf %233, %234 : vector<28x6xf32>
      %236 = arith.addf %227, %235 : vector<28x6xf32>
      %c3_i32_184 = arith.constant 3 : i32
      %237 = arith.addi %82, %c3_i32_184 : i32
      %238 = arith.index_cast %237 : i32 to index
      %c2_185 = arith.constant 2 : index
      %c0_186 = arith.constant 0 : index
      %239 = vector.load %arg13[%238, %c2_185, %c0_186] : memref<32x32x1xf32, #tpu.memory_space<vmem>>, vector<1x28x1xf32>
      %240 = vector.shape_cast %239 : vector<1x28x1xf32> to vector<28x1xf32>
      %c17 = arith.constant 17 : index
      %c0_187 = arith.constant 0 : index
      %241 = vector.load %arg2[%c17, %c0_187] : memref<25x6xf32, #tpu.memory_space<vmem>>, vector<1x6xf32>
      %242 = vector.broadcast %240 : vector<28x1xf32> to vector<28x6xf32>
      %243 = vector.broadcast %241 : vector<1x6xf32> to vector<28x6xf32>
      %244 = arith.mulf %242, %243 : vector<28x6xf32>
      %245 = arith.addf %236, %244 : vector<28x6xf32>
      %c3_i32_188 = arith.constant 3 : i32
      %246 = arith.addi %82, %c3_i32_188 : i32
      %247 = arith.index_cast %246 : i32 to index
      %c3_189 = arith.constant 3 : index
      %c0_190 = arith.constant 0 : index
      %248 = vector.load %arg13[%247, %c3_189, %c0_190] : memref<32x32x1xf32, #tpu.memory_space<vmem>>, vector<1x28x1xf32>
      %249 = vector.shape_cast %248 : vector<1x28x1xf32> to vector<28x1xf32>
      %c18 = arith.constant 18 : index
      %c0_191 = arith.constant 0 : index
      %250 = vector.load %arg2[%c18, %c0_191] : memref<25x6xf32, #tpu.memory_space<vmem>>, vector<1x6xf32>
      %251 = vector.broadcast %249 : vector<28x1xf32> to vector<28x6xf32>
      %252 = vector.broadcast %250 : vector<1x6xf32> to vector<28x6xf32>
      %253 = arith.mulf %251, %252 : vector<28x6xf32>
      %254 = arith.addf %245, %253 : vector<28x6xf32>
      %c3_i32_192 = arith.constant 3 : i32
      %255 = arith.addi %82, %c3_i32_192 : i32
      %256 = arith.index_cast %255 : i32 to index
      %c4_193 = arith.constant 4 : index
      %c0_194 = arith.constant 0 : index
      %257 = vector.load %arg13[%256, %c4_193, %c0_194] : memref<32x32x1xf32, #tpu.memory_space<vmem>>, vector<1x28x1xf32>
      %258 = vector.shape_cast %257 : vector<1x28x1xf32> to vector<28x1xf32>
      %c19 = arith.constant 19 : index
      %c0_195 = arith.constant 0 : index
      %259 = vector.load %arg2[%c19, %c0_195] : memref<25x6xf32, #tpu.memory_space<vmem>>, vector<1x6xf32>
      %260 = vector.broadcast %258 : vector<28x1xf32> to vector<28x6xf32>
      %261 = vector.broadcast %259 : vector<1x6xf32> to vector<28x6xf32>
      %262 = arith.mulf %260, %261 : vector<28x6xf32>
      %263 = arith.addf %254, %262 : vector<28x6xf32>
      %c4_i32 = arith.constant 4 : i32
      %264 = arith.addi %82, %c4_i32 : i32
      %265 = arith.index_cast %264 : i32 to index
      %c0_196 = arith.constant 0 : index
      %c0_197 = arith.constant 0 : index
      %266 = vector.load %arg13[%265, %c0_196, %c0_197] : memref<32x32x1xf32, #tpu.memory_space<vmem>>, vector<1x28x1xf32>
      %267 = vector.shape_cast %266 : vector<1x28x1xf32> to vector<28x1xf32>
      %c20 = arith.constant 20 : index
      %c0_198 = arith.constant 0 : index
      %268 = vector.load %arg2[%c20, %c0_198] : memref<25x6xf32, #tpu.memory_space<vmem>>, vector<1x6xf32>
      %269 = vector.broadcast %267 : vector<28x1xf32> to vector<28x6xf32>
      %270 = vector.broadcast %268 : vector<1x6xf32> to vector<28x6xf32>
      %271 = arith.mulf %269, %270 : vector<28x6xf32>
      %272 = arith.addf %263, %271 : vector<28x6xf32>
      %c4_i32_199 = arith.constant 4 : i32
      %273 = arith.addi %82, %c4_i32_199 : i32
      %274 = arith.index_cast %273 : i32 to index
      %c1_200 = arith.constant 1 : index
      %c0_201 = arith.constant 0 : index
      %275 = vector.load %arg13[%274, %c1_200, %c0_201] : memref<32x32x1xf32, #tpu.memory_space<vmem>>, vector<1x28x1xf32>
      %276 = vector.shape_cast %275 : vector<1x28x1xf32> to vector<28x1xf32>
      %c21 = arith.constant 21 : index
      %c0_202 = arith.constant 0 : index
      %277 = vector.load %arg2[%c21, %c0_202] : memref<25x6xf32, #tpu.memory_space<vmem>>, vector<1x6xf32>
      %278 = vector.broadcast %276 : vector<28x1xf32> to vector<28x6xf32>
      %279 = vector.broadcast %277 : vector<1x6xf32> to vector<28x6xf32>
      %280 = arith.mulf %278, %279 : vector<28x6xf32>
      %281 = arith.addf %272, %280 : vector<28x6xf32>
      %c4_i32_203 = arith.constant 4 : i32
      %282 = arith.addi %82, %c4_i32_203 : i32
      %283 = arith.index_cast %282 : i32 to index
      %c2_204 = arith.constant 2 : index
      %c0_205 = arith.constant 0 : index
      %284 = vector.load %arg13[%283, %c2_204, %c0_205] : memref<32x32x1xf32, #tpu.memory_space<vmem>>, vector<1x28x1xf32>
      %285 = vector.shape_cast %284 : vector<1x28x1xf32> to vector<28x1xf32>
      %c22 = arith.constant 22 : index
      %c0_206 = arith.constant 0 : index
      %286 = vector.load %arg2[%c22, %c0_206] : memref<25x6xf32, #tpu.memory_space<vmem>>, vector<1x6xf32>
      %287 = vector.broadcast %285 : vector<28x1xf32> to vector<28x6xf32>
      %288 = vector.broadcast %286 : vector<1x6xf32> to vector<28x6xf32>
      %289 = arith.mulf %287, %288 : vector<28x6xf32>
      %290 = arith.addf %281, %289 : vector<28x6xf32>
      %c4_i32_207 = arith.constant 4 : i32
      %291 = arith.addi %82, %c4_i32_207 : i32
      %292 = arith.index_cast %291 : i32 to index
      %c3_208 = arith.constant 3 : index
      %c0_209 = arith.constant 0 : index
      %293 = vector.load %arg13[%292, %c3_208, %c0_209] : memref<32x32x1xf32, #tpu.memory_space<vmem>>, vector<1x28x1xf32>
      %294 = vector.shape_cast %293 : vector<1x28x1xf32> to vector<28x1xf32>
      %c23 = arith.constant 23 : index
      %c0_210 = arith.constant 0 : index
      %295 = vector.load %arg2[%c23, %c0_210] : memref<25x6xf32, #tpu.memory_space<vmem>>, vector<1x6xf32>
      %296 = vector.broadcast %294 : vector<28x1xf32> to vector<28x6xf32>
      %297 = vector.broadcast %295 : vector<1x6xf32> to vector<28x6xf32>
      %298 = arith.mulf %296, %297 : vector<28x6xf32>
      %299 = arith.addf %290, %298 : vector<28x6xf32>
      %c4_i32_211 = arith.constant 4 : i32
      %300 = arith.addi %82, %c4_i32_211 : i32
      %301 = arith.index_cast %300 : i32 to index
      %c4_212 = arith.constant 4 : index
      %c0_213 = arith.constant 0 : index
      %302 = vector.load %arg13[%301, %c4_212, %c0_213] : memref<32x32x1xf32, #tpu.memory_space<vmem>>, vector<1x28x1xf32>
      %303 = vector.shape_cast %302 : vector<1x28x1xf32> to vector<28x1xf32>
      %c24 = arith.constant 24 : index
      %c0_214 = arith.constant 0 : index
      %304 = vector.load %arg2[%c24, %c0_214] : memref<25x6xf32, #tpu.memory_space<vmem>>, vector<1x6xf32>
      %305 = vector.broadcast %303 : vector<28x1xf32> to vector<28x6xf32>
      %306 = vector.broadcast %304 : vector<1x6xf32> to vector<28x6xf32>
      %307 = arith.mulf %305, %306 : vector<28x6xf32>
      %308 = arith.addf %299, %307 : vector<28x6xf32>
      %c0_215 = arith.constant 0 : index
      %c0_216 = arith.constant 0 : index
      %309 = vector.load %arg3[%c0_215, %c0_216] : memref<1x6xf32, #tpu.memory_space<vmem>>, vector<1x6xf32>
      %310 = vector.broadcast %309 : vector<1x6xf32> to vector<28x6xf32>
      %311 = arith.addf %308, %310 : vector<28x6xf32>
      %cst_217 = arith.constant 0.000000e+00 : f32
      %312 = vector.broadcast %cst_217 : f32 to vector<28x6xf32>
      %313 = arith.maximumf %311, %312 : vector<28x6xf32>
      %314 = arith.index_cast %82 : i32 to index
      %c0_218 = arith.constant 0 : index
      %c0_219 = arith.constant 0 : index
      %315 = vector.load %arg14[%314, %c0_218, %c0_219] : memref<28x28x6xf32, #tpu.memory_space<vmem>>, vector<1x28x6xf32>
      %316 = vector.shape_cast %315 : vector<1x28x6xf32> to vector<28x6xf32>
      %317 = vector.shape_cast %313 : vector<28x6xf32> to vector<1x28x6xf32>
      tpu.vector_store %arg14[%314, %c0_218, %c0_219], %317 {strides = array<i32>} : memref<28x28x6xf32, #tpu.memory_space<vmem>>, vector<1x28x6xf32>,
    }
    %c28_i32_8 = arith.constant 28 : i32
    %c0_i32_9 = arith.constant 0 : i32
    %c14_i32 = arith.constant 14 : i32
    %6 = arith.addi %c0_i32_9, %c14_i32 : i32
    %c1_i32_10 = arith.constant 1 : i32
    scf.for %arg18 = %c0_i32_9 to %6 step %c1_i32_10  : i32 {
      %c1_i32_110 = arith.constant 1 : i32
      %81 = arith.muli %arg18, %c1_i32_110 : i32
      %c0_i32_111 = arith.constant 0 : i32
      %82 = arith.addi %c0_i32_111, %81 : i32
      %c2_i32 = arith.constant 2 : i32
      %83 = arith.muli %c2_i32, %82 : i32
      %84 = arith.index_cast %83 : i32 to index
      %c0_112 = arith.constant 0 : index
      %c0_113 = arith.constant 0 : index
      %85 = vector.load %arg14[%84, %c0_112, %c0_113] : memref<28x28x6xf32, #tpu.memory_space<vmem>>, vector<1x28x6xf32>
      %86 = vector.shape_cast %85 : vector<1x28x6xf32> to vector<28x6xf32>
      %c2_i32_114 = arith.constant 2 : i32
      %87 = arith.muli %c2_i32_114, %82 : i32
      %c1_i32_115 = arith.constant 1 : i32
      %88 = arith.addi %87, %c1_i32_115 : i32
      %89 = arith.index_cast %88 : i32 to index
      %c0_116 = arith.constant 0 : index
      %c0_117 = arith.constant 0 : index
      %90 = vector.load %arg14[%89, %c0_116, %c0_117] : memref<28x28x6xf32, #tpu.memory_space<vmem>>, vector<1x28x6xf32>
      %91 = vector.shape_cast %90 : vector<1x28x6xf32> to vector<28x6xf32>
      %92 = arith.maximumf %86, %91 : vector<28x6xf32>
      %93 = vector.extract_strided_slice %92 {offsets = [0, 0], sizes = [1, 6], strides = [1, 1]} : vector<28x6xf32> to vector<1x6xf32>
      %94 = vector.extract_strided_slice %92 {offsets = [1, 0], sizes = [1, 6], strides = [1, 1]} : vector<28x6xf32> to vector<1x6xf32>
      %95 = arith.maximumf %93, %94 : vector<1x6xf32>
      %96 = vector.extract_strided_slice %92 {offsets = [2, 0], sizes = [1, 6], strides = [1, 1]} : vector<28x6xf32> to vector<1x6xf32>
      %97 = vector.extract_strided_slice %92 {offsets = [3, 0], sizes = [1, 6], strides = [1, 1]} : vector<28x6xf32> to vector<1x6xf32>
      %98 = arith.maximumf %96, %97 : vector<1x6xf32>
      %99 = vector.extract_strided_slice %92 {offsets = [4, 0], sizes = [1, 6], strides = [1, 1]} : vector<28x6xf32> to vector<1x6xf32>
      %100 = vector.extract_strided_slice %92 {offsets = [5, 0], sizes = [1, 6], strides = [1, 1]} : vector<28x6xf32> to vector<1x6xf32>
      %101 = arith.maximumf %99, %100 : vector<1x6xf32>
      %102 = vector.extract_strided_slice %92 {offsets = [6, 0], sizes = [1, 6], strides = [1, 1]} : vector<28x6xf32> to vector<1x6xf32>
      %103 = vector.extract_strided_slice %92 {offsets = [7, 0], sizes = [1, 6], strides = [1, 1]} : vector<28x6xf32> to vector<1x6xf32>
      %104 = arith.maximumf %102, %103 : vector<1x6xf32>
      %105 = vector.extract_strided_slice %92 {offsets = [8, 0], sizes = [1, 6], strides = [1, 1]} : vector<28x6xf32> to vector<1x6xf32>
      %106 = vector.extract_strided_slice %92 {offsets = [9, 0], sizes = [1, 6], strides = [1, 1]} : vector<28x6xf32> to vector<1x6xf32>
      %107 = arith.maximumf %105, %106 : vector<1x6xf32>
      %108 = vector.extract_strided_slice %92 {offsets = [10, 0], sizes = [1, 6], strides = [1, 1]} : vector<28x6xf32> to vector<1x6xf32>
      %109 = vector.extract_strided_slice %92 {offsets = [11, 0], sizes = [1, 6], strides = [1, 1]} : vector<28x6xf32> to vector<1x6xf32>
      %110 = arith.maximumf %108, %109 : vector<1x6xf32>
      %111 = vector.extract_strided_slice %92 {offsets = [12, 0], sizes = [1, 6], strides = [1, 1]} : vector<28x6xf32> to vector<1x6xf32>
      %112 = vector.extract_strided_slice %92 {offsets = [13, 0], sizes = [1, 6], strides = [1, 1]} : vector<28x6xf32> to vector<1x6xf32>
      %113 = arith.maximumf %111, %112 : vector<1x6xf32>
      %114 = vector.extract_strided_slice %92 {offsets = [14, 0], sizes = [1, 6], strides = [1, 1]} : vector<28x6xf32> to vector<1x6xf32>
      %115 = vector.extract_strided_slice %92 {offsets = [15, 0], sizes = [1, 6], strides = [1, 1]} : vector<28x6xf32> to vector<1x6xf32>
      %116 = arith.maximumf %114, %115 : vector<1x6xf32>
      %117 = vector.extract_strided_slice %92 {offsets = [16, 0], sizes = [1, 6], strides = [1, 1]} : vector<28x6xf32> to vector<1x6xf32>
      %118 = vector.extract_strided_slice %92 {offsets = [17, 0], sizes = [1, 6], strides = [1, 1]} : vector<28x6xf32> to vector<1x6xf32>
      %119 = arith.maximumf %117, %118 : vector<1x6xf32>
      %120 = vector.extract_strided_slice %92 {offsets = [18, 0], sizes = [1, 6], strides = [1, 1]} : vector<28x6xf32> to vector<1x6xf32>
      %121 = vector.extract_strided_slice %92 {offsets = [19, 0], sizes = [1, 6], strides = [1, 1]} : vector<28x6xf32> to vector<1x6xf32>
      %122 = arith.maximumf %120, %121 : vector<1x6xf32>
      %123 = vector.extract_strided_slice %92 {offsets = [20, 0], sizes = [1, 6], strides = [1, 1]} : vector<28x6xf32> to vector<1x6xf32>
      %124 = vector.extract_strided_slice %92 {offsets = [21, 0], sizes = [1, 6], strides = [1, 1]} : vector<28x6xf32> to vector<1x6xf32>
      %125 = arith.maximumf %123, %124 : vector<1x6xf32>
      %126 = vector.extract_strided_slice %92 {offsets = [22, 0], sizes = [1, 6], strides = [1, 1]} : vector<28x6xf32> to vector<1x6xf32>
      %127 = vector.extract_strided_slice %92 {offsets = [23, 0], sizes = [1, 6], strides = [1, 1]} : vector<28x6xf32> to vector<1x6xf32>
      %128 = arith.maximumf %126, %127 : vector<1x6xf32>
      %129 = vector.extract_strided_slice %92 {offsets = [24, 0], sizes = [1, 6], strides = [1, 1]} : vector<28x6xf32> to vector<1x6xf32>
      %130 = vector.extract_strided_slice %92 {offsets = [25, 0], sizes = [1, 6], strides = [1, 1]} : vector<28x6xf32> to vector<1x6xf32>
      %131 = arith.maximumf %129, %130 : vector<1x6xf32>
      %132 = vector.extract_strided_slice %92 {offsets = [26, 0], sizes = [1, 6], strides = [1, 1]} : vector<28x6xf32> to vector<1x6xf32>
      %133 = vector.extract_strided_slice %92 {offsets = [27, 0], sizes = [1, 6], strides = [1, 1]} : vector<28x6xf32> to vector<1x6xf32>
      %134 = arith.maximumf %132, %133 : vector<1x6xf32>
      %135 = tpu.concatenate %95, %98, %101, %104, %107, %110, %113, %116, %119, %122, %125, %128, %131, %134 in 0 : vector<1x6xf32>, vector<1x6xf32>, vector<1x6xf32>, vector<1x6xf32>, vector<1x6xf32>, vector<1x6xf32>, vector<1x6xf32>, vector<1x6xf32>, vector<1x6xf32>, vector<1x6xf32>, vector<1x6xf32>, vector<1x6xf32>, vector<1x6xf32>, vector<1x6xf32> -> vector<14x6xf32>
      %136 = arith.index_cast %82 : i32 to index
      %c0_118 = arith.constant 0 : index
      %c0_119 = arith.constant 0 : index
      %137 = vector.load %arg15[%136, %c0_118, %c0_119] : memref<14x14x6xf32, #tpu.memory_space<vmem>>, vector<1x14x6xf32>
      %138 = vector.shape_cast %137 : vector<1x14x6xf32> to vector<14x6xf32>
      %139 = vector.shape_cast %135 : vector<14x6xf32> to vector<1x14x6xf32>
      tpu.vector_store %arg15[%136, %c0_118, %c0_119], %139 {strides = array<i32>} : memref<14x14x6xf32, #tpu.memory_space<vmem>>, vector<1x14x6xf32>,
    }
    %c14_i32_11 = arith.constant 14 : i32
    %c0_i32_12 = arith.constant 0 : i32
    %c10_i32 = arith.constant 10 : i32
    %7 = arith.addi %c0_i32_12, %c10_i32 : i32
    %c1_i32_13 = arith.constant 1 : i32
    scf.for %arg18 = %c0_i32_12 to %7 step %c1_i32_13  : i32 {
      %c1_i32_110 = arith.constant 1 : i32
      %81 = arith.muli %arg18, %c1_i32_110 : i32
      %c0_i32_111 = arith.constant 0 : i32
      %82 = arith.addi %c0_i32_111, %81 : i32
      %cst_112 = arith.constant 0.000000e+00 : f32
      %83 = vector.broadcast %cst_112 : f32 to vector<10x16xf32>
      %c0_i32_113 = arith.constant 0 : i32
      %84 = arith.addi %82, %c0_i32_113 : i32
      %85 = arith.index_cast %84 : i32 to index
      %c0_114 = arith.constant 0 : index
      %c0_115 = arith.constant 0 : index
      %86 = vector.load %arg15[%85, %c0_114, %c0_115] : memref<14x14x6xf32, #tpu.memory_space<vmem>>, vector<1x10x6xf32>
      %87 = vector.shape_cast %86 : vector<1x10x6xf32> to vector<10x6xf32>
      %c0_116 = arith.constant 0 : index
      %c0_117 = arith.constant 0 : index
      %c0_118 = arith.constant 0 : index
      %c0_119 = arith.constant 0 : index
      %88 = vector.load %arg4[%c0_116, %c0_117, %c0_118, %c0_119] : memref<5x5x6x16xf32, #tpu.memory_space<vmem>>, vector<1x1x6x16xf32>
      %89 = vector.shape_cast %88 : vector<1x1x6x16xf32> to vector<6x16xf32>
      %cst_120 = arith.constant dense<0.000000e+00> : vector<10x16xf32>
      %90 = tpu.matmul %87, %89, %cst_120 {dimension_numbers = #tpu.dot_dimension_numbers<[1], [0], [0], [1], [0, 0, 1, 1], [], []>} : vector<10x6xf32>, vector<6x16xf32>, vector<10x16xf32> -> vector<10x16xf32>
      %91 = arith.addf %83, %90 : vector<10x16xf32>
      %c0_i32_121 = arith.constant 0 : i32
      %92 = arith.addi %82, %c0_i32_121 : i32
      %93 = arith.index_cast %92 : i32 to index
      %c1_122 = arith.constant 1 : index
      %c0_123 = arith.constant 0 : index
      %94 = vector.load %arg15[%93, %c1_122, %c0_123] : memref<14x14x6xf32, #tpu.memory_space<vmem>>, vector<1x10x6xf32>
      %95 = vector.shape_cast %94 : vector<1x10x6xf32> to vector<10x6xf32>
      %c0_124 = arith.constant 0 : index
      %c1_125 = arith.constant 1 : index
      %c0_126 = arith.constant 0 : index
      %c0_127 = arith.constant 0 : index
      %96 = vector.load %arg4[%c0_124, %c1_125, %c0_126, %c0_127] : memref<5x5x6x16xf32, #tpu.memory_space<vmem>>, vector<1x1x6x16xf32>
      %97 = vector.shape_cast %96 : vector<1x1x6x16xf32> to vector<6x16xf32>
      %cst_128 = arith.constant dense<0.000000e+00> : vector<10x16xf32>
      %98 = tpu.matmul %95, %97, %cst_128 {dimension_numbers = #tpu.dot_dimension_numbers<[1], [0], [0], [1], [0, 0, 1, 1], [], []>} : vector<10x6xf32>, vector<6x16xf32>, vector<10x16xf32> -> vector<10x16xf32>
      %99 = arith.addf %91, %98 : vector<10x16xf32>
      %c0_i32_129 = arith.constant 0 : i32
      %100 = arith.addi %82, %c0_i32_129 : i32
      %101 = arith.index_cast %100 : i32 to index
      %c2_130 = arith.constant 2 : index
      %c0_131 = arith.constant 0 : index
      %102 = vector.load %arg15[%101, %c2_130, %c0_131] : memref<14x14x6xf32, #tpu.memory_space<vmem>>, vector<1x10x6xf32>
      %103 = vector.shape_cast %102 : vector<1x10x6xf32> to vector<10x6xf32>
      %c0_132 = arith.constant 0 : index
      %c2_133 = arith.constant 2 : index
      %c0_134 = arith.constant 0 : index
      %c0_135 = arith.constant 0 : index
      %104 = vector.load %arg4[%c0_132, %c2_133, %c0_134, %c0_135] : memref<5x5x6x16xf32, #tpu.memory_space<vmem>>, vector<1x1x6x16xf32>
      %105 = vector.shape_cast %104 : vector<1x1x6x16xf32> to vector<6x16xf32>
      %cst_136 = arith.constant dense<0.000000e+00> : vector<10x16xf32>
      %106 = tpu.matmul %103, %105, %cst_136 {dimension_numbers = #tpu.dot_dimension_numbers<[1], [0], [0], [1], [0, 0, 1, 1], [], []>} : vector<10x6xf32>, vector<6x16xf32>, vector<10x16xf32> -> vector<10x16xf32>
      %107 = arith.addf %99, %106 : vector<10x16xf32>
      %c0_i32_137 = arith.constant 0 : i32
      %108 = arith.addi %82, %c0_i32_137 : i32
      %109 = arith.index_cast %108 : i32 to index
      %c3_138 = arith.constant 3 : index
      %c0_139 = arith.constant 0 : index
      %110 = vector.load %arg15[%109, %c3_138, %c0_139] : memref<14x14x6xf32, #tpu.memory_space<vmem>>, vector<1x10x6xf32>
      %111 = vector.shape_cast %110 : vector<1x10x6xf32> to vector<10x6xf32>
      %c0_140 = arith.constant 0 : index
      %c3_141 = arith.constant 3 : index
      %c0_142 = arith.constant 0 : index
      %c0_143 = arith.constant 0 : index
      %112 = vector.load %arg4[%c0_140, %c3_141, %c0_142, %c0_143] : memref<5x5x6x16xf32, #tpu.memory_space<vmem>>, vector<1x1x6x16xf32>
      %113 = vector.shape_cast %112 : vector<1x1x6x16xf32> to vector<6x16xf32>
      %cst_144 = arith.constant dense<0.000000e+00> : vector<10x16xf32>
      %114 = tpu.matmul %111, %113, %cst_144 {dimension_numbers = #tpu.dot_dimension_numbers<[1], [0], [0], [1], [0, 0, 1, 1], [], []>} : vector<10x6xf32>, vector<6x16xf32>, vector<10x16xf32> -> vector<10x16xf32>
      %115 = arith.addf %107, %114 : vector<10x16xf32>
      %c0_i32_145 = arith.constant 0 : i32
      %116 = arith.addi %82, %c0_i32_145 : i32
      %117 = arith.index_cast %116 : i32 to index
      %c4_146 = arith.constant 4 : index
      %c0_147 = arith.constant 0 : index
      %118 = vector.load %arg15[%117, %c4_146, %c0_147] : memref<14x14x6xf32, #tpu.memory_space<vmem>>, vector<1x10x6xf32>
      %119 = vector.shape_cast %118 : vector<1x10x6xf32> to vector<10x6xf32>
      %c0_148 = arith.constant 0 : index
      %c4_149 = arith.constant 4 : index
      %c0_150 = arith.constant 0 : index
      %c0_151 = arith.constant 0 : index
      %120 = vector.load %arg4[%c0_148, %c4_149, %c0_150, %c0_151] : memref<5x5x6x16xf32, #tpu.memory_space<vmem>>, vector<1x1x6x16xf32>
      %121 = vector.shape_cast %120 : vector<1x1x6x16xf32> to vector<6x16xf32>
      %cst_152 = arith.constant dense<0.000000e+00> : vector<10x16xf32>
      %122 = tpu.matmul %119, %121, %cst_152 {dimension_numbers = #tpu.dot_dimension_numbers<[1], [0], [0], [1], [0, 0, 1, 1], [], []>} : vector<10x6xf32>, vector<6x16xf32>, vector<10x16xf32> -> vector<10x16xf32>
      %123 = arith.addf %115, %122 : vector<10x16xf32>
      %c1_i32_153 = arith.constant 1 : i32
      %124 = arith.addi %82, %c1_i32_153 : i32
      %125 = arith.index_cast %124 : i32 to index
      %c0_154 = arith.constant 0 : index
      %c0_155 = arith.constant 0 : index
      %126 = vector.load %arg15[%125, %c0_154, %c0_155] : memref<14x14x6xf32, #tpu.memory_space<vmem>>, vector<1x10x6xf32>
      %127 = vector.shape_cast %126 : vector<1x10x6xf32> to vector<10x6xf32>
      %c1_156 = arith.constant 1 : index
      %c0_157 = arith.constant 0 : index
      %c0_158 = arith.constant 0 : index
      %c0_159 = arith.constant 0 : index
      %128 = vector.load %arg4[%c1_156, %c0_157, %c0_158, %c0_159] : memref<5x5x6x16xf32, #tpu.memory_space<vmem>>, vector<1x1x6x16xf32>
      %129 = vector.shape_cast %128 : vector<1x1x6x16xf32> to vector<6x16xf32>
      %cst_160 = arith.constant dense<0.000000e+00> : vector<10x16xf32>
      %130 = tpu.matmul %127, %129, %cst_160 {dimension_numbers = #tpu.dot_dimension_numbers<[1], [0], [0], [1], [0, 0, 1, 1], [], []>} : vector<10x6xf32>, vector<6x16xf32>, vector<10x16xf32> -> vector<10x16xf32>
      %131 = arith.addf %123, %130 : vector<10x16xf32>
      %c1_i32_161 = arith.constant 1 : i32
      %132 = arith.addi %82, %c1_i32_161 : i32
      %133 = arith.index_cast %132 : i32 to index
      %c1_162 = arith.constant 1 : index
      %c0_163 = arith.constant 0 : index
      %134 = vector.load %arg15[%133, %c1_162, %c0_163] : memref<14x14x6xf32, #tpu.memory_space<vmem>>, vector<1x10x6xf32>
      %135 = vector.shape_cast %134 : vector<1x10x6xf32> to vector<10x6xf32>
      %c1_164 = arith.constant 1 : index
      %c1_165 = arith.constant 1 : index
      %c0_166 = arith.constant 0 : index
      %c0_167 = arith.constant 0 : index
      %136 = vector.load %arg4[%c1_164, %c1_165, %c0_166, %c0_167] : memref<5x5x6x16xf32, #tpu.memory_space<vmem>>, vector<1x1x6x16xf32>
      %137 = vector.shape_cast %136 : vector<1x1x6x16xf32> to vector<6x16xf32>
      %cst_168 = arith.constant dense<0.000000e+00> : vector<10x16xf32>
      %138 = tpu.matmul %135, %137, %cst_168 {dimension_numbers = #tpu.dot_dimension_numbers<[1], [0], [0], [1], [0, 0, 1, 1], [], []>} : vector<10x6xf32>, vector<6x16xf32>, vector<10x16xf32> -> vector<10x16xf32>
      %139 = arith.addf %131, %138 : vector<10x16xf32>
      %c1_i32_169 = arith.constant 1 : i32
      %140 = arith.addi %82, %c1_i32_169 : i32
      %141 = arith.index_cast %140 : i32 to index
      %c2_170 = arith.constant 2 : index
      %c0_171 = arith.constant 0 : index
      %142 = vector.load %arg15[%141, %c2_170, %c0_171] : memref<14x14x6xf32, #tpu.memory_space<vmem>>, vector<1x10x6xf32>
      %143 = vector.shape_cast %142 : vector<1x10x6xf32> to vector<10x6xf32>
      %c1_172 = arith.constant 1 : index
      %c2_173 = arith.constant 2 : index
      %c0_174 = arith.constant 0 : index
      %c0_175 = arith.constant 0 : index
      %144 = vector.load %arg4[%c1_172, %c2_173, %c0_174, %c0_175] : memref<5x5x6x16xf32, #tpu.memory_space<vmem>>, vector<1x1x6x16xf32>
      %145 = vector.shape_cast %144 : vector<1x1x6x16xf32> to vector<6x16xf32>
      %cst_176 = arith.constant dense<0.000000e+00> : vector<10x16xf32>
      %146 = tpu.matmul %143, %145, %cst_176 {dimension_numbers = #tpu.dot_dimension_numbers<[1], [0], [0], [1], [0, 0, 1, 1], [], []>} : vector<10x6xf32>, vector<6x16xf32>, vector<10x16xf32> -> vector<10x16xf32>
      %147 = arith.addf %139, %146 : vector<10x16xf32>
      %c1_i32_177 = arith.constant 1 : i32
      %148 = arith.addi %82, %c1_i32_177 : i32
      %149 = arith.index_cast %148 : i32 to index
      %c3_178 = arith.constant 3 : index
      %c0_179 = arith.constant 0 : index
      %150 = vector.load %arg15[%149, %c3_178, %c0_179] : memref<14x14x6xf32, #tpu.memory_space<vmem>>, vector<1x10x6xf32>
      %151 = vector.shape_cast %150 : vector<1x10x6xf32> to vector<10x6xf32>
      %c1_180 = arith.constant 1 : index
      %c3_181 = arith.constant 3 : index
      %c0_182 = arith.constant 0 : index
      %c0_183 = arith.constant 0 : index
      %152 = vector.load %arg4[%c1_180, %c3_181, %c0_182, %c0_183] : memref<5x5x6x16xf32, #tpu.memory_space<vmem>>, vector<1x1x6x16xf32>
      %153 = vector.shape_cast %152 : vector<1x1x6x16xf32> to vector<6x16xf32>
      %cst_184 = arith.constant dense<0.000000e+00> : vector<10x16xf32>
      %154 = tpu.matmul %151, %153, %cst_184 {dimension_numbers = #tpu.dot_dimension_numbers<[1], [0], [0], [1], [0, 0, 1, 1], [], []>} : vector<10x6xf32>, vector<6x16xf32>, vector<10x16xf32> -> vector<10x16xf32>
      %155 = arith.addf %147, %154 : vector<10x16xf32>
      %c1_i32_185 = arith.constant 1 : i32
      %156 = arith.addi %82, %c1_i32_185 : i32
      %157 = arith.index_cast %156 : i32 to index
      %c4_186 = arith.constant 4 : index
      %c0_187 = arith.constant 0 : index
      %158 = vector.load %arg15[%157, %c4_186, %c0_187] : memref<14x14x6xf32, #tpu.memory_space<vmem>>, vector<1x10x6xf32>
      %159 = vector.shape_cast %158 : vector<1x10x6xf32> to vector<10x6xf32>
      %c1_188 = arith.constant 1 : index
      %c4_189 = arith.constant 4 : index
      %c0_190 = arith.constant 0 : index
      %c0_191 = arith.constant 0 : index
      %160 = vector.load %arg4[%c1_188, %c4_189, %c0_190, %c0_191] : memref<5x5x6x16xf32, #tpu.memory_space<vmem>>, vector<1x1x6x16xf32>
      %161 = vector.shape_cast %160 : vector<1x1x6x16xf32> to vector<6x16xf32>
      %cst_192 = arith.constant dense<0.000000e+00> : vector<10x16xf32>
      %162 = tpu.matmul %159, %161, %cst_192 {dimension_numbers = #tpu.dot_dimension_numbers<[1], [0], [0], [1], [0, 0, 1, 1], [], []>} : vector<10x6xf32>, vector<6x16xf32>, vector<10x16xf32> -> vector<10x16xf32>
      %163 = arith.addf %155, %162 : vector<10x16xf32>
      %c2_i32 = arith.constant 2 : i32
      %164 = arith.addi %82, %c2_i32 : i32
      %165 = arith.index_cast %164 : i32 to index
      %c0_193 = arith.constant 0 : index
      %c0_194 = arith.constant 0 : index
      %166 = vector.load %arg15[%165, %c0_193, %c0_194] : memref<14x14x6xf32, #tpu.memory_space<vmem>>, vector<1x10x6xf32>
      %167 = vector.shape_cast %166 : vector<1x10x6xf32> to vector<10x6xf32>
      %c2_195 = arith.constant 2 : index
      %c0_196 = arith.constant 0 : index
      %c0_197 = arith.constant 0 : index
      %c0_198 = arith.constant 0 : index
      %168 = vector.load %arg4[%c2_195, %c0_196, %c0_197, %c0_198] : memref<5x5x6x16xf32, #tpu.memory_space<vmem>>, vector<1x1x6x16xf32>
      %169 = vector.shape_cast %168 : vector<1x1x6x16xf32> to vector<6x16xf32>
      %cst_199 = arith.constant dense<0.000000e+00> : vector<10x16xf32>
      %170 = tpu.matmul %167, %169, %cst_199 {dimension_numbers = #tpu.dot_dimension_numbers<[1], [0], [0], [1], [0, 0, 1, 1], [], []>} : vector<10x6xf32>, vector<6x16xf32>, vector<10x16xf32> -> vector<10x16xf32>
      %171 = arith.addf %163, %170 : vector<10x16xf32>
      %c2_i32_200 = arith.constant 2 : i32
      %172 = arith.addi %82, %c2_i32_200 : i32
      %173 = arith.index_cast %172 : i32 to index
      %c1_201 = arith.constant 1 : index
      %c0_202 = arith.constant 0 : index
      %174 = vector.load %arg15[%173, %c1_201, %c0_202] : memref<14x14x6xf32, #tpu.memory_space<vmem>>, vector<1x10x6xf32>
      %175 = vector.shape_cast %174 : vector<1x10x6xf32> to vector<10x6xf32>
      %c2_203 = arith.constant 2 : index
      %c1_204 = arith.constant 1 : index
      %c0_205 = arith.constant 0 : index
      %c0_206 = arith.constant 0 : index
      %176 = vector.load %arg4[%c2_203, %c1_204, %c0_205, %c0_206] : memref<5x5x6x16xf32, #tpu.memory_space<vmem>>, vector<1x1x6x16xf32>
      %177 = vector.shape_cast %176 : vector<1x1x6x16xf32> to vector<6x16xf32>
      %cst_207 = arith.constant dense<0.000000e+00> : vector<10x16xf32>
      %178 = tpu.matmul %175, %177, %cst_207 {dimension_numbers = #tpu.dot_dimension_numbers<[1], [0], [0], [1], [0, 0, 1, 1], [], []>} : vector<10x6xf32>, vector<6x16xf32>, vector<10x16xf32> -> vector<10x16xf32>
      %179 = arith.addf %171, %178 : vector<10x16xf32>
      %c2_i32_208 = arith.constant 2 : i32
      %180 = arith.addi %82, %c2_i32_208 : i32
      %181 = arith.index_cast %180 : i32 to index
      %c2_209 = arith.constant 2 : index
      %c0_210 = arith.constant 0 : index
      %182 = vector.load %arg15[%181, %c2_209, %c0_210] : memref<14x14x6xf32, #tpu.memory_space<vmem>>, vector<1x10x6xf32>
      %183 = vector.shape_cast %182 : vector<1x10x6xf32> to vector<10x6xf32>
      %c2_211 = arith.constant 2 : index
      %c2_212 = arith.constant 2 : index
      %c0_213 = arith.constant 0 : index
      %c0_214 = arith.constant 0 : index
      %184 = vector.load %arg4[%c2_211, %c2_212, %c0_213, %c0_214] : memref<5x5x6x16xf32, #tpu.memory_space<vmem>>, vector<1x1x6x16xf32>
      %185 = vector.shape_cast %184 : vector<1x1x6x16xf32> to vector<6x16xf32>
      %cst_215 = arith.constant dense<0.000000e+00> : vector<10x16xf32>
      %186 = tpu.matmul %183, %185, %cst_215 {dimension_numbers = #tpu.dot_dimension_numbers<[1], [0], [0], [1], [0, 0, 1, 1], [], []>} : vector<10x6xf32>, vector<6x16xf32>, vector<10x16xf32> -> vector<10x16xf32>
      %187 = arith.addf %179, %186 : vector<10x16xf32>
      %c2_i32_216 = arith.constant 2 : i32
      %188 = arith.addi %82, %c2_i32_216 : i32
      %189 = arith.index_cast %188 : i32 to index
      %c3_217 = arith.constant 3 : index
      %c0_218 = arith.constant 0 : index
      %190 = vector.load %arg15[%189, %c3_217, %c0_218] : memref<14x14x6xf32, #tpu.memory_space<vmem>>, vector<1x10x6xf32>
      %191 = vector.shape_cast %190 : vector<1x10x6xf32> to vector<10x6xf32>
      %c2_219 = arith.constant 2 : index
      %c3_220 = arith.constant 3 : index
      %c0_221 = arith.constant 0 : index
      %c0_222 = arith.constant 0 : index
      %192 = vector.load %arg4[%c2_219, %c3_220, %c0_221, %c0_222] : memref<5x5x6x16xf32, #tpu.memory_space<vmem>>, vector<1x1x6x16xf32>
      %193 = vector.shape_cast %192 : vector<1x1x6x16xf32> to vector<6x16xf32>
      %cst_223 = arith.constant dense<0.000000e+00> : vector<10x16xf32>
      %194 = tpu.matmul %191, %193, %cst_223 {dimension_numbers = #tpu.dot_dimension_numbers<[1], [0], [0], [1], [0, 0, 1, 1], [], []>} : vector<10x6xf32>, vector<6x16xf32>, vector<10x16xf32> -> vector<10x16xf32>
      %195 = arith.addf %187, %194 : vector<10x16xf32>
      %c2_i32_224 = arith.constant 2 : i32
      %196 = arith.addi %82, %c2_i32_224 : i32
      %197 = arith.index_cast %196 : i32 to index
      %c4_225 = arith.constant 4 : index
      %c0_226 = arith.constant 0 : index
      %198 = vector.load %arg15[%197, %c4_225, %c0_226] : memref<14x14x6xf32, #tpu.memory_space<vmem>>, vector<1x10x6xf32>
      %199 = vector.shape_cast %198 : vector<1x10x6xf32> to vector<10x6xf32>
      %c2_227 = arith.constant 2 : index
      %c4_228 = arith.constant 4 : index
      %c0_229 = arith.constant 0 : index
      %c0_230 = arith.constant 0 : index
      %200 = vector.load %arg4[%c2_227, %c4_228, %c0_229, %c0_230] : memref<5x5x6x16xf32, #tpu.memory_space<vmem>>, vector<1x1x6x16xf32>
      %201 = vector.shape_cast %200 : vector<1x1x6x16xf32> to vector<6x16xf32>
      %cst_231 = arith.constant dense<0.000000e+00> : vector<10x16xf32>
      %202 = tpu.matmul %199, %201, %cst_231 {dimension_numbers = #tpu.dot_dimension_numbers<[1], [0], [0], [1], [0, 0, 1, 1], [], []>} : vector<10x6xf32>, vector<6x16xf32>, vector<10x16xf32> -> vector<10x16xf32>
      %203 = arith.addf %195, %202 : vector<10x16xf32>
      %c3_i32 = arith.constant 3 : i32
      %204 = arith.addi %82, %c3_i32 : i32
      %205 = arith.index_cast %204 : i32 to index
      %c0_232 = arith.constant 0 : index
      %c0_233 = arith.constant 0 : index
      %206 = vector.load %arg15[%205, %c0_232, %c0_233] : memref<14x14x6xf32, #tpu.memory_space<vmem>>, vector<1x10x6xf32>
      %207 = vector.shape_cast %206 : vector<1x10x6xf32> to vector<10x6xf32>
      %c3_234 = arith.constant 3 : index
      %c0_235 = arith.constant 0 : index
      %c0_236 = arith.constant 0 : index
      %c0_237 = arith.constant 0 : index
      %208 = vector.load %arg4[%c3_234, %c0_235, %c0_236, %c0_237] : memref<5x5x6x16xf32, #tpu.memory_space<vmem>>, vector<1x1x6x16xf32>
      %209 = vector.shape_cast %208 : vector<1x1x6x16xf32> to vector<6x16xf32>
      %cst_238 = arith.constant dense<0.000000e+00> : vector<10x16xf32>
      %210 = tpu.matmul %207, %209, %cst_238 {dimension_numbers = #tpu.dot_dimension_numbers<[1], [0], [0], [1], [0, 0, 1, 1], [], []>} : vector<10x6xf32>, vector<6x16xf32>, vector<10x16xf32> -> vector<10x16xf32>
      %211 = arith.addf %203, %210 : vector<10x16xf32>
      %c3_i32_239 = arith.constant 3 : i32
      %212 = arith.addi %82, %c3_i32_239 : i32
      %213 = arith.index_cast %212 : i32 to index
      %c1_240 = arith.constant 1 : index
      %c0_241 = arith.constant 0 : index
      %214 = vector.load %arg15[%213, %c1_240, %c0_241] : memref<14x14x6xf32, #tpu.memory_space<vmem>>, vector<1x10x6xf32>
      %215 = vector.shape_cast %214 : vector<1x10x6xf32> to vector<10x6xf32>
      %c3_242 = arith.constant 3 : index
      %c1_243 = arith.constant 1 : index
      %c0_244 = arith.constant 0 : index
      %c0_245 = arith.constant 0 : index
      %216 = vector.load %arg4[%c3_242, %c1_243, %c0_244, %c0_245] : memref<5x5x6x16xf32, #tpu.memory_space<vmem>>, vector<1x1x6x16xf32>
      %217 = vector.shape_cast %216 : vector<1x1x6x16xf32> to vector<6x16xf32>
      %cst_246 = arith.constant dense<0.000000e+00> : vector<10x16xf32>
      %218 = tpu.matmul %215, %217, %cst_246 {dimension_numbers = #tpu.dot_dimension_numbers<[1], [0], [0], [1], [0, 0, 1, 1], [], []>} : vector<10x6xf32>, vector<6x16xf32>, vector<10x16xf32> -> vector<10x16xf32>
      %219 = arith.addf %211, %218 : vector<10x16xf32>
      %c3_i32_247 = arith.constant 3 : i32
      %220 = arith.addi %82, %c3_i32_247 : i32
      %221 = arith.index_cast %220 : i32 to index
      %c2_248 = arith.constant 2 : index
      %c0_249 = arith.constant 0 : index
      %222 = vector.load %arg15[%221, %c2_248, %c0_249] : memref<14x14x6xf32, #tpu.memory_space<vmem>>, vector<1x10x6xf32>
      %223 = vector.shape_cast %222 : vector<1x10x6xf32> to vector<10x6xf32>
      %c3_250 = arith.constant 3 : index
      %c2_251 = arith.constant 2 : index
      %c0_252 = arith.constant 0 : index
      %c0_253 = arith.constant 0 : index
      %224 = vector.load %arg4[%c3_250, %c2_251, %c0_252, %c0_253] : memref<5x5x6x16xf32, #tpu.memory_space<vmem>>, vector<1x1x6x16xf32>
      %225 = vector.shape_cast %224 : vector<1x1x6x16xf32> to vector<6x16xf32>
      %cst_254 = arith.constant dense<0.000000e+00> : vector<10x16xf32>
      %226 = tpu.matmul %223, %225, %cst_254 {dimension_numbers = #tpu.dot_dimension_numbers<[1], [0], [0], [1], [0, 0, 1, 1], [], []>} : vector<10x6xf32>, vector<6x16xf32>, vector<10x16xf32> -> vector<10x16xf32>
      %227 = arith.addf %219, %226 : vector<10x16xf32>
      %c3_i32_255 = arith.constant 3 : i32
      %228 = arith.addi %82, %c3_i32_255 : i32
      %229 = arith.index_cast %228 : i32 to index
      %c3_256 = arith.constant 3 : index
      %c0_257 = arith.constant 0 : index
      %230 = vector.load %arg15[%229, %c3_256, %c0_257] : memref<14x14x6xf32, #tpu.memory_space<vmem>>, vector<1x10x6xf32>
      %231 = vector.shape_cast %230 : vector<1x10x6xf32> to vector<10x6xf32>
      %c3_258 = arith.constant 3 : index
      %c3_259 = arith.constant 3 : index
      %c0_260 = arith.constant 0 : index
      %c0_261 = arith.constant 0 : index
      %232 = vector.load %arg4[%c3_258, %c3_259, %c0_260, %c0_261] : memref<5x5x6x16xf32, #tpu.memory_space<vmem>>, vector<1x1x6x16xf32>
      %233 = vector.shape_cast %232 : vector<1x1x6x16xf32> to vector<6x16xf32>
      %cst_262 = arith.constant dense<0.000000e+00> : vector<10x16xf32>
      %234 = tpu.matmul %231, %233, %cst_262 {dimension_numbers = #tpu.dot_dimension_numbers<[1], [0], [0], [1], [0, 0, 1, 1], [], []>} : vector<10x6xf32>, vector<6x16xf32>, vector<10x16xf32> -> vector<10x16xf32>
      %235 = arith.addf %227, %234 : vector<10x16xf32>
      %c3_i32_263 = arith.constant 3 : i32
      %236 = arith.addi %82, %c3_i32_263 : i32
      %237 = arith.index_cast %236 : i32 to index
      %c4_264 = arith.constant 4 : index
      %c0_265 = arith.constant 0 : index
      %238 = vector.load %arg15[%237, %c4_264, %c0_265] : memref<14x14x6xf32, #tpu.memory_space<vmem>>, vector<1x10x6xf32>
      %239 = vector.shape_cast %238 : vector<1x10x6xf32> to vector<10x6xf32>
      %c3_266 = arith.constant 3 : index
      %c4_267 = arith.constant 4 : index
      %c0_268 = arith.constant 0 : index
      %c0_269 = arith.constant 0 : index
      %240 = vector.load %arg4[%c3_266, %c4_267, %c0_268, %c0_269] : memref<5x5x6x16xf32, #tpu.memory_space<vmem>>, vector<1x1x6x16xf32>
      %241 = vector.shape_cast %240 : vector<1x1x6x16xf32> to vector<6x16xf32>
      %cst_270 = arith.constant dense<0.000000e+00> : vector<10x16xf32>
      %242 = tpu.matmul %239, %241, %cst_270 {dimension_numbers = #tpu.dot_dimension_numbers<[1], [0], [0], [1], [0, 0, 1, 1], [], []>} : vector<10x6xf32>, vector<6x16xf32>, vector<10x16xf32> -> vector<10x16xf32>
      %243 = arith.addf %235, %242 : vector<10x16xf32>
      %c4_i32 = arith.constant 4 : i32
      %244 = arith.addi %82, %c4_i32 : i32
      %245 = arith.index_cast %244 : i32 to index
      %c0_271 = arith.constant 0 : index
      %c0_272 = arith.constant 0 : index
      %246 = vector.load %arg15[%245, %c0_271, %c0_272] : memref<14x14x6xf32, #tpu.memory_space<vmem>>, vector<1x10x6xf32>
      %247 = vector.shape_cast %246 : vector<1x10x6xf32> to vector<10x6xf32>
      %c4_273 = arith.constant 4 : index
      %c0_274 = arith.constant 0 : index
      %c0_275 = arith.constant 0 : index
      %c0_276 = arith.constant 0 : index
      %248 = vector.load %arg4[%c4_273, %c0_274, %c0_275, %c0_276] : memref<5x5x6x16xf32, #tpu.memory_space<vmem>>, vector<1x1x6x16xf32>
      %249 = vector.shape_cast %248 : vector<1x1x6x16xf32> to vector<6x16xf32>
      %cst_277 = arith.constant dense<0.000000e+00> : vector<10x16xf32>
      %250 = tpu.matmul %247, %249, %cst_277 {dimension_numbers = #tpu.dot_dimension_numbers<[1], [0], [0], [1], [0, 0, 1, 1], [], []>} : vector<10x6xf32>, vector<6x16xf32>, vector<10x16xf32> -> vector<10x16xf32>
      %251 = arith.addf %243, %250 : vector<10x16xf32>
      %c4_i32_278 = arith.constant 4 : i32
      %252 = arith.addi %82, %c4_i32_278 : i32
      %253 = arith.index_cast %252 : i32 to index
      %c1_279 = arith.constant 1 : index
      %c0_280 = arith.constant 0 : index
      %254 = vector.load %arg15[%253, %c1_279, %c0_280] : memref<14x14x6xf32, #tpu.memory_space<vmem>>, vector<1x10x6xf32>
      %255 = vector.shape_cast %254 : vector<1x10x6xf32> to vector<10x6xf32>
      %c4_281 = arith.constant 4 : index
      %c1_282 = arith.constant 1 : index
      %c0_283 = arith.constant 0 : index
      %c0_284 = arith.constant 0 : index
      %256 = vector.load %arg4[%c4_281, %c1_282, %c0_283, %c0_284] : memref<5x5x6x16xf32, #tpu.memory_space<vmem>>, vector<1x1x6x16xf32>
      %257 = vector.shape_cast %256 : vector<1x1x6x16xf32> to vector<6x16xf32>
      %cst_285 = arith.constant dense<0.000000e+00> : vector<10x16xf32>
      %258 = tpu.matmul %255, %257, %cst_285 {dimension_numbers = #tpu.dot_dimension_numbers<[1], [0], [0], [1], [0, 0, 1, 1], [], []>} : vector<10x6xf32>, vector<6x16xf32>, vector<10x16xf32> -> vector<10x16xf32>
      %259 = arith.addf %251, %258 : vector<10x16xf32>
      %c4_i32_286 = arith.constant 4 : i32
      %260 = arith.addi %82, %c4_i32_286 : i32
      %261 = arith.index_cast %260 : i32 to index
      %c2_287 = arith.constant 2 : index
      %c0_288 = arith.constant 0 : index
      %262 = vector.load %arg15[%261, %c2_287, %c0_288] : memref<14x14x6xf32, #tpu.memory_space<vmem>>, vector<1x10x6xf32>
      %263 = vector.shape_cast %262 : vector<1x10x6xf32> to vector<10x6xf32>
      %c4_289 = arith.constant 4 : index
      %c2_290 = arith.constant 2 : index
      %c0_291 = arith.constant 0 : index
      %c0_292 = arith.constant 0 : index
      %264 = vector.load %arg4[%c4_289, %c2_290, %c0_291, %c0_292] : memref<5x5x6x16xf32, #tpu.memory_space<vmem>>, vector<1x1x6x16xf32>
      %265 = vector.shape_cast %264 : vector<1x1x6x16xf32> to vector<6x16xf32>
      %cst_293 = arith.constant dense<0.000000e+00> : vector<10x16xf32>
      %266 = tpu.matmul %263, %265, %cst_293 {dimension_numbers = #tpu.dot_dimension_numbers<[1], [0], [0], [1], [0, 0, 1, 1], [], []>} : vector<10x6xf32>, vector<6x16xf32>, vector<10x16xf32> -> vector<10x16xf32>
      %267 = arith.addf %259, %266 : vector<10x16xf32>
      %c4_i32_294 = arith.constant 4 : i32
      %268 = arith.addi %82, %c4_i32_294 : i32
      %269 = arith.index_cast %268 : i32 to index
      %c3_295 = arith.constant 3 : index
      %c0_296 = arith.constant 0 : index
      %270 = vector.load %arg15[%269, %c3_295, %c0_296] : memref<14x14x6xf32, #tpu.memory_space<vmem>>, vector<1x10x6xf32>
      %271 = vector.shape_cast %270 : vector<1x10x6xf32> to vector<10x6xf32>
      %c4_297 = arith.constant 4 : index
      %c3_298 = arith.constant 3 : index
      %c0_299 = arith.constant 0 : index
      %c0_300 = arith.constant 0 : index
      %272 = vector.load %arg4[%c4_297, %c3_298, %c0_299, %c0_300] : memref<5x5x6x16xf32, #tpu.memory_space<vmem>>, vector<1x1x6x16xf32>
      %273 = vector.shape_cast %272 : vector<1x1x6x16xf32> to vector<6x16xf32>
      %cst_301 = arith.constant dense<0.000000e+00> : vector<10x16xf32>
      %274 = tpu.matmul %271, %273, %cst_301 {dimension_numbers = #tpu.dot_dimension_numbers<[1], [0], [0], [1], [0, 0, 1, 1], [], []>} : vector<10x6xf32>, vector<6x16xf32>, vector<10x16xf32> -> vector<10x16xf32>
      %275 = arith.addf %267, %274 : vector<10x16xf32>
      %c4_i32_302 = arith.constant 4 : i32
      %276 = arith.addi %82, %c4_i32_302 : i32
      %277 = arith.index_cast %276 : i32 to index
      %c4_303 = arith.constant 4 : index
      %c0_304 = arith.constant 0 : index
      %278 = vector.load %arg15[%277, %c4_303, %c0_304] : memref<14x14x6xf32, #tpu.memory_space<vmem>>, vector<1x10x6xf32>
      %279 = vector.shape_cast %278 : vector<1x10x6xf32> to vector<10x6xf32>
      %c4_305 = arith.constant 4 : index
      %c4_306 = arith.constant 4 : index
      %c0_307 = arith.constant 0 : index
      %c0_308 = arith.constant 0 : index
      %280 = vector.load %arg4[%c4_305, %c4_306, %c0_307, %c0_308] : memref<5x5x6x16xf32, #tpu.memory_space<vmem>>, vector<1x1x6x16xf32>
      %281 = vector.shape_cast %280 : vector<1x1x6x16xf32> to vector<6x16xf32>
      %cst_309 = arith.constant dense<0.000000e+00> : vector<10x16xf32>
      %282 = tpu.matmul %279, %281, %cst_309 {dimension_numbers = #tpu.dot_dimension_numbers<[1], [0], [0], [1], [0, 0, 1, 1], [], []>} : vector<10x6xf32>, vector<6x16xf32>, vector<10x16xf32> -> vector<10x16xf32>
      %283 = arith.addf %275, %282 : vector<10x16xf32>
      %c0_310 = arith.constant 0 : index
      %c0_311 = arith.constant 0 : index
      %284 = vector.load %arg5[%c0_310, %c0_311] : memref<1x16xf32, #tpu.memory_space<vmem>>, vector<1x16xf32>
      %285 = vector.broadcast %284 : vector<1x16xf32> to vector<10x16xf32>
      %286 = arith.addf %283, %285 : vector<10x16xf32>
      %cst_312 = arith.constant 0.000000e+00 : f32
      %287 = vector.broadcast %cst_312 : f32 to vector<10x16xf32>
      %288 = arith.maximumf %286, %287 : vector<10x16xf32>
      %289 = arith.index_cast %82 : i32 to index
      %c0_313 = arith.constant 0 : index
      %c0_314 = arith.constant 0 : index
      %290 = vector.load %arg16[%289, %c0_313, %c0_314] : memref<10x10x16xf32, #tpu.memory_space<vmem>>, vector<1x10x16xf32>
      %291 = vector.shape_cast %290 : vector<1x10x16xf32> to vector<10x16xf32>
      %292 = vector.shape_cast %288 : vector<10x16xf32> to vector<1x10x16xf32>
      tpu.vector_store %arg16[%289, %c0_313, %c0_314], %292 {strides = array<i32>} : memref<10x10x16xf32, #tpu.memory_space<vmem>>, vector<1x10x16xf32>,
    }
    %c10_i32_14 = arith.constant 10 : i32
    %c0_i32_15 = arith.constant 0 : i32
    %c5_i32 = arith.constant 5 : i32
    %8 = arith.addi %c0_i32_15, %c5_i32 : i32
    %c1_i32_16 = arith.constant 1 : i32
    scf.for %arg18 = %c0_i32_15 to %8 step %c1_i32_16  : i32 {
      %c1_i32_110 = arith.constant 1 : i32
      %81 = arith.muli %arg18, %c1_i32_110 : i32
      %c0_i32_111 = arith.constant 0 : i32
      %82 = arith.addi %c0_i32_111, %81 : i32
      %c2_i32 = arith.constant 2 : i32
      %83 = arith.muli %c2_i32, %82 : i32
      %84 = arith.index_cast %83 : i32 to index
      %c0_112 = arith.constant 0 : index
      %c0_113 = arith.constant 0 : index
      %85 = vector.load %arg16[%84, %c0_112, %c0_113] : memref<10x10x16xf32, #tpu.memory_space<vmem>>, vector<1x10x16xf32>
      %86 = vector.shape_cast %85 : vector<1x10x16xf32> to vector<10x16xf32>
      %c2_i32_114 = arith.constant 2 : i32
      %87 = arith.muli %c2_i32_114, %82 : i32
      %c1_i32_115 = arith.constant 1 : i32
      %88 = arith.addi %87, %c1_i32_115 : i32
      %89 = arith.index_cast %88 : i32 to index
      %c0_116 = arith.constant 0 : index
      %c0_117 = arith.constant 0 : index
      %90 = vector.load %arg16[%89, %c0_116, %c0_117] : memref<10x10x16xf32, #tpu.memory_space<vmem>>, vector<1x10x16xf32>
      %91 = vector.shape_cast %90 : vector<1x10x16xf32> to vector<10x16xf32>
      %92 = arith.maximumf %86, %91 : vector<10x16xf32>
      %93 = vector.extract_strided_slice %92 {offsets = [0, 0], sizes = [1, 16], strides = [1, 1]} : vector<10x16xf32> to vector<1x16xf32>
      %94 = vector.extract_strided_slice %92 {offsets = [1, 0], sizes = [1, 16], strides = [1, 1]} : vector<10x16xf32> to vector<1x16xf32>
      %95 = arith.maximumf %93, %94 : vector<1x16xf32>
      %96 = vector.extract_strided_slice %92 {offsets = [2, 0], sizes = [1, 16], strides = [1, 1]} : vector<10x16xf32> to vector<1x16xf32>
      %97 = vector.extract_strided_slice %92 {offsets = [3, 0], sizes = [1, 16], strides = [1, 1]} : vector<10x16xf32> to vector<1x16xf32>
      %98 = arith.maximumf %96, %97 : vector<1x16xf32>
      %99 = vector.extract_strided_slice %92 {offsets = [4, 0], sizes = [1, 16], strides = [1, 1]} : vector<10x16xf32> to vector<1x16xf32>
      %100 = vector.extract_strided_slice %92 {offsets = [5, 0], sizes = [1, 16], strides = [1, 1]} : vector<10x16xf32> to vector<1x16xf32>
      %101 = arith.maximumf %99, %100 : vector<1x16xf32>
      %102 = vector.extract_strided_slice %92 {offsets = [6, 0], sizes = [1, 16], strides = [1, 1]} : vector<10x16xf32> to vector<1x16xf32>
      %103 = vector.extract_strided_slice %92 {offsets = [7, 0], sizes = [1, 16], strides = [1, 1]} : vector<10x16xf32> to vector<1x16xf32>
      %104 = arith.maximumf %102, %103 : vector<1x16xf32>
      %105 = vector.extract_strided_slice %92 {offsets = [8, 0], sizes = [1, 16], strides = [1, 1]} : vector<10x16xf32> to vector<1x16xf32>
      %106 = vector.extract_strided_slice %92 {offsets = [9, 0], sizes = [1, 16], strides = [1, 1]} : vector<10x16xf32> to vector<1x16xf32>
      %107 = arith.maximumf %105, %106 : vector<1x16xf32>
      %108 = tpu.concatenate %95, %98, %101, %104, %107 in 0 : vector<1x16xf32>, vector<1x16xf32>, vector<1x16xf32>, vector<1x16xf32>, vector<1x16xf32> -> vector<5x16xf32>
      %109 = arith.index_cast %82 : i32 to index
      %c0_118 = arith.constant 0 : index
      %c0_119 = arith.constant 0 : index
      %110 = vector.load %arg17[%109, %c0_118, %c0_119] : memref<5x5x16xf32, #tpu.memory_space<vmem>>, vector<1x5x16xf32>
      %111 = vector.shape_cast %110 : vector<1x5x16xf32> to vector<5x16xf32>
      %112 = vector.shape_cast %108 : vector<5x16xf32> to vector<1x5x16xf32>
      tpu.vector_store %arg17[%109, %c0_118, %c0_119], %112 {strides = array<i32>} : memref<5x5x16xf32, #tpu.memory_space<vmem>>, vector<1x5x16xf32>,
    }
    %c5_i32_17 = arith.constant 5 : i32
    %c0_18 = arith.constant 0 : index
    %c0_19 = arith.constant 0 : index
    %c0_20 = arith.constant 0 : index
    %9 = vector.load %arg17[%c0_18, %c0_19, %c0_20] : memref<5x5x16xf32, #tpu.memory_space<vmem>>, vector<1x1x16xf32>
    %10 = vector.shape_cast %9 : vector<1x1x16xf32> to vector<1x16xf32>
    %c0_21 = arith.constant 0 : index
    %c1 = arith.constant 1 : index
    %c0_22 = arith.constant 0 : index
    %11 = vector.load %arg17[%c0_21, %c1, %c0_22] : memref<5x5x16xf32, #tpu.memory_space<vmem>>, vector<1x1x16xf32>
    %12 = vector.shape_cast %11 : vector<1x1x16xf32> to vector<1x16xf32>
    %c0_23 = arith.constant 0 : index
    %c2_24 = arith.constant 2 : index
    %c0_25 = arith.constant 0 : index
    %13 = vector.load %arg17[%c0_23, %c2_24, %c0_25] : memref<5x5x16xf32, #tpu.memory_space<vmem>>, vector<1x1x16xf32>
    %14 = vector.shape_cast %13 : vector<1x1x16xf32> to vector<1x16xf32>
    %c0_26 = arith.constant 0 : index
    %c3 = arith.constant 3 : index
    %c0_27 = arith.constant 0 : index
    %15 = vector.load %arg17[%c0_26, %c3, %c0_27] : memref<5x5x16xf32, #tpu.memory_space<vmem>>, vector<1x1x16xf32>
    %16 = vector.shape_cast %15 : vector<1x1x16xf32> to vector<1x16xf32>
    %c0_28 = arith.constant 0 : index
    %c4 = arith.constant 4 : index
    %c0_29 = arith.constant 0 : index
    %17 = vector.load %arg17[%c0_28, %c4, %c0_29] : memref<5x5x16xf32, #tpu.memory_space<vmem>>, vector<1x1x16xf32>
    %18 = vector.shape_cast %17 : vector<1x1x16xf32> to vector<1x16xf32>
    %c1_30 = arith.constant 1 : index
    %c0_31 = arith.constant 0 : index
    %c0_32 = arith.constant 0 : index
    %19 = vector.load %arg17[%c1_30, %c0_31, %c0_32] : memref<5x5x16xf32, #tpu.memory_space<vmem>>, vector<1x1x16xf32>
    %20 = vector.shape_cast %19 : vector<1x1x16xf32> to vector<1x16xf32>
    %c1_33 = arith.constant 1 : index
    %c1_34 = arith.constant 1 : index
    %c0_35 = arith.constant 0 : index
    %21 = vector.load %arg17[%c1_33, %c1_34, %c0_35] : memref<5x5x16xf32, #tpu.memory_space<vmem>>, vector<1x1x16xf32>
    %22 = vector.shape_cast %21 : vector<1x1x16xf32> to vector<1x16xf32>
    %c1_36 = arith.constant 1 : index
    %c2_37 = arith.constant 2 : index
    %c0_38 = arith.constant 0 : index
    %23 = vector.load %arg17[%c1_36, %c2_37, %c0_38] : memref<5x5x16xf32, #tpu.memory_space<vmem>>, vector<1x1x16xf32>
    %24 = vector.shape_cast %23 : vector<1x1x16xf32> to vector<1x16xf32>
    %c1_39 = arith.constant 1 : index
    %c3_40 = arith.constant 3 : index
    %c0_41 = arith.constant 0 : index
    %25 = vector.load %arg17[%c1_39, %c3_40, %c0_41] : memref<5x5x16xf32, #tpu.memory_space<vmem>>, vector<1x1x16xf32>
    %26 = vector.shape_cast %25 : vector<1x1x16xf32> to vector<1x16xf32>
    %c1_42 = arith.constant 1 : index
    %c4_43 = arith.constant 4 : index
    %c0_44 = arith.constant 0 : index
    %27 = vector.load %arg17[%c1_42, %c4_43, %c0_44] : memref<5x5x16xf32, #tpu.memory_space<vmem>>, vector<1x1x16xf32>
    %28 = vector.shape_cast %27 : vector<1x1x16xf32> to vector<1x16xf32>
    %c2_45 = arith.constant 2 : index
    %c0_46 = arith.constant 0 : index
    %c0_47 = arith.constant 0 : index
    %29 = vector.load %arg17[%c2_45, %c0_46, %c0_47] : memref<5x5x16xf32, #tpu.memory_space<vmem>>, vector<1x1x16xf32>
    %30 = vector.shape_cast %29 : vector<1x1x16xf32> to vector<1x16xf32>
    %c2_48 = arith.constant 2 : index
    %c1_49 = arith.constant 1 : index
    %c0_50 = arith.constant 0 : index
    %31 = vector.load %arg17[%c2_48, %c1_49, %c0_50] : memref<5x5x16xf32, #tpu.memory_space<vmem>>, vector<1x1x16xf32>
    %32 = vector.shape_cast %31 : vector<1x1x16xf32> to vector<1x16xf32>
    %c2_51 = arith.constant 2 : index
    %c2_52 = arith.constant 2 : index
    %c0_53 = arith.constant 0 : index
    %33 = vector.load %arg17[%c2_51, %c2_52, %c0_53] : memref<5x5x16xf32, #tpu.memory_space<vmem>>, vector<1x1x16xf32>
    %34 = vector.shape_cast %33 : vector<1x1x16xf32> to vector<1x16xf32>
    %c2_54 = arith.constant 2 : index
    %c3_55 = arith.constant 3 : index
    %c0_56 = arith.constant 0 : index
    %35 = vector.load %arg17[%c2_54, %c3_55, %c0_56] : memref<5x5x16xf32, #tpu.memory_space<vmem>>, vector<1x1x16xf32>
    %36 = vector.shape_cast %35 : vector<1x1x16xf32> to vector<1x16xf32>
    %c2_57 = arith.constant 2 : index
    %c4_58 = arith.constant 4 : index
    %c0_59 = arith.constant 0 : index
    %37 = vector.load %arg17[%c2_57, %c4_58, %c0_59] : memref<5x5x16xf32, #tpu.memory_space<vmem>>, vector<1x1x16xf32>
    %38 = vector.shape_cast %37 : vector<1x1x16xf32> to vector<1x16xf32>
    %c3_60 = arith.constant 3 : index
    %c0_61 = arith.constant 0 : index
    %c0_62 = arith.constant 0 : index
    %39 = vector.load %arg17[%c3_60, %c0_61, %c0_62] : memref<5x5x16xf32, #tpu.memory_space<vmem>>, vector<1x1x16xf32>
    %40 = vector.shape_cast %39 : vector<1x1x16xf32> to vector<1x16xf32>
    %c3_63 = arith.constant 3 : index
    %c1_64 = arith.constant 1 : index
    %c0_65 = arith.constant 0 : index
    %41 = vector.load %arg17[%c3_63, %c1_64, %c0_65] : memref<5x5x16xf32, #tpu.memory_space<vmem>>, vector<1x1x16xf32>
    %42 = vector.shape_cast %41 : vector<1x1x16xf32> to vector<1x16xf32>
    %c3_66 = arith.constant 3 : index
    %c2_67 = arith.constant 2 : index
    %c0_68 = arith.constant 0 : index
    %43 = vector.load %arg17[%c3_66, %c2_67, %c0_68] : memref<5x5x16xf32, #tpu.memory_space<vmem>>, vector<1x1x16xf32>
    %44 = vector.shape_cast %43 : vector<1x1x16xf32> to vector<1x16xf32>
    %c3_69 = arith.constant 3 : index
    %c3_70 = arith.constant 3 : index
    %c0_71 = arith.constant 0 : index
    %45 = vector.load %arg17[%c3_69, %c3_70, %c0_71] : memref<5x5x16xf32, #tpu.memory_space<vmem>>, vector<1x1x16xf32>
    %46 = vector.shape_cast %45 : vector<1x1x16xf32> to vector<1x16xf32>
    %c3_72 = arith.constant 3 : index
    %c4_73 = arith.constant 4 : index
    %c0_74 = arith.constant 0 : index
    %47 = vector.load %arg17[%c3_72, %c4_73, %c0_74] : memref<5x5x16xf32, #tpu.memory_space<vmem>>, vector<1x1x16xf32>
    %48 = vector.shape_cast %47 : vector<1x1x16xf32> to vector<1x16xf32>
    %c4_75 = arith.constant 4 : index
    %c0_76 = arith.constant 0 : index
    %c0_77 = arith.constant 0 : index
    %49 = vector.load %arg17[%c4_75, %c0_76, %c0_77] : memref<5x5x16xf32, #tpu.memory_space<vmem>>, vector<1x1x16xf32>
    %50 = vector.shape_cast %49 : vector<1x1x16xf32> to vector<1x16xf32>
    %c4_78 = arith.constant 4 : index
    %c1_79 = arith.constant 1 : index
    %c0_80 = arith.constant 0 : index
    %51 = vector.load %arg17[%c4_78, %c1_79, %c0_80] : memref<5x5x16xf32, #tpu.memory_space<vmem>>, vector<1x1x16xf32>
    %52 = vector.shape_cast %51 : vector<1x1x16xf32> to vector<1x16xf32>
    %c4_81 = arith.constant 4 : index
    %c2_82 = arith.constant 2 : index
    %c0_83 = arith.constant 0 : index
    %53 = vector.load %arg17[%c4_81, %c2_82, %c0_83] : memref<5x5x16xf32, #tpu.memory_space<vmem>>, vector<1x1x16xf32>
    %54 = vector.shape_cast %53 : vector<1x1x16xf32> to vector<1x16xf32>
    %c4_84 = arith.constant 4 : index
    %c3_85 = arith.constant 3 : index
    %c0_86 = arith.constant 0 : index
    %55 = vector.load %arg17[%c4_84, %c3_85, %c0_86] : memref<5x5x16xf32, #tpu.memory_space<vmem>>, vector<1x1x16xf32>
    %56 = vector.shape_cast %55 : vector<1x1x16xf32> to vector<1x16xf32>
    %c4_87 = arith.constant 4 : index
    %c4_88 = arith.constant 4 : index
    %c0_89 = arith.constant 0 : index
    %57 = vector.load %arg17[%c4_87, %c4_88, %c0_89] : memref<5x5x16xf32, #tpu.memory_space<vmem>>, vector<1x1x16xf32>
    %58 = vector.shape_cast %57 : vector<1x1x16xf32> to vector<1x16xf32>
    %59 = tpu.concatenate %10, %12, %14, %16, %18, %20, %22, %24, %26, %28, %30, %32, %34, %36, %38, %40 in 1 : vector<1x16xf32>, vector<1x16xf32>, vector<1x16xf32>, vector<1x16xf32>, vector<1x16xf32>, vector<1x16xf32>, vector<1x16xf32>, vector<1x16xf32>, vector<1x16xf32>, vector<1x16xf32>, vector<1x16xf32>, vector<1x16xf32>, vector<1x16xf32>, vector<1x16xf32>, vector<1x16xf32>, vector<1x16xf32> -> vector<1x256xf32>
    %60 = tpu.concatenate %42, %44, %46, %48, %50, %52, %54, %56, %58 in 1 : vector<1x16xf32>, vector<1x16xf32>, vector<1x16xf32>, vector<1x16xf32>, vector<1x16xf32>, vector<1x16xf32>, vector<1x16xf32>, vector<1x16xf32>, vector<1x16xf32> -> vector<1x144xf32>
    %61 = tpu.concatenate %59, %60 in 1 : vector<1x256xf32>, vector<1x144xf32> -> vector<1x400xf32>
    %c0_90 = arith.constant 0 : index
    %c0_91 = arith.constant 0 : index
    %62 = vector.load %arg6[%c0_90, %c0_91] : memref<400x120xf32, #tpu.memory_space<vmem>>, vector<400x120xf32>
    %cst_92 = arith.constant dense<0.000000e+00> : vector<1x120xf32>
    %63 = tpu.matmul %61, %62, %cst_92 {dimension_numbers = #tpu.dot_dimension_numbers<[1], [0], [0], [1], [0, 0, 1, 1], [], []>} : vector<1x400xf32>, vector<400x120xf32>, vector<1x120xf32> -> vector<1x120xf32>
    %c0_93 = arith.constant 0 : index
    %c0_94 = arith.constant 0 : index
    %64 = vector.load %arg7[%c0_93, %c0_94] : memref<1x120xf32, #tpu.memory_space<vmem>>, vector<1x120xf32>
    %65 = arith.addf %63, %64 : vector<1x120xf32>
    %cst_95 = arith.constant 0.000000e+00 : f32
    %66 = vector.broadcast %cst_95 : f32 to vector<1x120xf32>
    %67 = arith.maximumf %65, %66 : vector<1x120xf32>
    %c0_96 = arith.constant 0 : index
    %c0_97 = arith.constant 0 : index
    %68 = vector.load %arg8[%c0_96, %c0_97] : memref<120x84xf32, #tpu.memory_space<vmem>>, vector<120x84xf32>
    %cst_98 = arith.constant dense<0.000000e+00> : vector<1x84xf32>
    %69 = tpu.matmul %67, %68, %cst_98 {dimension_numbers = #tpu.dot_dimension_numbers<[1], [0], [0], [1], [0, 0, 1, 1], [], []>} : vector<1x120xf32>, vector<120x84xf32>, vector<1x84xf32> -> vector<1x84xf32>
    %c0_99 = arith.constant 0 : index
    %c0_100 = arith.constant 0 : index
    %70 = vector.load %arg9[%c0_99, %c0_100] : memref<1x84xf32, #tpu.memory_space<vmem>>, vector<1x84xf32>
    %71 = arith.addf %69, %70 : vector<1x84xf32>
    %cst_101 = arith.constant 0.000000e+00 : f32
    %72 = vector.broadcast %cst_101 : f32 to vector<1x84xf32>
    %73 = arith.maximumf %71, %72 : vector<1x84xf32>
    %c0_102 = arith.constant 0 : index
    %c0_103 = arith.constant 0 : index
    %74 = vector.load %arg10[%c0_102, %c0_103] : memref<84x10xf32, #tpu.memory_space<vmem>>, vector<84x10xf32>
    %cst_104 = arith.constant dense<0.000000e+00> : vector<1x10xf32>
    %75 = tpu.matmul %73, %74, %cst_104 {dimension_numbers = #tpu.dot_dimension_numbers<[1], [0], [0], [1], [0, 0, 1, 1], [], []>} : vector<1x84xf32>, vector<84x10xf32>, vector<1x10xf32> -> vector<1x10xf32>
    %c0_105 = arith.constant 0 : index
    %c0_106 = arith.constant 0 : index
    %76 = vector.load %arg11[%c0_105, %c0_106] : memref<1x10xf32, #tpu.memory_space<vmem>>, vector<1x10xf32>
    %77 = arith.addf %75, %76 : vector<1x10xf32>
    %c0_107 = arith.constant 0 : index
    %c0_108 = arith.constant 0 : index
    %c0_109 = arith.constant 0 : index
    %78 = vector.load %arg12[%c0_107, %c0_108, %c0_109] : memref<1x1x10xf32, #tpu.memory_space<vmem>>, vector<1x1x10xf32>
    %79 = vector.shape_cast %78 : vector<1x1x10xf32> to vector<1x10xf32>
    %80 = vector.shape_cast %77 : vector<1x10xf32> to vector<1x1x10xf32>
    tpu.vector_store %arg12[%c0_107, %c0_108, %c0_109], %80 {strides = array<i32>} : memref<1x1x10xf32, #tpu.memory_space<vmem>>, vector<1x1x10xf32>,
    return
  }
  func.func @transform_0(%arg0: i32) -> (i32, i32, i32, i32) {
    %c0_i32 = arith.constant 0 : i32
    %c0_i32_0 = arith.constant 0 : i32
    %c0_i32_1 = arith.constant 0 : i32
    %c0_i32_2 = arith.constant 0 : i32
    return %arg0, %c0_i32, %c0_i32_0, %c0_i32_1 : i32, i32, i32, i32
  }
  func.func @transform_1(%arg0: i32) -> (i32, i32) {
    %c0_i32 = arith.constant 0 : i32
    %c0_i32_0 = arith.constant 0 : i32
    %c0_i32_1 = arith.constant 0 : i32
    return %c0_i32, %c0_i32_0 : i32, i32
  }
  func.func @transform_2(%arg0: i32) -> (i32, i32) {
    %c0_i32 = arith.constant 0 : i32
    %c0_i32_0 = arith.constant 0 : i32
    %c0_i32_1 = arith.constant 0 : i32
    return %c0_i32, %c0_i32_0 : i32, i32
  }
  func.func @transform_3(%arg0: i32) -> (i32, i32, i32, i32) {
    %c0_i32 = arith.constant 0 : i32
    %c0_i32_0 = arith.constant 0 : i32
    %c0_i32_1 = arith.constant 0 : i32
    %c0_i32_2 = arith.constant 0 : i32
    %c0_i32_3 = arith.constant 0 : i32
    return %c0_i32, %c0_i32_0, %c0_i32_1, %c0_i32_2 : i32, i32, i32, i32
  }
  func.func @transform_4(%arg0: i32) -> (i32, i32) {
    %c0_i32 = arith.constant 0 : i32
    %c0_i32_0 = arith.constant 0 : i32
    %c0_i32_1 = arith.constant 0 : i32
    return %c0_i32, %c0_i32_0 : i32, i32
  }
  func.func @transform_5(%arg0: i32) -> (i32, i32) {
    %c0_i32 = arith.constant 0 : i32
    %c0_i32_0 = arith.constant 0 : i32
    %c0_i32_1 = arith.constant 0 : i32
    return %c0_i32, %c0_i32_0 : i32, i32
  }
  func.func @transform_6(%arg0: i32) -> (i32, i32) {
    %c0_i32 = arith.constant 0 : i32
    %c0_i32_0 = arith.constant 0 : i32
    %c0_i32_1 = arith.constant 0 : i32
    return %c0_i32, %c0_i32_0 : i32, i32
  }
  func.func @transform_7(%arg0: i32) -> (i32, i32) {
    %c0_i32 = arith.constant 0 : i32
    %c0_i32_0 = arith.constant 0 : i32
    %c0_i32_1 = arith.constant 0 : i32
    return %c0_i32, %c0_i32_0 : i32, i32
  }
  func.func @transform_8(%arg0: i32) -> (i32, i32) {
    %c0_i32 = arith.constant 0 : i32
    %c0_i32_0 = arith.constant 0 : i32
    %c0_i32_1 = arith.constant 0 : i32
    return %c0_i32, %c0_i32_0 : i32, i32
  }
  func.func @transform_9(%arg0: i32) -> (i32, i32) {
    %c0_i32 = arith.constant 0 : i32
    %c0_i32_0 = arith.constant 0 : i32
    %c0_i32_1 = arith.constant 0 : i32
    return %c0_i32, %c0_i32_0 : i32, i32
  }
  func.func @transform_10(%arg0: i32) -> (i32, i32) {
    %c0_i32 = arith.constant 0 : i32
    %c0_i32_0 = arith.constant 0 : i32
    %c0_i32_1 = arith.constant 0 : i32
    return %c0_i32, %c0_i32_0 : i32, i32
  }
  func.func @transform_11(%arg0: i32) -> (i32, i32, i32) {
    %c0_i32 = arith.constant 0 : i32
    %c0_i32_0 = arith.constant 0 : i32
    %c0_i32_1 = arith.constant 0 : i32
    return %arg0, %c0_i32, %c0_i32_0 : i32, i32, i32
  }
}

</mosaic_0001>

<llo_original>
// kernel: lenet_forward.1
$region0: #{lenet_forward.1}
  #allocation0 [shape = 'u32[]', space=smem, size = 0x4, offset = 0x4, fixed_abs, tag = 'smem constant byte address 0x4 - core index']
  #allocation1 [shape = 'u32[144,128]{1,0:T(1,128)}', space=vmem, size = 0x12000, scoped, tag = 'internal scratch']
  #allocation2 [shape = 'f32[32,32,1]{2,1,0:T(8,128)}', space=vmem, size = 0x80000, scoped, tag = 'scratch operand']
  #allocation3 [shape = 'f32[28,28,6]{2,1,0:T(8,128)}', space=vmem, size = 0x70000, scoped, tag = 'scratch operand']
  #allocation4 [shape = 'f32[14,14,6]{2,1,0:T(8,128)}', space=vmem, size = 0x1c000, scoped, tag = 'scratch operand']
  #allocation5 [shape = 'f32[10,10,16]{2,1,0:T(8,128)}', space=vmem, size = 0x14000, scoped, tag = 'scratch operand']
  #allocation6 [shape = 'f32[5,5,16]{2,1,0:T(8,128)}', space=vmem, size = 0x5000, scoped, tag = 'scratch operand']
  %s0 = inlined_call_operand.vmem [shape: f32[2,28,28,1], index: 0, kind: input, shape index: {}]
  %s1 = inlined_call_operand.vmem [shape: f32[25,6], index: 1, kind: input, shape index: {}]
  %s2 = inlined_call_operand.vmem [shape: f32[1,6], index: 2, kind: input, shape index: {}]
  %s3 = inlined_call_operand.vmem [shape: f32[5,5,6,16], index: 3, kind: input, shape index: {}]
  %s4 = inlined_call_operand.vmem [shape: f32[1,16], index: 4, kind: input, shape index: {}]
  %s5 = inlined_call_operand.vmem [shape: f32[400,120], index: 5, kind: input, shape index: {}]
  %s6 = inlined_call_operand.vmem [shape: f32[1,120], index: 6, kind: input, shape index: {}]
  %s7 = inlined_call_operand.vmem [shape: f32[120,84], index: 7, kind: input, shape index: {}]
  %s8 = inlined_call_operand.vmem [shape: f32[1,84], index: 8, kind: input, shape index: {}]
  %s9 = inlined_call_operand.vmem [shape: f32[84,10], index: 9, kind: input, shape index: {}]
  %s10 = inlined_call_operand.vmem [shape: f32[1,10], index: 10, kind: input, shape index: {}]
  %s11 = inlined_call_operand.hbm [shape: f32[2,1,10], index: 11, kind: output, shape index: {}]
  %s12 = sld [smem:[#allocation0]]
  $region105: #{lenet_forward.1} parent=0
    _
  %s14 = ssub.s32 1, %s12
  %s15 = scalar_select 0, %s14, %s12
  $region1: #{lenet_forward.1} parent=0
    #allocation7 [shape = 'u8[1024]{0}', space=vmem, size = 0x400, scoped, tag = 'output window, operand 0']
    #allocation8 [shape = 's32[2]{0}', space=sflag, size = 0x8, scoped, tag = 'scoped memory for lenet_forward.1']
    %16 = vsyncpa [#allocation8], 0
    %s17 = scalar_lea.sflag [#allocation8], 1
    %18 = vsyncpa %s17, 0
    loop: start=0, step=1, limit=4
    $region2: #{lenet_forward.1} parent=1 // loop_pre_header
      _
    $region3: #{lenet_forward.1} parent=1 // loop_header
      %s20 = sphi 0, %s24
      %p21 = scmp.ge.s32.totalorder %s20, 4
      %s30 = sphi 0, %s32
      %s33 = sphi 0, %s30
      %s34 = sphi 0, %s33
      %s50 = sphi 0, %s34
      %s54 = sphi 0, %s54
      %s56 = sphi 0, %s54
      %s57 = sphi 0, %s56
      %s71 = sphi 0, %s57
      %s75 = sphi 0, %s75
      %s77 = sphi 0, %s75
      %s78 = sphi 0, %s77
      %s92 = sphi 0, %s78
      %s96 = sphi 0, %s96
      %s98 = sphi 0, %s96
      %s99 = sphi 0, %s98
      %s113 = sphi 0, %s99
      %s117 = sphi 0, %s117
      %s119 = sphi 0, %s117
      %s120 = sphi 0, %s119
      %s134 = sphi 0, %s120
      %s138 = sphi 0, %s138
      %s140 = sphi 0, %s138
      %s141 = sphi 0, %s140
      %s155 = sphi 0, %s141
      %s159 = sphi 0, %s159
      %s161 = sphi 0, %s159
      %s162 = sphi 0, %s161
      %s176 = sphi 0, %s162
      %s180 = sphi 0, %s180
      %s182 = sphi 0, %s180
      %s183 = sphi 0, %s182
      %s197 = sphi 0, %s183
      %s201 = sphi 0, %s201
      %s203 = sphi 0, %s201
      %s204 = sphi 0, %s203
      %s218 = sphi 0, %s204
      %s222 = sphi 0, %s222
      %s224 = sphi 0, %s222
      %s225 = sphi 0, %s224
      %s239 = sphi 0, %s225
      %s243 = sphi 0, %s243
      %s245 = sphi 0, %s243
      %s246 = sphi 0, %s245
      %s260 = sphi 0, %s246
      %s266 = sphi 0, %s268
      %s269 = sphi 0, %s266
      %s270 = sphi 0, %s269
      %s286 = sphi 0, %s270
    $region4: #{lenet_forward.1} parent=1 // loop_header_branch
      %23 = sbr.rel (%p21) target = $region8
    $region5: #{lenet_forward.1} parent=1 // loop_body
      %s25 = ssub.s32 %s20, 1
      %s26 = ssub.s32 %s20, 2
      %s27 = sadd.s32 %s20, 1
      %s28 = ssub.s32 %s20, %s27
      %p29 = scmp.eq.s32.totalorder %s28, 0
      %s31 = sadd.s32 %s30, 1
      %s32 = scalar_select %p29, %s30, %s31
      %p35 = pneg %p29
      %p36 = scmp.eq.s32.totalorder %s20, 1
      %p37 = por %p35, %p36
      %p38 = scmp.ne.s32.totalorder %s30, %s33
      %p39 = scmp.eq.s32.totalorder %s20, 0
      %p40 = por %p38, %p39
      %p41 = scmp.ne.s32.totalorder %s30, %s33
      %p42 = scmp.eq.s32.totalorder %s25, 1
      %p43 = por %p41, %p42
      %p44 = scmp.ne.s32.totalorder %s33, %s34
      %p45 = scmp.eq.s32.totalorder %s25, 0
      %p46 = por %p44, %p45
      %p47 = scmp.ne.s32.totalorder %s33, %s34
      %p48 = scmp.eq.s32.totalorder %s26, 1
      %p49 = por %p47, %p48
      %p51 = scmp.ne.s32.totalorder %s34, %s50
      %p52 = scmp.eq.s32.totalorder %s26, 0
      %p53 = por %p51, %p52
      %s55 = sadd.s32 %s54, 1
      %p58 = scmp.eq.s32.totalorder %s20, 1
      %p59 = scmp.ne.s32.totalorder %s54, %s56
      %p60 = scmp.eq.s32.totalorder %s20, 0
      %p61 = por %p59, %p60
      %p62 = scmp.ne.s32.totalorder %s54, %s56
      %p63 = scmp.eq.s32.totalorder %s25, 1
      %p64 = por %p62, %p63
      %p65 = scmp.ne.s32.totalorder %s56, %s57
      %p66 = scmp.eq.s32.totalorder %s25, 0
      %p67 = por %p65, %p66
      %p68 = scmp.ne.s32.totalorder %s56, %s57
      %p69 = scmp.eq.s32.totalorder %s26, 1
      %p70 = por %p68, %p69
      %p72 = scmp.ne.s32.totalorder %s57, %s71
      %p73 = scmp.eq.s32.totalorder %s26, 0
      %p74 = por %p72, %p73
      %s76 = sadd.s32 %s75, 1
      %p79 = scmp.eq.s32.totalorder %s20, 1
      %p80 = scmp.ne.s32.totalorder %s75, %s77
      %p81 = scmp.eq.s32.totalorder %s20, 0
      %p82 = por %p80, %p81
      %p83 = scmp.ne.s32.totalorder %s75, %s77
      %p84 = scmp.eq.s32.totalorder %s25, 1
      %p85 = por %p83, %p84
      %p86 = scmp.ne.s32.totalorder %s77, %s78
      %p87 = scmp.eq.s32.totalorder %s25, 0
      %p88 = por %p86, %p87
      %p89 = scmp.ne.s32.totalorder %s77, %s78
      %p90 = scmp.eq.s32.totalorder %s26, 1
      %p91 = por %p89, %p90
      %p93 = scmp.ne.s32.totalorder %s78, %s92
      %p94 = scmp.eq.s32.totalorder %s26, 0
      %p95 = por %p93, %p94
      %s97 = sadd.s32 %s96, 1
      %p100 = scmp.eq.s32.totalorder %s20, 1
      %p101 = scmp.ne.s32.totalorder %s96, %s98
      %p102 = scmp.eq.s32.totalorder %s20, 0
      %p103 = por %p101, %p102
      %p104 = scmp.ne.s32.totalorder %s96, %s98
      %p105 = scmp.eq.s32.totalorder %s25, 1
      %p106 = por %p104, %p105
      %p107 = scmp.ne.s32.totalorder %s98, %s99
      %p108 = scmp.eq.s32.totalorder %s25, 0
      %p109 = por %p107, %p108
      %p110 = scmp.ne.s32.totalorder %s98, %s99
      %p111 = scmp.eq.s32.totalorder %s26, 1
      %p112 = por %p110, %p111
      %p114 = scmp.ne.s32.totalorder %s99, %s113
      %p115 = scmp.eq.s32.totalorder %s26, 0
      %p116 = por %p114, %p115
      %s118 = sadd.s32 %s117, 1
      %p121 = scmp.eq.s32.totalorder %s20, 1
      %p122 = scmp.ne.s32.totalorder %s117, %s119
      %p123 = scmp.eq.s32.totalorder %s20, 0
      %p124 = por %p122, %p123
      %p125 = scmp.ne.s32.totalorder %s117, %s119
      %p126 = scmp.eq.s32.totalorder %s25, 1
      %p127 = por %p125, %p126
      %p128 = scmp.ne.s32.totalorder %s119, %s120
      %p129 = scmp.eq.s32.totalorder %s25, 0
      %p130 = por %p128, %p129
      %p131 = scmp.ne.s32.totalorder %s119, %s120
      %p132 = scmp.eq.s32.totalorder %s26, 1
      %p133 = por %p131, %p132
      %p135 = scmp.ne.s32.totalorder %s120, %s134
      %p136 = scmp.eq.s32.totalorder %s26, 0
      %p137 = por %p135, %p136
      %s139 = sadd.s32 %s138, 1
      %p142 = scmp.eq.s32.totalorder %s20, 1
      %p143 = scmp.ne.s32.totalorder %s138, %s140
      %p144 = scmp.eq.s32.totalorder %s20, 0
      %p145 = por %p143, %p144
      %p146 = scmp.ne.s32.totalorder %s138, %s140
      %p147 = scmp.eq.s32.totalorder %s25, 1
      %p148 = por %p146, %p147
      %p149 = scmp.ne.s32.totalorder %s140, %s141
      %p150 = scmp.eq.s32.totalorder %s25, 0
      %p151 = por %p149, %p150
      %p152 = scmp.ne.s32.totalorder %s140, %s141
      %p153 = scmp.eq.s32.totalorder %s26, 1
      %p154 = por %p152, %p153
      %p156 = scmp.ne.s32.totalorder %s141, %s155
      %p157 = scmp.eq.s32.totalorder %s26, 0
      %p158 = por %p156, %p157
      %s160 = sadd.s32 %s159, 1
      %p163 = scmp.eq.s32.totalorder %s20, 1
      %p164 = scmp.ne.s32.totalorder %s159, %s161
      %p165 = scmp.eq.s32.totalorder %s20, 0
      %p166 = por %p164, %p165
      %p167 = scmp.ne.s32.totalorder %s159, %s161
      %p168 = scmp.eq.s32.totalorder %s25, 1
      %p169 = por %p167, %p168
      %p170 = scmp.ne.s32.totalorder %s161, %s162
      %p171 = scmp.eq.s32.totalorder %s25, 0
      %p172 = por %p170, %p171
      %p173 = scmp.ne.s32.totalorder %s161, %s162
      %p174 = scmp.eq.s32.totalorder %s26, 1
      %p175 = por %p173, %p174
      %p177 = scmp.ne.s32.totalorder %s162, %s176
      %p178 = scmp.eq.s32.totalorder %s26, 0
      %p179 = por %p177, %p178
      %s181 = sadd.s32 %s180, 1
      %p184 = scmp.eq.s32.totalorder %s20, 1
      %p185 = scmp.ne.s32.totalorder %s180, %s182
      %p186 = scmp.eq.s32.totalorder %s20, 0
      %p187 = por %p185, %p186
      %p188 = scmp.ne.s32.totalorder %s180, %s182
      %p189 = scmp.eq.s32.totalorder %s25, 1
      %p190 = por %p188, %p189
      %p191 = scmp.ne.s32.totalorder %s182, %s183
      %p192 = scmp.eq.s32.totalorder %s25, 0
      %p193 = por %p191, %p192
      %p194 = scmp.ne.s32.totalorder %s182, %s183
      %p195 = scmp.eq.s32.totalorder %s26, 1
      %p196 = por %p194, %p195
      %p198 = scmp.ne.s32.totalorder %s183, %s197
      %p199 = scmp.eq.s32.totalorder %s26, 0
      %p200 = por %p198, %p199
      %s202 = sadd.s32 %s201, 1
      %p205 = scmp.eq.s32.totalorder %s20, 1
      %p206 = scmp.ne.s32.totalorder %s201, %s203
      %p207 = scmp.eq.s32.totalorder %s20, 0
      %p208 = por %p206, %p207
      %p209 = scmp.ne.s32.totalorder %s201, %s203
      %p210 = scmp.eq.s32.totalorder %s25, 1
      %p211 = por %p209, %p210
      %p212 = scmp.ne.s32.totalorder %s203, %s204
      %p213 = scmp.eq.s32.totalorder %s25, 0
      %p214 = por %p212, %p213
      %p215 = scmp.ne.s32.totalorder %s203, %s204
      %p216 = scmp.eq.s32.totalorder %s26, 1
      %p217 = por %p215, %p216
      %p219 = scmp.ne.s32.totalorder %s204, %s218
      %p220 = scmp.eq.s32.totalorder %s26, 0
      %p221 = por %p219, %p220
      %s223 = sadd.s32 %s222, 1
      %p226 = scmp.eq.s32.totalorder %s20, 1
      %p227 = scmp.ne.s32.totalorder %s222, %s224
      %p228 = scmp.eq.s32.totalorder %s20, 0
      %p229 = por %p227, %p228
      %p230 = scmp.ne.s32.totalorder %s222, %s224
      %p231 = scmp.eq.s32.totalorder %s25, 1
      %p232 = por %p230, %p231
      %p233 = scmp.ne.s32.totalorder %s224, %s225
      %p234 = scmp.eq.s32.totalorder %s25, 0
      %p235 = por %p233, %p234
      %p236 = scmp.ne.s32.totalorder %s224, %s225
      %p237 = scmp.eq.s32.totalorder %s26, 1
      %p238 = por %p236, %p237
      %p240 = scmp.ne.s32.totalorder %s225, %s239
      %p241 = scmp.eq.s32.totalorder %s26, 0
      %p242 = por %p240, %p241
      %s244 = sadd.s32 %s243, 1
      %p247 = scmp.eq.s32.totalorder %s20, 1
      %p248 = scmp.ne.s32.totalorder %s243, %s245
      %p249 = scmp.eq.s32.totalorder %s20, 0
      %p250 = por %p248, %p249
      %p251 = scmp.ne.s32.totalorder %s243, %s245
      %p252 = scmp.eq.s32.totalorder %s25, 1
      %p253 = por %p251, %p252
      %p254 = scmp.ne.s32.totalorder %s245, %s246
      %p255 = scmp.eq.s32.totalorder %s25, 0
      %p256 = por %p254, %p255
      %p257 = scmp.ne.s32.totalorder %s245, %s246
      %p258 = scmp.eq.s32.totalorder %s26, 1
      %p259 = por %p257, %p258
      %p261 = scmp.ne.s32.totalorder %s246, %s260
      %p262 = scmp.eq.s32.totalorder %s26, 0
      %p263 = por %p261, %p262
      %s264 = ssub.s32 %s20, %s27
      %p265 = scmp.eq.s32.totalorder %s264, 0
      %s267 = sadd.s32 %s266, 1
      %s268 = scalar_select %p265, %s266, %s267
      %p271 = pneg %p265
      %p272 = scmp.eq.s32.totalorder %s20, 1
      %p273 = por %p271, %p272
      %p274 = scmp.ne.s32.totalorder %s266, %s269
      %p275 = scmp.eq.s32.totalorder %s20, 0
      %p276 = por %p274, %p275
      %p277 = scmp.ne.s32.totalorder %s266, %s269
      %p278 = scmp.eq.s32.totalorder %s25, 1
      %p279 = por %p277, %p278
      %p280 = scmp.ne.s32.totalorder %s269, %s270
      %p281 = scmp.eq.s32.totalorder %s25, 0
      %p282 = por %p280, %p281
      %p283 = scmp.ne.s32.totalorder %s269, %s270
      %p284 = scmp.eq.s32.totalorder %s26, 1
      %p285 = por %p283, %p284
      %p287 = scmp.ne.s32.totalorder %s270, %s286
      %p288 = scmp.eq.s32.totalorder %s26, 0
      %p289 = por %p287, %p288
      %p290 = scmp.le.s32.totalorder 1, %s20
      %p291 = scmp.lt.s32.totalorder %s20, 3
      %p292 = pnand %p290, %p291
      %p293 = pneg %p292
      // Predicated region
      $region9: #{lenet_forward.1} parent=5 // pred_check
        _
      $region10: #{lenet_forward.1} parent=5 // pred_check_branch
        %295 = sbr.rel (%p292) target = $region12
      $region11: #{lenet_forward.1} parent=5 // pred_region
        %s296 = ssub.s32 %s20, 1
        // Predicated region
        $region13: #{lenet_forward.1} parent=11 // pred_check
          %p297 = pneg %p67
        $region14: #{lenet_forward.1} parent=11 // pred_check_branch
          %299 = sbr.rel (%p297) target = $region16
        $region15: #{lenet_forward.1} parent=11 // pred_region
          _
        $region16: #{lenet_forward.1} parent=11 // pred_fallthru
          _
        // Predicated region
        $region17: #{lenet_forward.1} parent=11 // pred_check
          %p300 = pneg %p88
        $region18: #{lenet_forward.1} parent=11 // pred_check_branch
          %302 = sbr.rel (%p300) target = $region20
        $region19: #{lenet_forward.1} parent=11 // pred_region
          _
        $region20: #{lenet_forward.1} parent=11 // pred_fallthru
          _
        // Predicated region
        $region21: #{lenet_forward.1} parent=11 // pred_check
          %p303 = pneg %p109
        $region22: #{lenet_forward.1} parent=11 // pred_check_branch
          %305 = sbr.rel (%p303) target = $region24
        $region23: #{lenet_forward.1} parent=11 // pred_region
          _
        $region24: #{lenet_forward.1} parent=11 // pred_fallthru
          _
        // Predicated region
        $region25: #{lenet_forward.1} parent=11 // pred_check
          %p306 = pneg %p130
        $region26: #{lenet_forward.1} parent=11 // pred_check_branch
          %308 = sbr.rel (%p306) target = $region28
        $region27: #{lenet_forward.1} parent=11 // pred_region
          _
        $region28: #{lenet_forward.1} parent=11 // pred_fallthru
          _
        // Predicated region
        $region29: #{lenet_forward.1} parent=11 // pred_check
          %p309 = pneg %p151
        $region30: #{lenet_forward.1} parent=11 // pred_check_branch
          %311 = sbr.rel (%p309) target = $region32
        $region31: #{lenet_forward.1} parent=11 // pred_region
          _
        $region32: #{lenet_forward.1} parent=11 // pred_fallthru
          _
        // Predicated region
        $region33: #{lenet_forward.1} parent=11 // pred_check
          %p312 = pneg %p172
        $region34: #{lenet_forward.1} parent=11 // pred_check_branch
          %314 = sbr.rel (%p312) target = $region36
        $region35: #{lenet_forward.1} parent=11 // pred_region
          _
        $region36: #{lenet_forward.1} parent=11 // pred_fallthru
          _
        // Predicated region
        $region37: #{lenet_forward.1} parent=11 // pred_check
          %p315 = pneg %p193
        $region38: #{lenet_forward.1} parent=11 // pred_check_branch
          %317 = sbr.rel (%p315) target = $region40
        $region39: #{lenet_forward.1} parent=11 // pred_region
          _
        $region40: #{lenet_forward.1} parent=11 // pred_fallthru
          _
        // Predicated region
        $region41: #{lenet_forward.1} parent=11 // pred_check
          %p318 = pneg %p214
        $region42: #{lenet_forward.1} parent=11 // pred_check_branch
          %320 = sbr.rel (%p318) target = $region44
        $region43: #{lenet_forward.1} parent=11 // pred_region
          _
        $region44: #{lenet_forward.1} parent=11 // pred_fallthru
          _
        // Predicated region
        $region45: #{lenet_forward.1} parent=11 // pred_check
          %p321 = pneg %p235
        $region46: #{lenet_forward.1} parent=11 // pred_check_branch
          %323 = sbr.rel (%p321) target = $region48
        $region47: #{lenet_forward.1} parent=11 // pred_region
          _
        $region48: #{lenet_forward.1} parent=11 // pred_fallthru
          _
        // Predicated region
        $region49: #{lenet_forward.1} parent=11 // pred_check
          %p324 = pneg %p256
        $region50: #{lenet_forward.1} parent=11 // pred_check_branch
          %326 = sbr.rel (%p324) target = $region52
        $region51: #{lenet_forward.1} parent=11 // pred_region
          _
        $region52: #{lenet_forward.1} parent=11 // pred_fallthru
          _
      $region12: #{lenet_forward.1} parent=5 // pred_fallthru
        _
      %p327 = scmp.lt.s32.totalorder %s20, 2
      // Predicated region
      $region53: #{lenet_forward.1} parent=5 // pred_check
        %p328 = pneg %p327
      $region54: #{lenet_forward.1} parent=5 // pred_check_branch
        %330 = sbr.rel (%p328) target = $region56
      $region55: #{lenet_forward.1} parent=5 // pred_region
        // Predicated region
        $region57: #{lenet_forward.1} parent=55 // pred_check
          %p331 = pneg %p40
        $region58: #{lenet_forward.1} parent=55 // pred_check_branch
          %333 = sbr.rel (%p331) target = $region60
        $region59: #{lenet_forward.1} parent=55 // pred_region
          %p334 = scmp.lt.s32.totalorder %s20, 1
          %s335 = scalar_select %p334, %s20, 1
          %s336 = smul.addr %s335, 112
          %s337 = smul.addr %s336, 8
          %s338 = scalar_lea.vmem %s0, %s337
        $region60: #{lenet_forward.1} parent=55 // pred_fallthru
          _
      $region56: #{lenet_forward.1} parent=5 // pred_fallthru
        _
      %p339 = scmp.le.s32.totalorder 1, %s20
      %p340 = scmp.lt.s32.totalorder %s20, 3
      %p341 = pnand %p339, %p340
      %p342 = pneg %p341
      // Predicated region
      $region61: #{lenet_forward.1} parent=5 // pred_check
        _
      $region62: #{lenet_forward.1} parent=5 // pred_check_branch
        %344 = sbr.rel (%p341) target = $region64
      $region63: #{lenet_forward.1} parent=5 // pred_region
        %s345 = ssub.s32 %s20, 1
        %p346 = scmp.lt.s32.totalorder %s25, 1
        %s347 = scalar_select %p346, %s25, 1
        %s348 = smul.addr %s347, 112
        %s349 = smul.addr %s348, 8
        %s350 = scalar_lea.vmem %s0, %s349
        %p351 = pneg %p46
        %p352 = pneg %p43
        %p353 = pneg %p67
        %p354 = pneg %p64
        %p355 = pneg %p88
        %p356 = pneg %p85
        %p357 = pneg %p109
        %p358 = pneg %p106
        %p359 = pneg %p130
        %p360 = pneg %p127
        %p361 = pneg %p151
        %p362 = pneg %p148
        %p363 = pneg %p172
        %p364 = pneg %p169
        %p365 = pneg %p193
        %p366 = pneg %p190
        %p367 = pneg %p214
        %p368 = pneg %p211
        %p369 = pneg %p235
        %p370 = pneg %p232
        %p371 = pneg %p256
        %p372 = pneg %p253
        %p373 = pneg %p282
        %p374 = pneg %p279
        %s375 = sand.u32 %s269, 1
        %s376 = scalar_lea.sflag [#allocation8], %s375
        %s377 = sand.u32 %s269, 1
        %s378 = scalar_lea.vmem [#allocation7], %s377
        %p379 = scmp.lt.s32.totalorder %s25, 1
        %s380 = scalar_select %p379, %s25, 1
        %s381 = smul.addr %s380, 112
        %s382 = smul.addr %s381, 8
        %s383 = scalar_lea.vmem %s0, %s382
        %vm384 = vcmask 7168
        %385 = vst.msk [vmem:[#allocation2] sm:$0xff] %vm384, 0.0
        %386 = vst.msk [vmem:[#allocation2 + $0x8] sm:$0xff] %vm384, 0.0
        %387 = vst.msk [vmem:[#allocation2 + $0x10] sm:$0xff] %vm384, 0.0
        %388 = vst.msk [vmem:[#allocation2 + $0x18] sm:$0xff] %vm384, 0.0
        %389 = vst.msk [vmem:[#allocation2 + $0x20] sm:$0xff] %vm384, 0.0
        %390 = vst.msk [vmem:[#allocation2 + $0x28] sm:$0xff] %vm384, 0.0
        %391 = vst.msk [vmem:[#allocation2 + $0x30] sm:$0xff] %vm384, 0.0
        %392 = vst.msk [vmem:[#allocation2 + $0x38] sm:$0xff] %vm384, 0.0
        %393 = vst.msk [vmem:[#allocation2 + $0x40] sm:$0xff] %vm384, 0.0
        %394 = vst.msk [vmem:[#allocation2 + $0x48] sm:$0xff] %vm384, 0.0
        %395 = vst.msk [vmem:[#allocation2 + $0x50] sm:$0xff] %vm384, 0.0
        %396 = vst.msk [vmem:[#allocation2 + $0x58] sm:$0xff] %vm384, 0.0
        %397 = vst.msk [vmem:[#allocation2 + $0x60] sm:$0xff] %vm384, 0.0
        %398 = vst.msk [vmem:[#allocation2 + $0x68] sm:$0xff] %vm384, 0.0
        %399 = vst.msk [vmem:[#allocation2 + $0x70] sm:$0xff] %vm384, 0.0
        %400 = vst.msk [vmem:[#allocation2 + $0x78] sm:$0xff] %vm384, 0.0
        %401 = vst.msk [vmem:[#allocation2 + $0x80] sm:$0xff] %vm384, 0.0
        %402 = vst.msk [vmem:[#allocation2 + $0x88] sm:$0xff] %vm384, 0.0
        %403 = vst.msk [vmem:[#allocation2 + $0x90] sm:$0xff] %vm384, 0.0
        %404 = vst.msk [vmem:[#allocation2 + $0x98] sm:$0xff] %vm384, 0.0
        %405 = vst.msk [vmem:[#allocation2 + $0xa0] sm:$0xff] %vm384, 0.0
        %406 = vst.msk [vmem:[#allocation2 + $0xa8] sm:$0xff] %vm384, 0.0
        %407 = vst.msk [vmem:[#allocation2 + $0xb0] sm:$0xff] %vm384, 0.0
        %408 = vst.msk [vmem:[#allocation2 + $0xb8] sm:$0xff] %vm384, 0.0
        %409 = vst.msk [vmem:[#allocation2 + $0xc0] sm:$0xff] %vm384, 0.0
        %410 = vst.msk [vmem:[#allocation2 + $0xc8] sm:$0xff] %vm384, 0.0
        %411 = vst.msk [vmem:[#allocation2 + $0xd0] sm:$0xff] %vm384, 0.0
        %412 = vst.msk [vmem:[#allocation2 + $0xd8] sm:$0xff] %vm384, 0.0
        %413 = vst.msk [vmem:[#allocation2 + $0xe0] sm:$0xff] %vm384, 0.0
        %414 = vst.msk [vmem:[#allocation2 + $0xe8] sm:$0xff] %vm384, 0.0
        %415 = vst.msk [vmem:[#allocation2 + $0xf0] sm:$0xff] %vm384, 0.0
        %416 = vst.msk [vmem:[#allocation2 + $0xf8] sm:$0xff] %vm384, 0.0
        %417 = vst.msk [vmem:[#allocation2 + $0x100] sm:$0xff] %vm384, 0.0
        %418 = vst.msk [vmem:[#allocation2 + $0x108] sm:$0xff] %vm384, 0.0
        %419 = vst.msk [vmem:[#allocation2 + $0x110] sm:$0xff] %vm384, 0.0
        %420 = vst.msk [vmem:[#allocation2 + $0x118] sm:$0xff] %vm384, 0.0
        %421 = vst.msk [vmem:[#allocation2 + $0x120] sm:$0xff] %vm384, 0.0
        %422 = vst.msk [vmem:[#allocation2 + $0x128] sm:$0xff] %vm384, 0.0
        %423 = vst.msk [vmem:[#allocation2 + $0x130] sm:$0xff] %vm384, 0.0
        %424 = vst.msk [vmem:[#allocation2 + $0x138] sm:$0xff] %vm384, 0.0
        %425 = vst.msk [vmem:[#allocation2 + $0x140] sm:$0xff] %vm384, 0.0
        %426 = vst.msk [vmem:[#allocation2 + $0x148] sm:$0xff] %vm384, 0.0
        %427 = vst.msk [vmem:[#allocation2 + $0x150] sm:$0xff] %vm384, 0.0
        %428 = vst.msk [vmem:[#allocation2 + $0x158] sm:$0xff] %vm384, 0.0
        %429 = vst.msk [vmem:[#allocation2 + $0x160] sm:$0xff] %vm384, 0.0
        %430 = vst.msk [vmem:[#allocation2 + $0x168] sm:$0xff] %vm384, 0.0
        %431 = vst.msk [vmem:[#allocation2 + $0x170] sm:$0xff] %vm384, 0.0
        %432 = vst.msk [vmem:[#allocation2 + $0x178] sm:$0xff] %vm384, 0.0
        %433 = vst.msk [vmem:[#allocation2 + $0x180] sm:$0xff] %vm384, 0.0
        %434 = vst.msk [vmem:[#allocation2 + $0x188] sm:$0xff] %vm384, 0.0
        %435 = vst.msk [vmem:[#allocation2 + $0x190] sm:$0xff] %vm384, 0.0
        %436 = vst.msk [vmem:[#allocation2 + $0x198] sm:$0xff] %vm384, 0.0
        %437 = vst.msk [vmem:[#allocation2 + $0x1a0] sm:$0xff] %vm384, 0.0
        %438 = vst.msk [vmem:[#allocation2 + $0x1a8] sm:$0xff] %vm384, 0.0
        %439 = vst.msk [vmem:[#allocation2 + $0x1b0] sm:$0xff] %vm384, 0.0
        %440 = vst.msk [vmem:[#allocation2 + $0x1b8] sm:$0xff] %vm384, 0.0
        %441 = vst.msk [vmem:[#allocation2 + $0x1c0] sm:$0xff] %vm384, 0.0
        %442 = vst.msk [vmem:[#allocation2 + $0x1c8] sm:$0xff] %vm384, 0.0
        %443 = vst.msk [vmem:[#allocation2 + $0x1d0] sm:$0xff] %vm384, 0.0
        %444 = vst.msk [vmem:[#allocation2 + $0x1d8] sm:$0xff] %vm384, 0.0
        %445 = vst.msk [vmem:[#allocation2 + $0x1e0] sm:$0xff] %vm384, 0.0
        %446 = vst.msk [vmem:[#allocation2 + $0x1e8] sm:$0xff] %vm384, 0.0
        %447 = vst.msk [vmem:[#allocation2 + $0x1f0] sm:$0xff] %vm384, 0.0
        %448 = vst.msk [vmem:[#allocation2 + $0x1f8] sm:$0xff] %vm384, 0.0
        %449 = vst.msk [vmem:[#allocation2 + $0x200] sm:$0xff] %vm384, 0.0
        %450 = vst.msk [vmem:[#allocation2 + $0x208] sm:$0xff] %vm384, 0.0
        %451 = vst.msk [vmem:[#allocation2 + $0x210] sm:$0xff] %vm384, 0.0
        %452 = vst.msk [vmem:[#allocation2 + $0x218] sm:$0xff] %vm384, 0.0
        %453 = vst.msk [vmem:[#allocation2 + $0x220] sm:$0xff] %vm384, 0.0
        %454 = vst.msk [vmem:[#allocation2 + $0x228] sm:$0xff] %vm384, 0.0
        %455 = vst.msk [vmem:[#allocation2 + $0x230] sm:$0xff] %vm384, 0.0
        %456 = vst.msk [vmem:[#allocation2 + $0x238] sm:$0xff] %vm384, 0.0
        %457 = vst.msk [vmem:[#allocation2 + $0x240] sm:$0xff] %vm384, 0.0
        %458 = vst.msk [vmem:[#allocation2 + $0x248] sm:$0xff] %vm384, 0.0
        %459 = vst.msk [vmem:[#allocation2 + $0x250] sm:$0xff] %vm384, 0.0
        %460 = vst.msk [vmem:[#allocation2 + $0x258] sm:$0xff] %vm384, 0.0
        %461 = vst.msk [vmem:[#allocation2 + $0x260] sm:$0xff] %vm384, 0.0
        %462 = vst.msk [vmem:[#allocation2 + $0x268] sm:$0xff] %vm384, 0.0
        %463 = vst.msk [vmem:[#allocation2 + $0x270] sm:$0xff] %vm384, 0.0
        %464 = vst.msk [vmem:[#allocation2 + $0x278] sm:$0xff] %vm384, 0.0
        %465 = vst.msk [vmem:[#allocation2 + $0x280] sm:$0xff] %vm384, 0.0
        %466 = vst.msk [vmem:[#allocation2 + $0x288] sm:$0xff] %vm384, 0.0
        %467 = vst.msk [vmem:[#allocation2 + $0x290] sm:$0xff] %vm384, 0.0
        %468 = vst.msk [vmem:[#allocation2 + $0x298] sm:$0xff] %vm384, 0.0
        %469 = vst.msk [vmem:[#allocation2 + $0x2a0] sm:$0xff] %vm384, 0.0
        %470 = vst.msk [vmem:[#allocation2 + $0x2a8] sm:$0xff] %vm384, 0.0
        %471 = vst.msk [vmem:[#allocation2 + $0x2b0] sm:$0xff] %vm384, 0.0
        %472 = vst.msk [vmem:[#allocation2 + $0x2b8] sm:$0xff] %vm384, 0.0
        %473 = vst.msk [vmem:[#allocation2 + $0x2c0] sm:$0xff] %vm384, 0.0
        %474 = vst.msk [vmem:[#allocation2 + $0x2c8] sm:$0xff] %vm384, 0.0
        %475 = vst.msk [vmem:[#allocation2 + $0x2d0] sm:$0xff] %vm384, 0.0
        %476 = vst.msk [vmem:[#allocation2 + $0x2d8] sm:$0xff] %vm384, 0.0
        %477 = vst.msk [vmem:[#allocation2 + $0x2e0] sm:$0xff] %vm384, 0.0
        %478 = vst.msk [vmem:[#allocation2 + $0x2e8] sm:$0xff] %vm384, 0.0
        %479 = vst.msk [vmem:[#allocation2 + $0x2f0] sm:$0xff] %vm384, 0.0
        %480 = vst.msk [vmem:[#allocation2 + $0x2f8] sm:$0xff] %vm384, 0.0
        %481 = vst.msk [vmem:[#allocation2 + $0x300] sm:$0xff] %vm384, 0.0
        %482 = vst.msk [vmem:[#allocation2 + $0x308] sm:$0xff] %vm384, 0.0
        %483 = vst.msk [vmem:[#allocation2 + $0x310] sm:$0xff] %vm384, 0.0
        %484 = vst.msk [vmem:[#allocation2 + $0x318] sm:$0xff] %vm384, 0.0
        %485 = vst.msk [vmem:[#allocation2 + $0x320] sm:$0xff] %vm384, 0.0
        %486 = vst.msk [vmem:[#allocation2 + $0x328] sm:$0xff] %vm384, 0.0
        %487 = vst.msk [vmem:[#allocation2 + $0x330] sm:$0xff] %vm384, 0.0
        %488 = vst.msk [vmem:[#allocation2 + $0x338] sm:$0xff] %vm384, 0.0
        %489 = vst.msk [vmem:[#allocation2 + $0x340] sm:$0xff] %vm384, 0.0
        %490 = vst.msk [vmem:[#allocation2 + $0x348] sm:$0xff] %vm384, 0.0
        %491 = vst.msk [vmem:[#allocation2 + $0x350] sm:$0xff] %vm384, 0.0
        %492 = vst.msk [vmem:[#allocation2 + $0x358] sm:$0xff] %vm384, 0.0
        %493 = vst.msk [vmem:[#allocation2 + $0x360] sm:$0xff] %vm384, 0.0
        %494 = vst.msk [vmem:[#allocation2 + $0x368] sm:$0xff] %vm384, 0.0
        %495 = vst.msk [vmem:[#allocation2 + $0x370] sm:$0xff] %vm384, 0.0
        %496 = vst.msk [vmem:[#allocation2 + $0x378] sm:$0xff] %vm384, 0.0
        %497 = vst.msk [vmem:[#allocation2 + $0x380] sm:$0xff] %vm384, 0.0
        %498 = vst.msk [vmem:[#allocation2 + $0x388] sm:$0xff] %vm384, 0.0
        %499 = vst.msk [vmem:[#allocation2 + $0x390] sm:$0xff] %vm384, 0.0
        %500 = vst.msk [vmem:[#allocation2 + $0x398] sm:$0xff] %vm384, 0.0
        %501 = vst.msk [vmem:[#allocation2 + $0x3a0] sm:$0xff] %vm384, 0.0
        %502 = vst.msk [vmem:[#allocation2 + $0x3a8] sm:$0xff] %vm384, 0.0
        %503 = vst.msk [vmem:[#allocation2 + $0x3b0] sm:$0xff] %vm384, 0.0
        %504 = vst.msk [vmem:[#allocation2 + $0x3b8] sm:$0xff] %vm384, 0.0
        %505 = vst.msk [vmem:[#allocation2 + $0x3c0] sm:$0xff] %vm384, 0.0
        %506 = vst.msk [vmem:[#allocation2 + $0x3c8] sm:$0xff] %vm384, 0.0
        %507 = vst.msk [vmem:[#allocation2 + $0x3d0] sm:$0xff] %vm384, 0.0
        %508 = vst.msk [vmem:[#allocation2 + $0x3d8] sm:$0xff] %vm384, 0.0
        %509 = vst.msk [vmem:[#allocation2 + $0x3e0] sm:$0xff] %vm384, 0.0
        %510 = vst.msk [vmem:[#allocation2 + $0x3e8] sm:$0xff] %vm384, 0.0
        %511 = vst.msk [vmem:[#allocation2 + $0x3f0] sm:$0xff] %vm384, 0.0
        %512 = vst.msk [vmem:[#allocation2 + $0x3f8] sm:$0xff] %vm384, 0.0
        %v513 = vld [vmem:[%s383] sm:$0xff]
        %v514 = vld [vmem:[%s383 + $0x8] sm:$0xff]
        %v515 = vld [vmem:[%s383 + $0x10] sm:$0xff]
        %v516 = vld [vmem:[%s383 + $0x18] sm:$0xf]
        %v517 = vld [vmem:[%s383 + $0x20] sm:$0xff]
        %v518 = vld [vmem:[%s383 + $0x28] sm:$0xff]
        %v519 = vld [vmem:[%s383 + $0x30] sm:$0xff]
        %v520 = vld [vmem:[%s383 + $0x38] sm:$0xf]
        %v521 = vld [vmem:[%s383 + $0x40] sm:$0xff]
        %v522 = vld [vmem:[%s383 + $0x48] sm:$0xff]
        %v523 = vld [vmem:[%s383 + $0x50] sm:$0xff]
        %v524 = vld [vmem:[%s383 + $0x58] sm:$0xf]
        %v525 = vld [vmem:[%s383 + $0x60] sm:$0xff]
        %v526 = vld [vmem:[%s383 + $0x68] sm:$0xff]
        %v527 = vld [vmem:[%s383 + $0x70] sm:$0xff]
        %v528 = vld [vmem:[%s383 + $0x78] sm:$0xf]
        %v529 = vld [vmem:[%s383 + $0x80] sm:$0xff]
        %v530 = vld [vmem:[%s383 + $0x88] sm:$0xff]
        %v531 = vld [vmem:[%s383 + $0x90] sm:$0xff]
        %v532 = vld [vmem:[%s383 + $0x98] sm:$0xf]
        %v533 = vld [vmem:[%s383 + $0xa0] sm:$0xff]
        %v534 = vld [vmem:[%s383 + $0xa8] sm:$0xff]
        %v535 = vld [vmem:[%s383 + $0xb0] sm:$0xff]
        %v536 = vld [vmem:[%s383 + $0xb8] sm:$0xf]
        %v537 = vld [vmem:[%s383 + $0xc0] sm:$0xff]
        %v538 = vld [vmem:[%s383 + $0xc8] sm:$0xff]
        %v539 = vld [vmem:[%s383 + $0xd0] sm:$0xff]
        %v540 = vld [vmem:[%s383 + $0xd8] sm:$0xf]
        %v541 = vld [vmem:[%s383 + $0xe0] sm:$0xff]
        %v542 = vld [vmem:[%s383 + $0xe8] sm:$0xff]
        %v543 = vld [vmem:[%s383 + $0xf0] sm:$0xff]
        %v544 = vld [vmem:[%s383 + $0xf8] sm:$0xf]
        %v545 = vld [vmem:[%s383 + $0x100] sm:$0xff]
        %v546 = vld [vmem:[%s383 + $0x108] sm:$0xff]
        %v547 = vld [vmem:[%s383 + $0x110] sm:$0xff]
        %v548 = vld [vmem:[%s383 + $0x118] sm:$0xf]
        %v549 = vld [vmem:[%s383 + $0x120] sm:$0xff]
        %v550 = vld [vmem:[%s383 + $0x128] sm:$0xff]
        %v551 = vld [vmem:[%s383 + $0x130] sm:$0xff]
        %v552 = vld [vmem:[%s383 + $0x138] sm:$0xf]
        %v553 = vld [vmem:[%s383 + $0x140] sm:$0xff]
        %v554 = vld [vmem:[%s383 + $0x148] sm:$0xff]
        %v555 = vld [vmem:[%s383 + $0x150] sm:$0xff]
        %v556 = vld [vmem:[%s383 + $0x158] sm:$0xf]
        %v557 = vld [vmem:[%s383 + $0x160] sm:$0xff]
        %v558 = vld [vmem:[%s383 + $0x168] sm:$0xff]
        %v559 = vld [vmem:[%s383 + $0x170] sm:$0xff]
        %v560 = vld [vmem:[%s383 + $0x178] sm:$0xf]
        %v561 = vld [vmem:[%s383 + $0x180] sm:$0xff]
        %v562 = vld [vmem:[%s383 + $0x188] sm:$0xff]
        %v563 = vld [vmem:[%s383 + $0x190] sm:$0xff]
        %v564 = vld [vmem:[%s383 + $0x198] sm:$0xf]
        %v565 = vld [vmem:[%s383 + $0x1a0] sm:$0xff]
        %v566 = vld [vmem:[%s383 + $0x1a8] sm:$0xff]
        %v567 = vld [vmem:[%s383 + $0x1b0] sm:$0xff]
        %v568 = vld [vmem:[%s383 + $0x1b8] sm:$0xf]
        %v569 = vld [vmem:[%s383 + $0x1c0] sm:$0xff]
        %v570 = vld [vmem:[%s383 + $0x1c8] sm:$0xff]
        %v571 = vld [vmem:[%s383 + $0x1d0] sm:$0xff]
        %v572 = vld [vmem:[%s383 + $0x1d8] sm:$0xf]
        %v573 = vld [vmem:[%s383 + $0x1e0] sm:$0xff]
        %v574 = vld [vmem:[%s383 + $0x1e8] sm:$0xff]
        %v575 = vld [vmem:[%s383 + $0x1f0] sm:$0xff]
        %v576 = vld [vmem:[%s383 + $0x1f8] sm:$0xf]
        %v577 = vld [vmem:[%s383 + $0x200] sm:$0xff]
        %v578 = vld [vmem:[%s383 + $0x208] sm:$0xff]
        %v579 = vld [vmem:[%s383 + $0x210] sm:$0xff]
        %v580 = vld [vmem:[%s383 + $0x218] sm:$0xf]
        %v581 = vld [vmem:[%s383 + $0x220] sm:$0xff]
        %v582 = vld [vmem:[%s383 + $0x228] sm:$0xff]
        %v583 = vld [vmem:[%s383 + $0x230] sm:$0xff]
        %v584 = vld [vmem:[%s383 + $0x238] sm:$0xf]
        %v585 = vld [vmem:[%s383 + $0x240] sm:$0xff]
        %v586 = vld [vmem:[%s383 + $0x248] sm:$0xff]
        %v587 = vld [vmem:[%s383 + $0x250] sm:$0xff]
        %v588 = vld [vmem:[%s383 + $0x258] sm:$0xf]
        %v589 = vld [vmem:[%s383 + $0x260] sm:$0xff]
        %v590 = vld [vmem:[%s383 + $0x268] sm:$0xff]
        %v591 = vld [vmem:[%s383 + $0x270] sm:$0xff]
        %v592 = vld [vmem:[%s383 + $0x278] sm:$0xf]
        %v593 = vld [vmem:[%s383 + $0x280] sm:$0xff]
        %v594 = vld [vmem:[%s383 + $0x288] sm:$0xff]
        %v595 = vld [vmem:[%s383 + $0x290] sm:$0xff]
        %v596 = vld [vmem:[%s383 + $0x298] sm:$0xf]
        %v597 = vld [vmem:[%s383 + $0x2a0] sm:$0xff]
        %v598 = vld [vmem:[%s383 + $0x2a8] sm:$0xff]
        %v599 = vld [vmem:[%s383 + $0x2b0] sm:$0xff]
        %v600 = vld [vmem:[%s383 + $0x2b8] sm:$0xf]
        %v601 = vld [vmem:[%s383 + $0x2c0] sm:$0xff]
        %v602 = vld [vmem:[%s383 + $0x2c8] sm:$0xff]
        %v603 = vld [vmem:[%s383 + $0x2d0] sm:$0xff]
        %v604 = vld [vmem:[%s383 + $0x2d8] sm:$0xf]
        %v605 = vld [vmem:[%s383 + $0x2e0] sm:$0xff]
        %v606 = vld [vmem:[%s383 + $0x2e8] sm:$0xff]
        %v607 = vld [vmem:[%s383 + $0x2f0] sm:$0xff]
        %v608 = vld [vmem:[%s383 + $0x2f8] sm:$0xf]
        %v609 = vld [vmem:[%s383 + $0x300] sm:$0xff]
        %v610 = vld [vmem:[%s383 + $0x308] sm:$0xff]
        %v611 = vld [vmem:[%s383 + $0x310] sm:$0xff]
        %v612 = vld [vmem:[%s383 + $0x318] sm:$0xf]
        %v613 = vld [vmem:[%s383 + $0x320] sm:$0xff]
        %v614 = vld [vmem:[%s383 + $0x328] sm:$0xff]
        %v615 = vld [vmem:[%s383 + $0x330] sm:$0xff]
        %v616 = vld [vmem:[%s383 + $0x338] sm:$0xf]
        %v617 = vld [vmem:[%s383 + $0x340] sm:$0xff]
        %v618 = vld [vmem:[%s383 + $0x348] sm:$0xff]
        %v619 = vld [vmem:[%s383 + $0x350] sm:$0xff]
        %v620 = vld [vmem:[%s383 + $0x358] sm:$0xf]
        %v621 = vld [vmem:[%s383 + $0x360] sm:$0xff]
        %v622 = vld [vmem:[%s383 + $0x368] sm:$0xff]
        %v623 = vld [vmem:[%s383 + $0x370] sm:$0xff]
        %v624 = vld [vmem:[%s383 + $0x378] sm:$0xf]
        %s625 = scalar_lea.vmem [#allocation2], 64
        %626 = vst.msk [vmem:[%s625 + $0x2] sm:$0xff] %vm384, %v513
        %627 = vst.msk [vmem:[%s625 + $0xa] sm:$0xff] %vm384, %v514
        %628 = vst.msk [vmem:[%s625 + $0x12] sm:$0xff] %vm384, %v515
        %vm629 = vcmask 3072
        %630 = vst.msk [vmem:[%s625 + $0x1a] sm:$0xf] %vm629, %v516
        %631 = vst.msk [vmem:[%s625 + $0x22] sm:$0xff] %vm384, %v517
        %632 = vst.msk [vmem:[%s625 + $0x2a] sm:$0xff] %vm384, %v518
        %633 = vst.msk [vmem:[%s625 + $0x32] sm:$0xff] %vm384, %v519
        %634 = vst.msk [vmem:[%s625 + $0x3a] sm:$0xf] %vm629, %v520
        %635 = vst.msk [vmem:[%s625 + $0x42] sm:$0xff] %vm384, %v521
        %636 = vst.msk [vmem:[%s625 + $0x4a] sm:$0xff] %vm384, %v522
        %637 = vst.msk [vmem:[%s625 + $0x52] sm:$0xff] %vm384, %v523
        %638 = vst.msk [vmem:[%s625 + $0x5a] sm:$0xf] %vm629, %v524
        %639 = vst.msk [vmem:[%s625 + $0x62] sm:$0xff] %vm384, %v525
        %640 = vst.msk [vmem:[%s625 + $0x6a] sm:$0xff] %vm384, %v526
        %641 = vst.msk [vmem:[%s625 + $0x72] sm:$0xff] %vm384, %v527
        %642 = vst.msk [vmem:[%s625 + $0x7a] sm:$0xf] %vm629, %v528
        %643 = vst.msk [vmem:[%s625 + $0x82] sm:$0xff] %vm384, %v529
        %644 = vst.msk [vmem:[%s625 + $0x8a] sm:$0xff] %vm384, %v530
        %645 = vst.msk [vmem:[%s625 + $0x92] sm:$0xff] %vm384, %v531
        %646 = vst.msk [vmem:[%s625 + $0x9a] sm:$0xf] %vm629, %v532
        %647 = vst.msk [vmem:[%s625 + $0xa2] sm:$0xff] %vm384, %v533
        %648 = vst.msk [vmem:[%s625 + $0xaa] sm:$0xff] %vm384, %v534
        %649 = vst.msk [vmem:[%s625 + $0xb2] sm:$0xff] %vm384, %v535
        %650 = vst.msk [vmem:[%s625 + $0xba] sm:$0xf] %vm629, %v536
        %651 = vst.msk [vmem:[%s625 + $0xc2] sm:$0xff] %vm384, %v537
        %652 = vst.msk [vmem:[%s625 + $0xca] sm:$0xff] %vm384, %v538
        %653 = vst.msk [vmem:[%s625 + $0xd2] sm:$0xff] %vm384, %v539
        %654 = vst.msk [vmem:[%s625 + $0xda] sm:$0xf] %vm629, %v540
        %655 = vst.msk [vmem:[%s625 + $0xe2] sm:$0xff] %vm384, %v541
        %656 = vst.msk [vmem:[%s625 + $0xea] sm:$0xff] %vm384, %v542
        %657 = vst.msk [vmem:[%s625 + $0xf2] sm:$0xff] %vm384, %v543
        %658 = vst.msk [vmem:[%s625 + $0xfa] sm:$0xf] %vm629, %v544
        %659 = vst.msk [vmem:[%s625 + $0x102] sm:$0xff] %vm384, %v545
        %660 = vst.msk [vmem:[%s625 + $0x10a] sm:$0xff] %vm384, %v546
        %661 = vst.msk [vmem:[%s625 + $0x112] sm:$0xff] %vm384, %v547
        %662 = vst.msk [vmem:[%s625 + $0x11a] sm:$0xf] %vm629, %v548
        %663 = vst.msk [vmem:[%s625 + $0x122] sm:$0xff] %vm384, %v549
        %664 = vst.msk [vmem:[%s625 + $0x12a] sm:$0xff] %vm384, %v550
        %665 = vst.msk [vmem:[%s625 + $0x132] sm:$0xff] %vm384, %v551
        %666 = vst.msk [vmem:[%s625 + $0x13a] sm:$0xf] %vm629, %v552
        %667 = vst.msk [vmem:[%s625 + $0x142] sm:$0xff] %vm384, %v553
        %668 = vst.msk [vmem:[%s625 + $0x14a] sm:$0xff] %vm384, %v554
        %669 = vst.msk [vmem:[%s625 + $0x152] sm:$0xff] %vm384, %v555
        %670 = vst.msk [vmem:[%s625 + $0x15a] sm:$0xf] %vm629, %v556
        %671 = vst.msk [vmem:[%s625 + $0x162] sm:$0xff] %vm384, %v557
        %672 = vst.msk [vmem:[%s625 + $0x16a] sm:$0xff] %vm384, %v558
        %673 = vst.msk [vmem:[%s625 + $0x172] sm:$0xff] %vm384, %v559
        %674 = vst.msk [vmem:[%s625 + $0x17a] sm:$0xf] %vm629, %v560
        %675 = vst.msk [vmem:[%s625 + $0x182] sm:$0xff] %vm384, %v561
        %676 = vst.msk [vmem:[%s625 + $0x18a] sm:$0xff] %vm384, %v562
        %677 = vst.msk [vmem:[%s625 + $0x192] sm:$0xff] %vm384, %v563
        %678 = vst.msk [vmem:[%s625 + $0x19a] sm:$0xf] %vm629, %v564
        %679 = vst.msk [vmem:[%s625 + $0x1a2] sm:$0xff] %vm384, %v565
        %680 = vst.msk [vmem:[%s625 + $0x1aa] sm:$0xff] %vm384, %v566
        %681 = vst.msk [vmem:[%s625 + $0x1b2] sm:$0xff] %vm384, %v567
        %682 = vst.msk [vmem:[%s625 + $0x1ba] sm:$0xf] %vm629, %v568
        %683 = vst.msk [vmem:[%s625 + $0x1c2] sm:$0xff] %vm384, %v569
        %684 = vst.msk [vmem:[%s625 + $0x1ca] sm:$0xff] %vm384, %v570
        %685 = vst.msk [vmem:[%s625 + $0x1d2] sm:$0xff] %vm384, %v571
        %686 = vst.msk [vmem:[%s625 + $0x1da] sm:$0xf] %vm629, %v572
        %687 = vst.msk [vmem:[%s625 + $0x1e2] sm:$0xff] %vm384, %v573
        %688 = vst.msk [vmem:[%s625 + $0x1ea] sm:$0xff] %vm384, %v574
        %689 = vst.msk [vmem:[%s625 + $0x1f2] sm:$0xff] %vm384, %v575
        %690 = vst.msk [vmem:[%s625 + $0x1fa] sm:$0xf] %vm629, %v576
        %691 = vst.msk [vmem:[%s625 + $0x202] sm:$0xff] %vm384, %v577
        %692 = vst.msk [vmem:[%s625 + $0x20a] sm:$0xff] %vm384, %v578
        %693 = vst.msk [vmem:[%s625 + $0x212] sm:$0xff] %vm384, %v579
        %694 = vst.msk [vmem:[%s625 + $0x21a] sm:$0xf] %vm629, %v580
        %695 = vst.msk [vmem:[%s625 + $0x222] sm:$0xff] %vm384, %v581
        %696 = vst.msk [vmem:[%s625 + $0x22a] sm:$0xff] %vm384, %v582
        %697 = vst.msk [vmem:[%s625 + $0x232] sm:$0xff] %vm384, %v583
        %698 = vst.msk [vmem:[%s625 + $0x23a] sm:$0xf] %vm629, %v584
        %699 = vst.msk [vmem:[%s625 + $0x242] sm:$0xff] %vm384, %v585
        %700 = vst.msk [vmem:[%s625 + $0x24a] sm:$0xff] %vm384, %v586
        %701 = vst.msk [vmem:[%s625 + $0x252] sm:$0xff] %vm384, %v587
        %702 = vst.msk [vmem:[%s625 + $0x25a] sm:$0xf] %vm629, %v588
        %703 = vst.msk [vmem:[%s625 + $0x262] sm:$0xff] %vm384, %v589
        %704 = vst.msk [vmem:[%s625 + $0x26a] sm:$0xff] %vm384, %v590
        %705 = vst.msk [vmem:[%s625 + $0x272] sm:$0xff] %vm384, %v591
        %706 = vst.msk [vmem:[%s625 + $0x27a] sm:$0xf] %vm629, %v592
        %707 = vst.msk [vmem:[%s625 + $0x282] sm:$0xff] %vm384, %v593
        %708 = vst.msk [vmem:[%s625 + $0x28a] sm:$0xff] %vm384, %v594
        %709 = vst.msk [vmem:[%s625 + $0x292] sm:$0xff] %vm384, %v595
        %710 = vst.msk [vmem:[%s625 + $0x29a] sm:$0xf] %vm629, %v596
        %711 = vst.msk [vmem:[%s625 + $0x2a2] sm:$0xff] %vm384, %v597
        %712 = vst.msk [vmem:[%s625 + $0x2aa] sm:$0xff] %vm384, %v598
        %713 = vst.msk [vmem:[%s625 + $0x2b2] sm:$0xff] %vm384, %v599
        %714 = vst.msk [vmem:[%s625 + $0x2ba] sm:$0xf] %vm629, %v600
        %715 = vst.msk [vmem:[%s625 + $0x2c2] sm:$0xff] %vm384, %v601
        %716 = vst.msk [vmem:[%s625 + $0x2ca] sm:$0xff] %vm384, %v602
        %717 = vst.msk [vmem:[%s625 + $0x2d2] sm:$0xff] %vm384, %v603
        %718 = vst.msk [vmem:[%s625 + $0x2da] sm:$0xf] %vm629, %v604
        %719 = vst.msk [vmem:[%s625 + $0x2e2] sm:$0xff] %vm384, %v605
        %720 = vst.msk [vmem:[%s625 + $0x2ea] sm:$0xff] %vm384, %v606
        %721 = vst.msk [vmem:[%s625 + $0x2f2] sm:$0xff] %vm384, %v607
        %722 = vst.msk [vmem:[%s625 + $0x2fa] sm:$0xf] %vm629, %v608
        %723 = vst.msk [vmem:[%s625 + $0x302] sm:$0xff] %vm384, %v609
        %724 = vst.msk [vmem:[%s625 + $0x30a] sm:$0xff] %vm384, %v610
        %725 = vst.msk [vmem:[%s625 + $0x312] sm:$0xff] %vm384, %v611
        %726 = vst.msk [vmem:[%s625 + $0x31a] sm:$0xf] %vm629, %v612
        %727 = vst.msk [vmem:[%s625 + $0x322] sm:$0xff] %vm384, %v613
        %728 = vst.msk [vmem:[%s625 + $0x32a] sm:$0xff] %vm384, %v614
        %729 = vst.msk [vmem:[%s625 + $0x332] sm:$0xff] %vm384, %v615
        %730 = vst.msk [vmem:[%s625 + $0x33a] sm:$0xf] %vm629, %v616
        %731 = vst.msk [vmem:[%s625 + $0x342] sm:$0xff] %vm384, %v617
        %732 = vst.msk [vmem:[%s625 + $0x34a] sm:$0xff] %vm384, %v618
        %733 = vst.msk [vmem:[%s625 + $0x352] sm:$0xff] %vm384, %v619
        %734 = vst.msk [vmem:[%s625 + $0x35a] sm:$0xf] %vm629, %v620
        %735 = vst.msk [vmem:[%s625 + $0x362] sm:$0xff] %vm384, %v621
        %736 = vst.msk [vmem:[%s625 + $0x36a] sm:$0xff] %vm384, %v622
        %737 = vst.msk [vmem:[%s625 + $0x372] sm:$0xff] %vm384, %v623
        %738 = vst.msk [vmem:[%s625 + $0x37a] sm:$0xf] %vm629, %v624
        loop: start=0, step=1, limit=28
        $region65: #{lenet_forward.1} parent=63 // loop_pre_header
          _
        $region66: #{lenet_forward.1} parent=63 // loop_header
          %s740 = sphi 0, %s744
          %p741 = scmp.ge.s32.totalorder %s740, 28
        $region67: #{lenet_forward.1} parent=63 // loop_header_branch
          %743 = sbr.rel (%p741) target = $region71
        $region68: #{lenet_forward.1} parent=63 // loop_body
          %s745 = smul.u32 %s740, 32
          %s746 = scalar_lea.vmem [#allocation2], %s745
          %v747 = vld [vmem:[%s746] sm:$0xff]
          %v748 = vld [vmem:[%s746 + $0x8] sm:$0xff]
          %v749 = vld [vmem:[%s746 + $0x10] sm:$0xff]
          %v750 = vld [vmem:[%s746 + $0x18] sm:$0xf]
          %v751 = vld [vmem:[%s1] sm:$0x1]
          %753 = vset.pattern.permute.xlu0 0
          %754 = vperm.xlu0 %753, %v747
          %v755 = vpop.permute.xlu0 %754
          %758 = vset.pattern.permute.xlu0 0
          %759 = vperm.xlu0 %758, %v748
          %v760 = vpop.permute.xlu0 %759
          %763 = vset.pattern.permute.xlu0 0
          %764 = vperm.xlu0 %763, %v749
          %v765 = vpop.permute.xlu0 %764
          %768 = vset.pattern.permute.xlu0 0
          %769 = vperm.xlu0 %768, %v750
          %v770 = vpop.permute.xlu0 %769
          %v772 = vlaneseq
          %v773 = vshrl.u32 %v772, 7
          %v774 = vsub.s32 0, %v773
          %v775 = vrot.slane %v751, %v774
          %v776 = vmul.f32 %v755, %v775
          %v777 = vmul.f32 %v760, %v775
          %v778 = vmul.f32 %v765, %v775
          %v779 = vmul.f32 %v770, %v775
          %v780 = vadd.f32 %v776, 0.0
          %v781 = vadd.f32 %v777, 0.0
          %v782 = vadd.f32 %v778, 0.0
          %v783 = vadd.f32 %v779, 0.0
          %v784 = vld [vmem:[%s746 + $0x1] sm:$0xff]
          %v785 = vld [vmem:[%s746 + $0x9] sm:$0xff]
          %v786 = vld [vmem:[%s746 + $0x11] sm:$0xff]
          %v787 = vld [vmem:[%s746 + $0x19] sm:$0xf]
          %v788 = vld [vmem:[%s1 + $0x1] sm:$0x1]
          %790 = vset.pattern.permute.xlu0 0
          %791 = vperm.xlu0 %790, %v784
          %v792 = vpop.permute.xlu0 %791
          %795 = vset.pattern.permute.xlu0 0
          %796 = vperm.xlu0 %795, %v785
          %v797 = vpop.permute.xlu0 %796
          %800 = vset.pattern.permute.xlu0 0
          %801 = vperm.xlu0 %800, %v786
          %v802 = vpop.permute.xlu0 %801
          %805 = vset.pattern.permute.xlu0 0
          %806 = vperm.xlu0 %805, %v787
          %v807 = vpop.permute.xlu0 %806
          %v809 = vlaneseq
          %v810 = vshrl.u32 %v809, 7
          %v811 = vsub.s32 0, %v810
          %v812 = vrot.slane %v788, %v811
          %v813 = vmul.f32 %v792, %v812
          %v814 = vmul.f32 %v797, %v812
          %v815 = vmul.f32 %v802, %v812
          %v816 = vmul.f32 %v807, %v812
          %v817 = vadd.f32 %v780, %v813
          %v818 = vadd.f32 %v781, %v814
          %v819 = vadd.f32 %v782, %v815
          %v820 = vadd.f32 %v783, %v816
          %v821 = vld [vmem:[%s746 + $0x2] sm:$0xff]
          %v822 = vld [vmem:[%s746 + $0xa] sm:$0xff]
          %v823 = vld [vmem:[%s746 + $0x12] sm:$0xff]
          %v824 = vld [vmem:[%s746 + $0x1a] sm:$0xf]
          %v825 = vld [vmem:[%s1 + $0x2] sm:$0x1]
          %827 = vset.pattern.permute.xlu0 0
          %828 = vperm.xlu0 %827, %v821
          %v829 = vpop.permute.xlu0 %828
          %832 = vset.pattern.permute.xlu0 0
          %833 = vperm.xlu0 %832, %v822
          %v834 = vpop.permute.xlu0 %833
          %837 = vset.pattern.permute.xlu0 0
          %838 = vperm.xlu0 %837, %v823
          %v839 = vpop.permute.xlu0 %838
          %842 = vset.pattern.permute.xlu0 0
          %843 = vperm.xlu0 %842, %v824
          %v844 = vpop.permute.xlu0 %843
          %v846 = vlaneseq
          %v847 = vshrl.u32 %v846, 7
          %v848 = vsub.s32 0, %v847
          %v849 = vrot.slane %v825, %v848
          %v850 = vmul.f32 %v829, %v849
          %v851 = vmul.f32 %v834, %v849
          %v852 = vmul.f32 %v839, %v849
          %v853 = vmul.f32 %v844, %v849
          %v854 = vadd.f32 %v817, %v850
          %v855 = vadd.f32 %v818, %v851
          %v856 = vadd.f32 %v819, %v852
          %v857 = vadd.f32 %v820, %v853
          %v858 = vld [vmem:[%s746 + $0x3] sm:$0xff]
          %v859 = vld [vmem:[%s746 + $0xb] sm:$0xff]
          %v860 = vld [vmem:[%s746 + $0x13] sm:$0xff]
          %v861 = vld [vmem:[%s746 + $0x1b] sm:$0xf]
          %v862 = vld [vmem:[%s1 + $0x3] sm:$0x1]
          %864 = vset.pattern.permute.xlu0 0
          %865 = vperm.xlu0 %864, %v858
          %v866 = vpop.permute.xlu0 %865
          %869 = vset.pattern.permute.xlu0 0
          %870 = vperm.xlu0 %869, %v859
          %v871 = vpop.permute.xlu0 %870
          %874 = vset.pattern.permute.xlu0 0
          %875 = vperm.xlu0 %874, %v860
          %v876 = vpop.permute.xlu0 %875
          %879 = vset.pattern.permute.xlu0 0
          %880 = vperm.xlu0 %879, %v861
          %v881 = vpop.permute.xlu0 %880
          %v883 = vlaneseq
          %v884 = vshrl.u32 %v883, 7
          %v885 = vsub.s32 0, %v884
          %v886 = vrot.slane %v862, %v885
          %v887 = vmul.f32 %v866, %v886
          %v888 = vmul.f32 %v871, %v886
          %v889 = vmul.f32 %v876, %v886
          %v890 = vmul.f32 %v881, %v886
          %v891 = vadd.f32 %v854, %v887
          %v892 = vadd.f32 %v855, %v888
          %v893 = vadd.f32 %v856, %v889
          %v894 = vadd.f32 %v857, %v890
          %v895 = vld [vmem:[%s746 + $0x4] sm:$0xff]
          %v896 = vld [vmem:[%s746 + $0xc] sm:$0xff]
          %v897 = vld [vmem:[%s746 + $0x14] sm:$0xff]
          %v898 = vld [vmem:[%s746 + $0x1c] sm:$0xf]
          %v899 = vld [vmem:[%s1 + $0x4] sm:$0x1]
          %901 = vset.pattern.permute.xlu0 0
          %902 = vperm.xlu0 %901, %v895
          %v903 = vpop.permute.xlu0 %902
          %906 = vset.pattern.permute.xlu0 0
          %907 = vperm.xlu0 %906, %v896
          %v908 = vpop.permute.xlu0 %907
          %911 = vset.pattern.permute.xlu0 0
          %912 = vperm.xlu0 %911, %v897
          %v913 = vpop.permute.xlu0 %912
          %916 = vset.pattern.permute.xlu0 0
          %917 = vperm.xlu0 %916, %v898
          %v918 = vpop.permute.xlu0 %917
          %v920 = vlaneseq
          %v921 = vshrl.u32 %v920, 7
          %v922 = vsub.s32 0, %v921
          %v923 = vrot.slane %v899, %v922
          %v924 = vmul.f32 %v903, %v923
          %v925 = vmul.f32 %v908, %v923
          %v926 = vmul.f32 %v913, %v923
          %v927 = vmul.f32 %v918, %v923
          %v928 = vadd.f32 %v891, %v924
          %v929 = vadd.f32 %v892, %v925
          %v930 = vadd.f32 %v893, %v926
          %v931 = vadd.f32 %v894, %v927
          %s932 = sadd.s32 %s740, 1
          %s933 = smul.u32 %s932, 32
          %s934 = scalar_lea.vmem [#allocation2], %s933
          %v935 = vld [vmem:[%s934] sm:$0xff]
          %v936 = vld [vmem:[%s934 + $0x8] sm:$0xff]
          %v937 = vld [vmem:[%s934 + $0x10] sm:$0xff]
          %v938 = vld [vmem:[%s934 + $0x18] sm:$0xf]
          %v939 = vld [vmem:[%s1 + $0x5] sm:$0x1]
          %941 = vset.pattern.permute.xlu0 0
          %942 = vperm.xlu0 %941, %v935
          %v943 = vpop.permute.xlu0 %942
          %946 = vset.pattern.permute.xlu0 0
          %947 = vperm.xlu0 %946, %v936
          %v948 = vpop.permute.xlu0 %947
          %951 = vset.pattern.permute.xlu0 0
          %952 = vperm.xlu0 %951, %v937
          %v953 = vpop.permute.xlu0 %952
          %956 = vset.pattern.permute.xlu0 0
          %957 = vperm.xlu0 %956, %v938
          %v958 = vpop.permute.xlu0 %957
          %v960 = vlaneseq
          %v961 = vshrl.u32 %v960, 7
          %v962 = vsub.s32 0, %v961
          %v963 = vrot.slane %v939, %v962
          %v964 = vmul.f32 %v943, %v963
          %v965 = vmul.f32 %v948, %v963
          %v966 = vmul.f32 %v953, %v963
          %v967 = vmul.f32 %v958, %v963
          %v968 = vadd.f32 %v928, %v964
          %v969 = vadd.f32 %v929, %v965
          %v970 = vadd.f32 %v930, %v966
          %v971 = vadd.f32 %v931, %v967
          %v972 = vld [vmem:[%s934 + $0x1] sm:$0xff]
          %v973 = vld [vmem:[%s934 + $0x9] sm:$0xff]
          %v974 = vld [vmem:[%s934 + $0x11] sm:$0xff]
          %v975 = vld [vmem:[%s934 + $0x19] sm:$0xf]
          %v976 = vld [vmem:[%s1 + $0x6] sm:$0x1]
          %978 = vset.pattern.permute.xlu0 0
          %979 = vperm.xlu0 %978, %v972
          %v980 = vpop.permute.xlu0 %979
          %983 = vset.pattern.permute.xlu0 0
          %984 = vperm.xlu0 %983, %v973
          %v985 = vpop.permute.xlu0 %984
          %988 = vset.pattern.permute.xlu0 0
          %989 = vperm.xlu0 %988, %v974
          %v990 = vpop.permute.xlu0 %989
          %993 = vset.pattern.permute.xlu0 0
          %994 = vperm.xlu0 %993, %v975
          %v995 = vpop.permute.xlu0 %994
          %v997 = vlaneseq
          %v998 = vshrl.u32 %v997, 7
          %v999 = vsub.s32 0, %v998
          %v1000 = vrot.slane %v976, %v999
          %v1001 = vmul.f32 %v980, %v1000
          %v1002 = vmul.f32 %v985, %v1000
          %v1003 = vmul.f32 %v990, %v1000
          %v1004 = vmul.f32 %v995, %v1000
          %v1005 = vadd.f32 %v968, %v1001
          %v1006 = vadd.f32 %v969, %v1002
          %v1007 = vadd.f32 %v970, %v1003
          %v1008 = vadd.f32 %v971, %v1004
          %v1009 = vld [vmem:[%s934 + $0x2] sm:$0xff]
          %v1010 = vld [vmem:[%s934 + $0xa] sm:$0xff]
          %v1011 = vld [vmem:[%s934 + $0x12] sm:$0xff]
          %v1012 = vld [vmem:[%s934 + $0x1a] sm:$0xf]
          %v1013 = vld [vmem:[%s1 + $0x7] sm:$0x1]
          %1015 = vset.pattern.permute.xlu0 0
          %1016 = vperm.xlu0 %1015, %v1009
          %v1017 = vpop.permute.xlu0 %1016
          %1020 = vset.pattern.permute.xlu0 0
          %1021 = vperm.xlu0 %1020, %v1010
          %v1022 = vpop.permute.xlu0 %1021
          %1025 = vset.pattern.permute.xlu0 0
          %1026 = vperm.xlu0 %1025, %v1011
          %v1027 = vpop.permute.xlu0 %1026
          %1030 = vset.pattern.permute.xlu0 0
          %1031 = vperm.xlu0 %1030, %v1012
          %v1032 = vpop.permute.xlu0 %1031
          %v1034 = vlaneseq
          %v1035 = vshrl.u32 %v1034, 7
          %v1036 = vsub.s32 0, %v1035
          %v1037 = vrot.slane %v1013, %v1036
          %v1038 = vmul.f32 %v1017, %v1037
          %v1039 = vmul.f32 %v1022, %v1037
          %v1040 = vmul.f32 %v1027, %v1037
          %v1041 = vmul.f32 %v1032, %v1037
          %v1042 = vadd.f32 %v1005, %v1038
          %v1043 = vadd.f32 %v1006, %v1039
          %v1044 = vadd.f32 %v1007, %v1040
          %v1045 = vadd.f32 %v1008, %v1041
          %v1046 = vld [vmem:[%s934 + $0x3] sm:$0xff]
          %v1047 = vld [vmem:[%s934 + $0xb] sm:$0xff]
          %v1048 = vld [vmem:[%s934 + $0x13] sm:$0xff]
          %v1049 = vld [vmem:[%s934 + $0x1b] sm:$0xf]
          %v1050 = vld [vmem:[%s1 + $0x8] sm:$0x1]
          %1052 = vset.pattern.permute.xlu0 0
          %1053 = vperm.xlu0 %1052, %v1046
          %v1054 = vpop.permute.xlu0 %1053
          %1057 = vset.pattern.permute.xlu0 0
          %1058 = vperm.xlu0 %1057, %v1047
          %v1059 = vpop.permute.xlu0 %1058
          %1062 = vset.pattern.permute.xlu0 0
          %1063 = vperm.xlu0 %1062, %v1048
          %v1064 = vpop.permute.xlu0 %1063
          %1067 = vset.pattern.permute.xlu0 0
          %1068 = vperm.xlu0 %1067, %v1049
          %v1069 = vpop.permute.xlu0 %1068
          %v1071 = vlaneseq
          %v1072 = vshrl.u32 %v1071, 7
          %v1073 = vsub.s32 0, %v1072
          %v1074 = vrot.slane %v1050, %v1073
          %v1075 = vmul.f32 %v1054, %v1074
          %v1076 = vmul.f32 %v1059, %v1074
          %v1077 = vmul.f32 %v1064, %v1074
          %v1078 = vmul.f32 %v1069, %v1074
          %v1079 = vadd.f32 %v1042, %v1075
          %v1080 = vadd.f32 %v1043, %v1076
          %v1081 = vadd.f32 %v1044, %v1077
          %v1082 = vadd.f32 %v1045, %v1078
          %v1083 = vld [vmem:[%s934 + $0x4] sm:$0xff]
          %v1084 = vld [vmem:[%s934 + $0xc] sm:$0xff]
          %v1085 = vld [vmem:[%s934 + $0x14] sm:$0xff]
          %v1086 = vld [vmem:[%s934 + $0x1c] sm:$0xf]
          %v1087 = vld [vmem:[%s1 + $0x9] sm:$0x1]
          %1089 = vset.pattern.permute.xlu0 0
          %1090 = vperm.xlu0 %1089, %v1083
          %v1091 = vpop.permute.xlu0 %1090
          %1094 = vset.pattern.permute.xlu0 0
          %1095 = vperm.xlu0 %1094, %v1084
          %v1096 = vpop.permute.xlu0 %1095
          %1099 = vset.pattern.permute.xlu0 0
          %1100 = vperm.xlu0 %1099, %v1085
          %v1101 = vpop.permute.xlu0 %1100
          %1104 = vset.pattern.permute.xlu0 0
          %1105 = vperm.xlu0 %1104, %v1086
          %v1106 = vpop.permute.xlu0 %1105
          %v1108 = vlaneseq
          %v1109 = vshrl.u32 %v1108, 7
          %v1110 = vsub.s32 0, %v1109
          %v1111 = vrot.slane %v1087, %v1110
          %v1112 = vmul.f32 %v1091, %v1111
          %v1113 = vmul.f32 %v1096, %v1111
          %v1114 = vmul.f32 %v1101, %v1111
          %v1115 = vmul.f32 %v1106, %v1111
          %v1116 = vadd.f32 %v1079, %v1112
          %v1117 = vadd.f32 %v1080, %v1113
          %v1118 = vadd.f32 %v1081, %v1114
          %v1119 = vadd.f32 %v1082, %v1115
          %s1120 = sadd.s32 %s740, 2
          %s1121 = smul.u32 %s1120, 32
          %s1122 = scalar_lea.vmem [#allocation2], %s1121
          %v1123 = vld [vmem:[%s1122] sm:$0xff]
          %v1124 = vld [vmem:[%s1122 + $0x8] sm:$0xff]
          %v1125 = vld [vmem:[%s1122 + $0x10] sm:$0xff]
          %v1126 = vld [vmem:[%s1122 + $0x18] sm:$0xf]
          %v1127 = vld [vmem:[%s1 + $0xa] sm:$0x1]
          %1129 = vset.pattern.permute.xlu0 0
          %1130 = vperm.xlu0 %1129, %v1123
          %v1131 = vpop.permute.xlu0 %1130
          %1134 = vset.pattern.permute.xlu0 0
          %1135 = vperm.xlu0 %1134, %v1124
          %v1136 = vpop.permute.xlu0 %1135
          %1139 = vset.pattern.permute.xlu0 0
          %1140 = vperm.xlu0 %1139, %v1125
          %v1141 = vpop.permute.xlu0 %1140
          %1144 = vset.pattern.permute.xlu0 0
          %1145 = vperm.xlu0 %1144, %v1126
          %v1146 = vpop.permute.xlu0 %1145
          %v1148 = vlaneseq
          %v1149 = vshrl.u32 %v1148, 7
          %v1150 = vsub.s32 0, %v1149
          %v1151 = vrot.slane %v1127, %v1150
          %v1152 = vmul.f32 %v1131, %v1151
          %v1153 = vmul.f32 %v1136, %v1151
          %v1154 = vmul.f32 %v1141, %v1151
          %v1155 = vmul.f32 %v1146, %v1151
          %v1156 = vadd.f32 %v1116, %v1152
          %v1157 = vadd.f32 %v1117, %v1153
          %v1158 = vadd.f32 %v1118, %v1154
          %v1159 = vadd.f32 %v1119, %v1155
          %v1160 = vld [vmem:[%s1122 + $0x1] sm:$0xff]
          %v1161 = vld [vmem:[%s1122 + $0x9] sm:$0xff]
          %v1162 = vld [vmem:[%s1122 + $0x11] sm:$0xff]
          %v1163 = vld [vmem:[%s1122 + $0x19] sm:$0xf]
          %v1164 = vld [vmem:[%s1 + $0xb] sm:$0x1]
          %1166 = vset.pattern.permute.xlu0 0
          %1167 = vperm.xlu0 %1166, %v1160
          %v1168 = vpop.permute.xlu0 %1167
          %1171 = vset.pattern.permute.xlu0 0
          %1172 = vperm.xlu0 %1171, %v1161
          %v1173 = vpop.permute.xlu0 %1172
          %1176 = vset.pattern.permute.xlu0 0
          %1177 = vperm.xlu0 %1176, %v1162
          %v1178 = vpop.permute.xlu0 %1177
          %1181 = vset.pattern.permute.xlu0 0
          %1182 = vperm.xlu0 %1181, %v1163
          %v1183 = vpop.permute.xlu0 %1182
          %v1185 = vlaneseq
          %v1186 = vshrl.u32 %v1185, 7
          %v1187 = vsub.s32 0, %v1186
          %v1188 = vrot.slane %v1164, %v1187
          %v1189 = vmul.f32 %v1168, %v1188
          %v1190 = vmul.f32 %v1173, %v1188
          %v1191 = vmul.f32 %v1178, %v1188
          %v1192 = vmul.f32 %v1183, %v1188
          %v1193 = vadd.f32 %v1156, %v1189
          %v1194 = vadd.f32 %v1157, %v1190
          %v1195 = vadd.f32 %v1158, %v1191
          %v1196 = vadd.f32 %v1159, %v1192
          %v1197 = vld [vmem:[%s1122 + $0x2] sm:$0xff]
          %v1198 = vld [vmem:[%s1122 + $0xa] sm:$0xff]
          %v1199 = vld [vmem:[%s1122 + $0x12] sm:$0xff]
          %v1200 = vld [vmem:[%s1122 + $0x1a] sm:$0xf]
          %v1201 = vld [vmem:[%s1 + $0xc] sm:$0x1]
          %1203 = vset.pattern.permute.xlu0 0
          %1204 = vperm.xlu0 %1203, %v1197
          %v1205 = vpop.permute.xlu0 %1204
          %1208 = vset.pattern.permute.xlu0 0
          %1209 = vperm.xlu0 %1208, %v1198
          %v1210 = vpop.permute.xlu0 %1209
          %1213 = vset.pattern.permute.xlu0 0
          %1214 = vperm.xlu0 %1213, %v1199
          %v1215 = vpop.permute.xlu0 %1214
          %1218 = vset.pattern.permute.xlu0 0
          %1219 = vperm.xlu0 %1218, %v1200
          %v1220 = vpop.permute.xlu0 %1219
          %v1222 = vlaneseq
          %v1223 = vshrl.u32 %v1222, 7
          %v1224 = vsub.s32 0, %v1223
          %v1225 = vrot.slane %v1201, %v1224
          %v1226 = vmul.f32 %v1205, %v1225
          %v1227 = vmul.f32 %v1210, %v1225
          %v1228 = vmul.f32 %v1215, %v1225
          %v1229 = vmul.f32 %v1220, %v1225
          %v1230 = vadd.f32 %v1193, %v1226
          %v1231 = vadd.f32 %v1194, %v1227
          %v1232 = vadd.f32 %v1195, %v1228
          %v1233 = vadd.f32 %v1196, %v1229
          %v1234 = vld [vmem:[%s1122 + $0x3] sm:$0xff]
          %v1235 = vld [vmem:[%s1122 + $0xb] sm:$0xff]
          %v1236 = vld [vmem:[%s1122 + $0x13] sm:$0xff]
          %v1237 = vld [vmem:[%s1122 + $0x1b] sm:$0xf]
          %v1238 = vld [vmem:[%s1 + $0xd] sm:$0x1]
          %1240 = vset.pattern.permute.xlu0 0
          %1241 = vperm.xlu0 %1240, %v1234
          %v1242 = vpop.permute.xlu0 %1241
          %1245 = vset.pattern.permute.xlu0 0
          %1246 = vperm.xlu0 %1245, %v1235
          %v1247 = vpop.permute.xlu0 %1246
          %1250 = vset.pattern.permute.xlu0 0
          %1251 = vperm.xlu0 %1250, %v1236
          %v1252 = vpop.permute.xlu0 %1251
          %1255 = vset.pattern.permute.xlu0 0
          %1256 = vperm.xlu0 %1255, %v1237
          %v1257 = vpop.permute.xlu0 %1256
          %v1259 = vlaneseq
          %v1260 = vshrl.u32 %v1259, 7
          %v1261 = vsub.s32 0, %v1260
          %v1262 = vrot.slane %v1238, %v1261
          %v1263 = vmul.f32 %v1242, %v1262
          %v1264 = vmul.f32 %v1247, %v1262
          %v1265 = vmul.f32 %v1252, %v1262
          %v1266 = vmul.f32 %v1257, %v1262
          %v1267 = vadd.f32 %v1230, %v1263
          %v1268 = vadd.f32 %v1231, %v1264
          %v1269 = vadd.f32 %v1232, %v1265
          %v1270 = vadd.f32 %v1233, %v1266
          %v1271 = vld [vmem:[%s1122 + $0x4] sm:$0xff]
          %v1272 = vld [vmem:[%s1122 + $0xc] sm:$0xff]
          %v1273 = vld [vmem:[%s1122 + $0x14] sm:$0xff]
          %v1274 = vld [vmem:[%s1122 + $0x1c] sm:$0xf]
          %v1275 = vld [vmem:[%s1 + $0xe] sm:$0x1]
          %1277 = vset.pattern.permute.xlu0 0
          %1278 = vperm.xlu0 %1277, %v1271
          %v1279 = vpop.permute.xlu0 %1278
          %1282 = vset.pattern.permute.xlu0 0
          %1283 = vperm.xlu0 %1282, %v1272
          %v1284 = vpop.permute.xlu0 %1283
          %1287 = vset.pattern.permute.xlu0 0
          %1288 = vperm.xlu0 %1287, %v1273
          %v1289 = vpop.permute.xlu0 %1288
          %1292 = vset.pattern.permute.xlu0 0
          %1293 = vperm.xlu0 %1292, %v1274
          %v1294 = vpop.permute.xlu0 %1293
          %v1296 = vlaneseq
          %v1297 = vshrl.u32 %v1296, 7
          %v1298 = vsub.s32 0, %v1297
          %v1299 = vrot.slane %v1275, %v1298
          %v1300 = vmul.f32 %v1279, %v1299
          %v1301 = vmul.f32 %v1284, %v1299
          %v1302 = vmul.f32 %v1289, %v1299
          %v1303 = vmul.f32 %v1294, %v1299
          %v1304 = vadd.f32 %v1267, %v1300
          %v1305 = vadd.f32 %v1268, %v1301
          %v1306 = vadd.f32 %v1269, %v1302
          %v1307 = vadd.f32 %v1270, %v1303
          %s1308 = sadd.s32 %s740, 3
          %s1309 = smul.u32 %s1308, 32
          %s1310 = scalar_lea.vmem [#allocation2], %s1309
          %v1311 = vld [vmem:[%s1310] sm:$0xff]
          %v1312 = vld [vmem:[%s1310 + $0x8] sm:$0xff]
          %v1313 = vld [vmem:[%s1310 + $0x10] sm:$0xff]
          %v1314 = vld [vmem:[%s1310 + $0x18] sm:$0xf]
          %v1315 = vld [vmem:[%s1 + $0xf] sm:$0x1]
          %1317 = vset.pattern.permute.xlu0 0
          %1318 = vperm.xlu0 %1317, %v1311
          %v1319 = vpop.permute.xlu0 %1318
          %1322 = vset.pattern.permute.xlu0 0
          %1323 = vperm.xlu0 %1322, %v1312
          %v1324 = vpop.permute.xlu0 %1323
          %1327 = vset.pattern.permute.xlu0 0
          %1328 = vperm.xlu0 %1327, %v1313
          %v1329 = vpop.permute.xlu0 %1328
          %1332 = vset.pattern.permute.xlu0 0
          %1333 = vperm.xlu0 %1332, %v1314
          %v1334 = vpop.permute.xlu0 %1333
          %v1336 = vlaneseq
          %v1337 = vshrl.u32 %v1336, 7
          %v1338 = vsub.s32 0, %v1337
          %v1339 = vrot.slane %v1315, %v1338
          %v1340 = vmul.f32 %v1319, %v1339
          %v1341 = vmul.f32 %v1324, %v1339
          %v1342 = vmul.f32 %v1329, %v1339
          %v1343 = vmul.f32 %v1334, %v1339
          %v1344 = vadd.f32 %v1304, %v1340
          %v1345 = vadd.f32 %v1305, %v1341
          %v1346 = vadd.f32 %v1306, %v1342
          %v1347 = vadd.f32 %v1307, %v1343
          %v1348 = vld [vmem:[%s1310 + $0x1] sm:$0xff]
          %v1349 = vld [vmem:[%s1310 + $0x9] sm:$0xff]
          %v1350 = vld [vmem:[%s1310 + $0x11] sm:$0xff]
          %v1351 = vld [vmem:[%s1310 + $0x19] sm:$0xf]
          %v1352 = vld [vmem:[%s1 + $0x10] sm:$0x1]
          %1354 = vset.pattern.permute.xlu0 0
          %1355 = vperm.xlu0 %1354, %v1348
          %v1356 = vpop.permute.xlu0 %1355
          %1359 = vset.pattern.permute.xlu0 0
          %1360 = vperm.xlu0 %1359, %v1349
          %v1361 = vpop.permute.xlu0 %1360
          %1364 = vset.pattern.permute.xlu0 0
          %1365 = vperm.xlu0 %1364, %v1350
          %v1366 = vpop.permute.xlu0 %1365
          %1369 = vset.pattern.permute.xlu0 0
          %1370 = vperm.xlu0 %1369, %v1351
          %v1371 = vpop.permute.xlu0 %1370
          %v1373 = vlaneseq
          %v1374 = vshrl.u32 %v1373, 7
          %v1375 = vsub.s32 0, %v1374
          %v1376 = vrot.slane %v1352, %v1375
          %v1377 = vmul.f32 %v1356, %v1376
          %v1378 = vmul.f32 %v1361, %v1376
          %v1379 = vmul.f32 %v1366, %v1376
          %v1380 = vmul.f32 %v1371, %v1376
          %v1381 = vadd.f32 %v1344, %v1377
          %v1382 = vadd.f32 %v1345, %v1378
          %v1383 = vadd.f32 %v1346, %v1379
          %v1384 = vadd.f32 %v1347, %v1380
          %v1385 = vld [vmem:[%s1310 + $0x2] sm:$0xff]
          %v1386 = vld [vmem:[%s1310 + $0xa] sm:$0xff]
          %v1387 = vld [vmem:[%s1310 + $0x12] sm:$0xff]
          %v1388 = vld [vmem:[%s1310 + $0x1a] sm:$0xf]
          %v1389 = vld [vmem:[%s1 + $0x11] sm:$0x1]
          %1391 = vset.pattern.permute.xlu0 0
          %1392 = vperm.xlu0 %1391, %v1385
          %v1393 = vpop.permute.xlu0 %1392
          %1396 = vset.pattern.permute.xlu0 0
          %1397 = vperm.xlu0 %1396, %v1386
          %v1398 = vpop.permute.xlu0 %1397
          %1401 = vset.pattern.permute.xlu0 0
          %1402 = vperm.xlu0 %1401, %v1387
          %v1403 = vpop.permute.xlu0 %1402
          %1406 = vset.pattern.permute.xlu0 0
          %1407 = vperm.xlu0 %1406, %v1388
          %v1408 = vpop.permute.xlu0 %1407
          %v1410 = vlaneseq
          %v1411 = vshrl.u32 %v1410, 7
          %v1412 = vsub.s32 0, %v1411
          %v1413 = vrot.slane %v1389, %v1412
          %v1414 = vmul.f32 %v1393, %v1413
          %v1415 = vmul.f32 %v1398, %v1413
          %v1416 = vmul.f32 %v1403, %v1413
          %v1417 = vmul.f32 %v1408, %v1413
          %v1418 = vadd.f32 %v1381, %v1414
          %v1419 = vadd.f32 %v1382, %v1415
          %v1420 = vadd.f32 %v1383, %v1416
          %v1421 = vadd.f32 %v1384, %v1417
          %v1422 = vld [vmem:[%s1310 + $0x3] sm:$0xff]
          %v1423 = vld [vmem:[%s1310 + $0xb] sm:$0xff]
          %v1424 = vld [vmem:[%s1310 + $0x13] sm:$0xff]
          %v1425 = vld [vmem:[%s1310 + $0x1b] sm:$0xf]
          %v1426 = vld [vmem:[%s1 + $0x12] sm:$0x1]
          %1428 = vset.pattern.permute.xlu0 0
          %1429 = vperm.xlu0 %1428, %v1422
          %v1430 = vpop.permute.xlu0 %1429
          %1433 = vset.pattern.permute.xlu0 0
          %1434 = vperm.xlu0 %1433, %v1423
          %v1435 = vpop.permute.xlu0 %1434
          %1438 = vset.pattern.permute.xlu0 0
          %1439 = vperm.xlu0 %1438, %v1424
          %v1440 = vpop.permute.xlu0 %1439
          %1443 = vset.pattern.permute.xlu0 0
          %1444 = vperm.xlu0 %1443, %v1425
          %v1445 = vpop.permute.xlu0 %1444
          %v1447 = vlaneseq
          %v1448 = vshrl.u32 %v1447, 7
          %v1449 = vsub.s32 0, %v1448
          %v1450 = vrot.slane %v1426, %v1449
          %v1451 = vmul.f32 %v1430, %v1450
          %v1452 = vmul.f32 %v1435, %v1450
          %v1453 = vmul.f32 %v1440, %v1450
          %v1454 = vmul.f32 %v1445, %v1450
          %v1455 = vadd.f32 %v1418, %v1451
          %v1456 = vadd.f32 %v1419, %v1452
          %v1457 = vadd.f32 %v1420, %v1453
          %v1458 = vadd.f32 %v1421, %v1454
          %v1459 = vld [vmem:[%s1310 + $0x4] sm:$0xff]
          %v1460 = vld [vmem:[%s1310 + $0xc] sm:$0xff]
          %v1461 = vld [vmem:[%s1310 + $0x14] sm:$0xff]
          %v1462 = vld [vmem:[%s1310 + $0x1c] sm:$0xf]
          %v1463 = vld [vmem:[%s1 + $0x13] sm:$0x1]
          %1465 = vset.pattern.permute.xlu0 0
          %1466 = vperm.xlu0 %1465, %v1459
          %v1467 = vpop.permute.xlu0 %1466
          %1470 = vset.pattern.permute.xlu0 0
          %1471 = vperm.xlu0 %1470, %v1460
          %v1472 = vpop.permute.xlu0 %1471
          %1475 = vset.pattern.permute.xlu0 0
          %1476 = vperm.xlu0 %1475, %v1461
          %v1477 = vpop.permute.xlu0 %1476
          %1480 = vset.pattern.permute.xlu0 0
          %1481 = vperm.xlu0 %1480, %v1462
          %v1482 = vpop.permute.xlu0 %1481
          %v1484 = vlaneseq
          %v1485 = vshrl.u32 %v1484, 7
          %v1486 = vsub.s32 0, %v1485
          %v1487 = vrot.slane %v1463, %v1486
          %v1488 = vmul.f32 %v1467, %v1487
          %v1489 = vmul.f32 %v1472, %v1487
          %v1490 = vmul.f32 %v1477, %v1487
          %v1491 = vmul.f32 %v1482, %v1487
          %v1492 = vadd.f32 %v1455, %v1488
          %v1493 = vadd.f32 %v1456, %v1489
          %v1494 = vadd.f32 %v1457, %v1490
          %v1495 = vadd.f32 %v1458, %v1491
          %s1496 = sadd.s32 %s740, 4
          %s1497 = smul.u32 %s1496, 32
          %s1498 = scalar_lea.vmem [#allocation2], %s1497
          %v1499 = vld [vmem:[%s1498] sm:$0xff]
          %v1500 = vld [vmem:[%s1498 + $0x8] sm:$0xff]
          %v1501 = vld [vmem:[%s1498 + $0x10] sm:$0xff]
          %v1502 = vld [vmem:[%s1498 + $0x18] sm:$0xf]
          %v1503 = vld [vmem:[%s1 + $0x14] sm:$0x1]
          %1505 = vset.pattern.permute.xlu0 0
          %1506 = vperm.xlu0 %1505, %v1499
          %v1507 = vpop.permute.xlu0 %1506
          %1510 = vset.pattern.permute.xlu0 0
          %1511 = vperm.xlu0 %1510, %v1500
          %v1512 = vpop.permute.xlu0 %1511
          %1515 = vset.pattern.permute.xlu0 0
          %1516 = vperm.xlu0 %1515, %v1501
          %v1517 = vpop.permute.xlu0 %1516
          %1520 = vset.pattern.permute.xlu0 0
          %1521 = vperm.xlu0 %1520, %v1502
          %v1522 = vpop.permute.xlu0 %1521
          %v1524 = vlaneseq
          %v1525 = vshrl.u32 %v1524, 7
          %v1526 = vsub.s32 0, %v1525
          %v1527 = vrot.slane %v1503, %v1526
          %v1528 = vmul.f32 %v1507, %v1527
          %v1529 = vmul.f32 %v1512, %v1527
          %v1530 = vmul.f32 %v1517, %v1527
          %v1531 = vmul.f32 %v1522, %v1527
          %v1532 = vadd.f32 %v1492, %v1528
          %v1533 = vadd.f32 %v1493, %v1529
          %v1534 = vadd.f32 %v1494, %v1530
          %v1535 = vadd.f32 %v1495, %v1531
          %v1536 = vld [vmem:[%s1498 + $0x1] sm:$0xff]
          %v1537 = vld [vmem:[%s1498 + $0x9] sm:$0xff]
          %v1538 = vld [vmem:[%s1498 + $0x11] sm:$0xff]
          %v1539 = vld [vmem:[%s1498 + $0x19] sm:$0xf]
          %v1540 = vld [vmem:[%s1 + $0x15] sm:$0x1]
          %1542 = vset.pattern.permute.xlu0 0
          %1543 = vperm.xlu0 %1542, %v1536
          %v1544 = vpop.permute.xlu0 %1543
          %1547 = vset.pattern.permute.xlu0 0
          %1548 = vperm.xlu0 %1547, %v1537
          %v1549 = vpop.permute.xlu0 %1548
          %1552 = vset.pattern.permute.xlu0 0
          %1553 = vperm.xlu0 %1552, %v1538
          %v1554 = vpop.permute.xlu0 %1553
          %1557 = vset.pattern.permute.xlu0 0
          %1558 = vperm.xlu0 %1557, %v1539
          %v1559 = vpop.permute.xlu0 %1558
          %v1561 = vlaneseq
          %v1562 = vshrl.u32 %v1561, 7
          %v1563 = vsub.s32 0, %v1562
          %v1564 = vrot.slane %v1540, %v1563
          %v1565 = vmul.f32 %v1544, %v1564
          %v1566 = vmul.f32 %v1549, %v1564
          %v1567 = vmul.f32 %v1554, %v1564
          %v1568 = vmul.f32 %v1559, %v1564
          %v1569 = vadd.f32 %v1532, %v1565
          %v1570 = vadd.f32 %v1533, %v1566
          %v1571 = vadd.f32 %v1534, %v1567
          %v1572 = vadd.f32 %v1535, %v1568
          %v1573 = vld [vmem:[%s1498 + $0x2] sm:$0xff]
          %v1574 = vld [vmem:[%s1498 + $0xa] sm:$0xff]
          %v1575 = vld [vmem:[%s1498 + $0x12] sm:$0xff]
          %v1576 = vld [vmem:[%s1498 + $0x1a] sm:$0xf]
          %v1577 = vld [vmem:[%s1 + $0x16] sm:$0x1]
          %1579 = vset.pattern.permute.xlu0 0
          %1580 = vperm.xlu0 %1579, %v1573
          %v1581 = vpop.permute.xlu0 %1580
          %1584 = vset.pattern.permute.xlu0 0
          %1585 = vperm.xlu0 %1584, %v1574
          %v1586 = vpop.permute.xlu0 %1585
          %1589 = vset.pattern.permute.xlu0 0
          %1590 = vperm.xlu0 %1589, %v1575
          %v1591 = vpop.permute.xlu0 %1590
          %1594 = vset.pattern.permute.xlu0 0
          %1595 = vperm.xlu0 %1594, %v1576
          %v1596 = vpop.permute.xlu0 %1595
          %v1598 = vlaneseq
          %v1599 = vshrl.u32 %v1598, 7
          %v1600 = vsub.s32 0, %v1599
          %v1601 = vrot.slane %v1577, %v1600
          %v1602 = vmul.f32 %v1581, %v1601
          %v1603 = vmul.f32 %v1586, %v1601
          %v1604 = vmul.f32 %v1591, %v1601
          %v1605 = vmul.f32 %v1596, %v1601
          %v1606 = vadd.f32 %v1569, %v1602
          %v1607 = vadd.f32 %v1570, %v1603
          %v1608 = vadd.f32 %v1571, %v1604
          %v1609 = vadd.f32 %v1572, %v1605
          %v1610 = vld [vmem:[%s1498 + $0x3] sm:$0xff]
          %v1611 = vld [vmem:[%s1498 + $0xb] sm:$0xff]
          %v1612 = vld [vmem:[%s1498 + $0x13] sm:$0xff]
          %v1613 = vld [vmem:[%s1498 + $0x1b] sm:$0xf]
          %v1614 = vld [vmem:[%s1 + $0x17] sm:$0x1]
          %1616 = vset.pattern.permute.xlu0 0
          %1617 = vperm.xlu0 %1616, %v1610
          %v1618 = vpop.permute.xlu0 %1617
          %1621 = vset.pattern.permute.xlu0 0
          %1622 = vperm.xlu0 %1621, %v1611
          %v1623 = vpop.permute.xlu0 %1622
          %1626 = vset.pattern.permute.xlu0 0
          %1627 = vperm.xlu0 %1626, %v1612
          %v1628 = vpop.permute.xlu0 %1627
          %1631 = vset.pattern.permute.xlu0 0
          %1632 = vperm.xlu0 %1631, %v1613
          %v1633 = vpop.permute.xlu0 %1632
          %v1635 = vlaneseq
          %v1636 = vshrl.u32 %v1635, 7
          %v1637 = vsub.s32 0, %v1636
          %v1638 = vrot.slane %v1614, %v1637
          %v1639 = vmul.f32 %v1618, %v1638
          %v1640 = vmul.f32 %v1623, %v1638
          %v1641 = vmul.f32 %v1628, %v1638
          %v1642 = vmul.f32 %v1633, %v1638
          %v1643 = vadd.f32 %v1606, %v1639
          %v1644 = vadd.f32 %v1607, %v1640
          %v1645 = vadd.f32 %v1608, %v1641
          %v1646 = vadd.f32 %v1609, %v1642
          %v1647 = vld [vmem:[%s1498 + $0x4] sm:$0xff]
          %v1648 = vld [vmem:[%s1498 + $0xc] sm:$0xff]
          %v1649 = vld [vmem:[%s1498 + $0x14] sm:$0xff]
          %v1650 = vld [vmem:[%s1498 + $0x1c] sm:$0xf]
          %v1651 = vld [vmem:[%s1 + $0x18] sm:$0x1]
          %1653 = vset.pattern.permute.xlu0 0
          %1654 = vperm.xlu0 %1653, %v1647
          %v1655 = vpop.permute.xlu0 %1654
          %1658 = vset.pattern.permute.xlu0 0
          %1659 = vperm.xlu0 %1658, %v1648
          %v1660 = vpop.permute.xlu0 %1659
          %1663 = vset.pattern.permute.xlu0 0
          %1664 = vperm.xlu0 %1663, %v1649
          %v1665 = vpop.permute.xlu0 %1664
          %1668 = vset.pattern.permute.xlu0 0
          %1669 = vperm.xlu0 %1668, %v1650
          %v1670 = vpop.permute.xlu0 %1669
          %v1672 = vlaneseq
          %v1673 = vshrl.u32 %v1672, 7
          %v1674 = vsub.s32 0, %v1673
          %v1675 = vrot.slane %v1651, %v1674
          %v1676 = vmul.f32 %v1655, %v1675
          %v1677 = vmul.f32 %v1660, %v1675
          %v1678 = vmul.f32 %v1665, %v1675
          %v1679 = vmul.f32 %v1670, %v1675
          %v1680 = vadd.f32 %v1643, %v1676
          %v1681 = vadd.f32 %v1644, %v1677
          %v1682 = vadd.f32 %v1645, %v1678
          %v1683 = vadd.f32 %v1646, %v1679
          %v1684 = vld [vmem:[%s2] sm:$0x1]
          %v1686 = vlaneseq
          %v1687 = vshrl.u32 %v1686, 7
          %v1688 = vsub.s32 0, %v1687
          %v1689 = vrot.slane %v1684, %v1688
          %v1691 = vadd.f32 %v1680, %v1689
          %v1692 = vadd.f32 %v1681, %v1689
          %v1693 = vadd.f32 %v1682, %v1689
          %v1694 = vadd.f32 %v1683, %v1689
          %v1695 = vmax.f32 %v1691, 0.0
          %v1696 = vmax.f32 %v1692, 0.0
          %v1697 = vmax.f32 %v1693, 0.0
          %v1698 = vmax.f32 %v1694, 0.0
          %s1699 = scalar_lea.vmem [#allocation3], %s745
          %vm1700 = vcmask 48128
          %1701 = vst.msk [vmem:[%s1699] sm:$0xff] %vm1700, %v1695
          %1702 = vst.msk [vmem:[%s1699 + $0x8] sm:$0xff] %vm1700, %v1696
          %1703 = vst.msk [vmem:[%s1699 + $0x10] sm:$0xff] %vm1700, %v1697
          %vm1704 = vcmask 44032
          %1705 = vst.msk [vmem:[%s1699 + $0x18] sm:$0xf] %vm1704, %v1698
        $region69: #{lenet_forward.1} parent=63 // loop_footer
          %s744 = sadd.s32 1, %s740
        $region70: #{lenet_forward.1} parent=63 // loop_footer_branch
          %739 = sbr.rel target = $region66
        $region71: #{lenet_forward.1} parent=63 // loop_exit
          _
        loop: start=0, step=1, limit=14
        $region72: #{lenet_forward.1} parent=63 // loop_pre_header
          _
        $region73: #{lenet_forward.1} parent=63 // loop_header
          %s1707 = sphi 0, %s1711
          %p1708 = scmp.ge.s32.totalorder %s1707, 14
        $region74: #{lenet_forward.1} parent=63 // loop_header_branch
          %1710 = sbr.rel (%p1708) target = $region78
        $region75: #{lenet_forward.1} parent=63 // loop_body
          %s1712 = smul.u32 %s1707, 2
          %s1713 = smul.u32 %s1712, 32
          %s1714 = scalar_lea.vmem [#allocation3], %s1713
          %v1715 = vld [vmem:[%s1714] sm:$0xff]
          %v1716 = vld [vmem:[%s1714 + $0x8] sm:$0xff]
          %v1717 = vld [vmem:[%s1714 + $0x10] sm:$0xff]
          %v1718 = vld [vmem:[%s1714 + $0x18] sm:$0xf]
          %s1719 = sadd.s32 %s1712, 1
          %s1720 = smul.u32 %s1719, 32
          %s1721 = scalar_lea.vmem [#allocation3], %s1720
          %v1722 = vld [vmem:[%s1721] sm:$0xff]
          %v1723 = vld [vmem:[%s1721 + $0x8] sm:$0xff]
          %v1724 = vld [vmem:[%s1721 + $0x10] sm:$0xff]
          %v1725 = vld [vmem:[%s1721 + $0x18] sm:$0xf]
          %v1726 = vmax.f32 %v1715, %v1722
          %v1727 = vmax.f32 %v1716, %v1723
          %v1728 = vmax.f32 %v1717, %v1724
          %v1729 = vmax.f32 %v1718, %v1725
          %v1731 = vrot.slane %v1726, 1
          %v1733 = vmax.f32 %v1726, %v1731
          %v1735 = vrot.slane %v1727, 1
          %v1737 = vmax.f32 %v1727, %v1735
          %v1739 = vrot.slane %v1728, 1
          %v1741 = vmax.f32 %v1728, %v1739
          %v1743 = vrot.slane %v1729, 1
          %v1745 = vmax.f32 %v1729, %v1743
          %v1747 = vrot.slane %v1733, 1
          %v1749 = vrot.slane %v1733, 2
          %v1751 = vrot.slane %v1733, 3
          %v1754 = vrot.slane %v1737, 4
          %v1756 = vrot.slane %v1737, 5
          %v1758 = vrot.slane %v1737, 6
          %v1760 = vrot.slane %v1737, 7
          %v1763 = vrot.slane %v1741, 1
          %v1765 = vrot.slane %v1741, 2
          %v1767 = vrot.slane %v1741, 3
          %v1770 = vrot.slane %v1745, 4
          %v1772 = vrot.slane %v1745, 5
          %vm1774 = vcmask 1040384
          %v1775 = vsel %vm1774, %v1733, %v1747
          %vm1776 = vcmask 1041408
          %v1777 = vsel %vm1776, %v1775, %v1749
          %vm1778 = vcmask 1042432
          %v1779 = vsel %vm1778, %v1777, %v1751
          %vm1780 = vcmask 1043456
          %v1781 = vsel %vm1780, %v1779, %v1754
          %vm1782 = vcmask 1044480
          %v1783 = vsel %vm1782, %v1781, %v1756
          %vm1784 = vcmask 1045504
          %v1785 = vsel %vm1784, %v1783, %v1758
          %vm1786 = vcmask 1046528
          %v1787 = vsel %vm1786, %v1785, %v1760
          %v1788 = vsel %vm1774, %v1741, %v1763
          %v1789 = vsel %vm1776, %v1788, %v1765
          %v1790 = vsel %vm1778, %v1789, %v1767
          %v1791 = vsel %vm1780, %v1790, %v1770
          %v1792 = vsel %vm1782, %v1791, %v1772
          %s1793 = smul.u32 %s1707, 16
          %s1794 = scalar_lea.vmem [#allocation4], %s1793
          %vm1795 = vcmask 48128
          %1796 = vst.msk [vmem:[%s1794] sm:$0xff] %vm1795, %v1787
          %vm1797 = vcmask 46080
          %1798 = vst.msk [vmem:[%s1794 + $0x8] sm:$0x3f] %vm1797, %v1792
        $region76: #{lenet_forward.1} parent=63 // loop_footer
          %s1711 = sadd.s32 1, %s1707
        $region77: #{lenet_forward.1} parent=63 // loop_footer_branch
          %1706 = sbr.rel target = $region73
        $region78: #{lenet_forward.1} parent=63 // loop_exit
          _
        loop: start=0, step=1, limit=10
        $region79: #{lenet_forward.1} parent=63 // loop_pre_header
          _
        $region80: #{lenet_forward.1} parent=63 // loop_header
          %s1800 = sphi 0, %s1804
          %p1801 = scmp.ge.s32.totalorder %s1800, 10
        $region81: #{lenet_forward.1} parent=63 // loop_header_branch
          %1803 = sbr.rel (%p1801) target = $region85
        $region82: #{lenet_forward.1} parent=63 // loop_body
          %s1805 = smul.u32 %s1800, 16
          %s1806 = scalar_lea.vmem [#allocation4], %s1805
          %v1807 = vld [vmem:[%s1806] sm:$0xff]
          %v1808 = vld [vmem:[%s1806 + $0x8] sm:$0x3]
          %v1809 = vld [vmem:[%s3] sm:$0x3f]
          %v1810 = vld [vmem:[%s1806 + $0x1] sm:$0xff]
          %v1811 = vld [vmem:[%s1806 + $0x9] sm:$0x3]
          %s1812 = scalar_lea.vmem %s3, 8
          %v1813 = vld [vmem:[%s1812] sm:$0x3f]
          %vm1814 = vcmask 48128
          %v1816 = vsel %vm1814, %v1810, 0
          %v1819 = vsel %vm1814, %v1811, 0
          %vm1821 = vcmask 1045504
          %v1823 = vsel %vm1821, %v1813, 0
          %1825 = vmatprep.subr.mxu0 0.0
          %1826 = vmatpush1.msra.mxu0 %v1823
          %1827 = vmatprep.subr.mxu0 0.0
          %1828 = vmatpush1.msra.mxu0 0.0
          %1829 = vmatprep.subr.mxu0 0.0
          %1830 = vmatpush1.msra.mxu0 0.0
          %1831 = vmatprep.subr.mxu0 0.0
          %1832 = vmatpush1.msra.mxu0 0.0
          %1833 = vmatprep.subr.mxu0 0.0
          %1834 = vmatpush1.msra.mxu0 0.0
          %1835 = vmatprep.subr.mxu0 0.0
          %1836 = vmatpush1.msra.mxu0 0.0
          %1837 = vmatprep.subr.mxu0 0.0
          %1838 = vmatpush1.msra.mxu0 0.0
          %1839 = vmatprep.subr.mxu0 0.0
          %1840 = vmatpush1.msra.mxu0 0.0
          %1841 = vmatprep.subr.mxu0 0.0
          %1842 = vmatpush1.msra.mxu0 0.0
          %1843 = vmatprep.subr.mxu0 0.0
          %1844 = vmatpush1.msra.mxu0 0.0
          %1845 = vmatprep.subr.mxu0 0.0
          %1846 = vmatpush1.msra.mxu0 0.0
          %1847 = vmatprep.subr.mxu0 0.0
          %1848 = vmatpush1.msra.mxu0 0.0
          %1849 = vmatprep.subr.mxu0 0.0
          %1850 = vmatpush1.msra.mxu0 0.0
          %1851 = vmatprep.subr.mxu0 0.0
          %1852 = vmatpush1.msra.mxu0 0.0
          %1853 = vmatprep.subr.mxu0 0.0
          %1854 = vmatpush1.msra.mxu0 0.0
          %1855 = vmatprep.subr.mxu0 0.0
          %1856 = vmatpush1.msra.mxu0 0.0
          %1857 = vmatprep.subr.mxu0 0.0
          %1858 = vmatpush1.msra.mxu0 0.0
          %1859 = vmatprep.subr.mxu0 0.0
          %1860 = vmatpush1.msra.mxu0 0.0
          %1861 = vmatprep.subr.mxu0 0.0
          %1862 = vmatpush1.msra.mxu0 0.0
          %1863 = vmatprep.subr.mxu0 0.0
          %1864 = vmatpush1.msra.mxu0 0.0
          %1865 = vmatprep.subr.mxu0 0.0
          %1866 = vmatpush1.msra.mxu0 0.0
          %1867 = vmatprep.subr.mxu0 0.0
          %1868 = vmatpush1.msra.mxu0 0.0
          %1869 = vmatprep.subr.mxu0 0.0
          %1870 = vmatpush1.msra.mxu0 0.0
          %1871 = vmatprep.subr.mxu0 0.0
          %1872 = vmatpush1.msra.mxu0 0.0
          %1873 = vmatprep.subr.mxu0 0.0
          %1874 = vmatpush1.msra.mxu0 0.0
          %1875 = vmatprep.subr.mxu0 0.0
          %1876 = vmatpush1.msra.mxu0 0.0
          %1877 = vmatprep.subr.mxu0 0.0
          %1878 = vmatpush1.msra.mxu0 0.0
          %1879 = vmatprep.subr.mxu0 0.0
          %1880 = vmatpush1.msra.mxu0 0.0
          %1881 = vmatprep.subr.mxu0 0.0
          %1882 = vmatpush1.msra.mxu0 0.0
          %1883 = vmatprep.subr.mxu0 0.0
          %1884 = vmatpush1.msra.mxu0 0.0
          %1885 = vmatprep.subr.mxu0 0.0
          %1886 = vmatpush1.msra.mxu0 0.0
          %1887 = vmatprep.subr.mxu0 0.0
          %1888 = vmatpush1.msra.mxu0 0.0
          %1889 = vmatprep.mubr.f32.mxu0 0.0
          %1890 = vmatmul.mubr.f32.gmra.mrb[0].mxu0 %v1816
          %v1891 = vpop.f32.mrb[0].mxu0
          %v1892 = vadd.f32 0.0, %v1891
          %v1893 = vpop.f32.mrb[0].mxu0
          %1894 = vmatprep.mubr.f32.mxu0 0.0
          %1895 = vmatmul.mubr.f32.gmra.mrb[0].mxu0 %v1819
          %v1896 = vpop.f32.mrb[0].mxu0
          %v1897 = vadd.f32 0.0, %v1896
          %v1898 = vpop.f32.mrb[0].mxu0
          %1899 = vdwg.mxu0
          %v1901 = vsel %vm1814, %v1807, 0
          %v1904 = vsel %vm1814, %v1808, 0
          %v1907 = vsel %vm1821, %v1809, 0
          %1909 = vmatprep.subr.mxu0 0.0
          %1910 = vmatpush1.msra.mxu0 %v1907
          %1911 = vmatprep.subr.mxu0 0.0
          %1912 = vmatpush1.msra.mxu0 0.0
          %1913 = vmatprep.subr.mxu0 0.0
          %1914 = vmatpush1.msra.mxu0 0.0
          %1915 = vmatprep.subr.mxu0 0.0
          %1916 = vmatpush1.msra.mxu0 0.0
          %1917 = vmatprep.subr.mxu0 0.0
          %1918 = vmatpush1.msra.mxu0 0.0
          %1919 = vmatprep.subr.mxu0 0.0
          %1920 = vmatpush1.msra.mxu0 0.0
          %1921 = vmatprep.subr.mxu0 0.0
          %1922 = vmatpush1.msra.mxu0 0.0
          %1923 = vmatprep.subr.mxu0 0.0
          %1924 = vmatpush1.msra.mxu0 0.0
          %1925 = vmatprep.subr.mxu0 0.0
          %1926 = vmatpush1.msra.mxu0 0.0
          %1927 = vmatprep.subr.mxu0 0.0
          %1928 = vmatpush1.msra.mxu0 0.0
          %1929 = vmatprep.subr.mxu0 0.0
          %1930 = vmatpush1.msra.mxu0 0.0
          %1931 = vmatprep.subr.mxu0 0.0
          %1932 = vmatpush1.msra.mxu0 0.0
          %1933 = vmatprep.subr.mxu0 0.0
          %1934 = vmatpush1.msra.mxu0 0.0
          %1935 = vmatprep.subr.mxu0 0.0
          %1936 = vmatpush1.msra.mxu0 0.0
          %1937 = vmatprep.subr.mxu0 0.0
          %1938 = vmatpush1.msra.mxu0 0.0
          %1939 = vmatprep.subr.mxu0 0.0
          %1940 = vmatpush1.msra.mxu0 0.0
          %1941 = vmatprep.subr.mxu0 0.0
          %1942 = vmatpush1.msra.mxu0 0.0
          %1943 = vmatprep.subr.mxu0 0.0
          %1944 = vmatpush1.msra.mxu0 0.0
          %1945 = vmatprep.subr.mxu0 0.0
          %1946 = vmatpush1.msra.mxu0 0.0
          %1947 = vmatprep.subr.mxu0 0.0
          %1948 = vmatpush1.msra.mxu0 0.0
          %1949 = vmatprep.subr.mxu0 0.0
          %1950 = vmatpush1.msra.mxu0 0.0
          %1951 = vmatprep.subr.mxu0 0.0
          %1952 = vmatpush1.msra.mxu0 0.0
          %1953 = vmatprep.subr.mxu0 0.0
          %1954 = vmatpush1.msra.mxu0 0.0
          %1955 = vmatprep.subr.mxu0 0.0
          %1956 = vmatpush1.msra.mxu0 0.0
          %1957 = vmatprep.subr.mxu0 0.0
          %1958 = vmatpush1.msra.mxu0 0.0
          %1959 = vmatprep.subr.mxu0 0.0
          %1960 = vmatpush1.msra.mxu0 0.0
          %1961 = vmatprep.subr.mxu0 0.0
          %1962 = vmatpush1.msra.mxu0 0.0
          %1963 = vmatprep.subr.mxu0 0.0
          %1964 = vmatpush1.msra.mxu0 0.0
          %1965 = vmatprep.subr.mxu0 0.0
          %1966 = vmatpush1.msra.mxu0 0.0
          %1967 = vmatprep.subr.mxu0 0.0
          %1968 = vmatpush1.msra.mxu0 0.0
          %1969 = vmatprep.subr.mxu0 0.0
          %1970 = vmatpush1.msra.mxu0 0.0
          %1971 = vmatprep.subr.mxu0 0.0
          %1972 = vmatpush1.msra.mxu0 0.0
          %1973 = vmatprep.mubr.f32.mxu0 0.0
          %1974 = vmatmul.mubr.f32.gmra.mrb[0].mxu0 %v1901
          %v1975 = vpop.f32.mrb[0].mxu0
          %v1976 = vadd.f32 %v1892, %v1975
          %v1977 = vpop.f32.mrb[0].mxu0
          %1978 = vmatprep.mubr.f32.mxu0 0.0
          %1979 = vmatmul.mubr.f32.gmra.mrb[0].mxu0 %v1904
          %v1980 = vpop.f32.mrb[0].mxu0
          %v1981 = vadd.f32 %v1897, %v1980
          %v1982 = vpop.f32.mrb[0].mxu0
          %1983 = vdwg.mxu0
          %v1984 = vld [vmem:[%s1806 + $0x2] sm:$0xff]
          %v1985 = vld [vmem:[%s1806 + $0xa] sm:$0x3]
          %s1986 = scalar_lea.vmem %s3, 16
          %v1987 = vld [vmem:[%s1986] sm:$0x3f]
          %v1989 = vsel %vm1814, %v1984, 0
          %v1992 = vsel %vm1814, %v1985, 0
          %v1995 = vsel %vm1821, %v1987, 0
          %1997 = vmatprep.subr.mxu0 0.0
          %1998 = vmatpush1.msra.mxu0 %v1995
          %1999 = vmatprep.subr.mxu0 0.0
          %2000 = vmatpush1.msra.mxu0 0.0
          %2001 = vmatprep.subr.mxu0 0.0
          %2002 = vmatpush1.msra.mxu0 0.0
          %2003 = vmatprep.subr.mxu0 0.0
          %2004 = vmatpush1.msra.mxu0 0.0
          %2005 = vmatprep.subr.mxu0 0.0
          %2006 = vmatpush1.msra.mxu0 0.0
          %2007 = vmatprep.subr.mxu0 0.0
          %2008 = vmatpush1.msra.mxu0 0.0
          %2009 = vmatprep.subr.mxu0 0.0
          %2010 = vmatpush1.msra.mxu0 0.0
          %2011 = vmatprep.subr.mxu0 0.0
          %2012 = vmatpush1.msra.mxu0 0.0
          %2013 = vmatprep.subr.mxu0 0.0
          %2014 = vmatpush1.msra.mxu0 0.0
          %2015 = vmatprep.subr.mxu0 0.0
          %2016 = vmatpush1.msra.mxu0 0.0
          %2017 = vmatprep.subr.mxu0 0.0
          %2018 = vmatpush1.msra.mxu0 0.0
          %2019 = vmatprep.subr.mxu0 0.0
          %2020 = vmatpush1.msra.mxu0 0.0
          %2021 = vmatprep.subr.mxu0 0.0
          %2022 = vmatpush1.msra.mxu0 0.0
          %2023 = vmatprep.subr.mxu0 0.0
          %2024 = vmatpush1.msra.mxu0 0.0
          %2025 = vmatprep.subr.mxu0 0.0
          %2026 = vmatpush1.msra.mxu0 0.0
          %2027 = vmatprep.subr.mxu0 0.0
          %2028 = vmatpush1.msra.mxu0 0.0
          %2029 = vmatprep.subr.mxu0 0.0
          %2030 = vmatpush1.msra.mxu0 0.0
          %2031 = vmatprep.subr.mxu0 0.0
          %2032 = vmatpush1.msra.mxu0 0.0
          %2033 = vmatprep.subr.mxu0 0.0
          %2034 = vmatpush1.msra.mxu0 0.0
          %2035 = vmatprep.subr.mxu0 0.0
          %2036 = vmatpush1.msra.mxu0 0.0
          %2037 = vmatprep.subr.mxu0 0.0
          %2038 = vmatpush1.msra.mxu0 0.0
          %2039 = vmatprep.subr.mxu0 0.0
          %2040 = vmatpush1.msra.mxu0 0.0
          %2041 = vmatprep.subr.mxu0 0.0
          %2042 = vmatpush1.msra.mxu0 0.0
          %2043 = vmatprep.subr.mxu0 0.0
          %2044 = vmatpush1.msra.mxu0 0.0
          %2045 = vmatprep.subr.mxu0 0.0
          %2046 = vmatpush1.msra.mxu0 0.0
          %2047 = vmatprep.subr.mxu0 0.0
          %2048 = vmatpush1.msra.mxu0 0.0
          %2049 = vmatprep.subr.mxu0 0.0
          %2050 = vmatpush1.msra.mxu0 0.0
          %2051 = vmatprep.subr.mxu0 0.0
          %2052 = vmatpush1.msra.mxu0 0.0
          %2053 = vmatprep.subr.mxu0 0.0
          %2054 = vmatpush1.msra.mxu0 0.0
          %2055 = vmatprep.subr.mxu0 0.0
          %2056 = vmatpush1.msra.mxu0 0.0
          %2057 = vmatprep.subr.mxu0 0.0
          %2058 = vmatpush1.msra.mxu0 0.0
          %2059 = vmatprep.subr.mxu0 0.0
          %2060 = vmatpush1.msra.mxu0 0.0
          %2061 = vmatprep.mubr.f32.mxu0 0.0
          %2062 = vmatmul.mubr.f32.gmra.mrb[0].mxu0 %v1989
          %v2063 = vpop.f32.mrb[0].mxu0
          %v2064 = vadd.f32 0.0, %v2063
          %v2065 = vpop.f32.mrb[0].mxu0
          %2066 = vmatprep.mubr.f32.mxu0 0.0
          %2067 = vmatmul.mubr.f32.gmra.mrb[0].mxu0 %v1992
          %v2068 = vpop.f32.mrb[0].mxu0
          %v2069 = vadd.f32 0.0, %v2068
          %v2070 = vpop.f32.mrb[0].mxu0
          %2071 = vdwg.mxu0
          %v2072 = vadd.f32 %v1976, %v2064
          %v2073 = vadd.f32 %v1981, %v2069
          %v2074 = vld [vmem:[%s1806 + $0x3] sm:$0xff]
          %v2075 = vld [vmem:[%s1806 + $0xb] sm:$0x3]
          %s2076 = scalar_lea.vmem %s3, 24
          %v2077 = vld [vmem:[%s2076] sm:$0x3f]
          %v2079 = vsel %vm1814, %v2074, 0
          %v2082 = vsel %vm1814, %v2075, 0
          %v2085 = vsel %vm1821, %v2077, 0
          %2087 = vmatprep.subr.mxu0 0.0
          %2088 = vmatpush1.msra.mxu0 %v2085
          %2089 = vmatprep.subr.mxu0 0.0
          %2090 = vmatpush1.msra.mxu0 0.0
          %2091 = vmatprep.subr.mxu0 0.0
          %2092 = vmatpush1.msra.mxu0 0.0
          %2093 = vmatprep.subr.mxu0 0.0
          %2094 = vmatpush1.msra.mxu0 0.0
          %2095 = vmatprep.subr.mxu0 0.0
          %2096 = vmatpush1.msra.mxu0 0.0
          %2097 = vmatprep.subr.mxu0 0.0
          %2098 = vmatpush1.msra.mxu0 0.0
          %2099 = vmatprep.subr.mxu0 0.0
          %2100 = vmatpush1.msra.mxu0 0.0
          %2101 = vmatprep.subr.mxu0 0.0
          %2102 = vmatpush1.msra.mxu0 0.0
          %2103 = vmatprep.subr.mxu0 0.0
          %2104 = vmatpush1.msra.mxu0 0.0
          %2105 = vmatprep.subr.mxu0 0.0
          %2106 = vmatpush1.msra.mxu0 0.0
          %2107 = vmatprep.subr.mxu0 0.0
          %2108 = vmatpush1.msra.mxu0 0.0
          %2109 = vmatprep.subr.mxu0 0.0
          %2110 = vmatpush1.msra.mxu0 0.0
          %2111 = vmatprep.subr.mxu0 0.0
          %2112 = vmatpush1.msra.mxu0 0.0
          %2113 = vmatprep.subr.mxu0 0.0
          %2114 = vmatpush1.msra.mxu0 0.0
          %2115 = vmatprep.subr.mxu0 0.0
          %2116 = vmatpush1.msra.mxu0 0.0
          %2117 = vmatprep.subr.mxu0 0.0
          %2118 = vmatpush1.msra.mxu0 0.0
          %2119 = vmatprep.subr.mxu0 0.0
          %2120 = vmatpush1.msra.mxu0 0.0
          %2121 = vmatprep.subr.mxu0 0.0
          %2122 = vmatpush1.msra.mxu0 0.0
          %2123 = vmatprep.subr.mxu0 0.0
          %2124 = vmatpush1.msra.mxu0 0.0
          %2125 = vmatprep.subr.mxu0 0.0
          %2126 = vmatpush1.msra.mxu0 0.0
          %2127 = vmatprep.subr.mxu0 0.0
          %2128 = vmatpush1.msra.mxu0 0.0
          %2129 = vmatprep.subr.mxu0 0.0
          %2130 = vmatpush1.msra.mxu0 0.0
          %2131 = vmatprep.subr.mxu0 0.0
          %2132 = vmatpush1.msra.mxu0 0.0
          %2133 = vmatprep.subr.mxu0 0.0
          %2134 = vmatpush1.msra.mxu0 0.0
          %2135 = vmatprep.subr.mxu0 0.0
          %2136 = vmatpush1.msra.mxu0 0.0
          %2137 = vmatprep.subr.mxu0 0.0
          %2138 = vmatpush1.msra.mxu0 0.0
          %2139 = vmatprep.subr.mxu0 0.0
          %2140 = vmatpush1.msra.mxu0 0.0
          %2141 = vmatprep.subr.mxu0 0.0
          %2142 = vmatpush1.msra.mxu0 0.0
          %2143 = vmatprep.subr.mxu0 0.0
          %2144 = vmatpush1.msra.mxu0 0.0
          %2145 = vmatprep.subr.mxu0 0.0
          %2146 = vmatpush1.msra.mxu0 0.0
          %2147 = vmatprep.subr.mxu0 0.0
          %2148 = vmatpush1.msra.mxu0 0.0
          %2149 = vmatprep.subr.mxu0 0.0
          %2150 = vmatpush1.msra.mxu0 0.0
          %2151 = vmatprep.mubr.f32.mxu0 0.0
          %2152 = vmatmul.mubr.f32.gmra.mrb[0].mxu0 %v2079
          %v2153 = vpop.f32.mrb[0].mxu0
          %v2154 = vadd.f32 0.0, %v2153
          %v2155 = vpop.f32.mrb[0].mxu0
          %2156 = vmatprep.mubr.f32.mxu0 0.0
          %2157 = vmatmul.mubr.f32.gmra.mrb[0].mxu0 %v2082
          %v2158 = vpop.f32.mrb[0].mxu0
          %v2159 = vadd.f32 0.0, %v2158
          %v2160 = vpop.f32.mrb[0].mxu0
          %2161 = vdwg.mxu0
          %v2162 = vadd.f32 %v2072, %v2154
          %v2163 = vadd.f32 %v2073, %v2159
          %v2164 = vld [vmem:[%s1806 + $0x4] sm:$0xff]
          %v2165 = vld [vmem:[%s1806 + $0xc] sm:$0x3]
          %s2166 = scalar_lea.vmem %s3, 32
          %v2167 = vld [vmem:[%s2166] sm:$0x3f]
          %v2169 = vsel %vm1814, %v2164, 0
          %v2172 = vsel %vm1814, %v2165, 0
          %v2175 = vsel %vm1821, %v2167, 0
          %2177 = vmatprep.subr.mxu0 0.0
          %2178 = vmatpush1.msra.mxu0 %v2175
          %2179 = vmatprep.subr.mxu0 0.0
          %2180 = vmatpush1.msra.mxu0 0.0
          %2181 = vmatprep.subr.mxu0 0.0
          %2182 = vmatpush1.msra.mxu0 0.0
          %2183 = vmatprep.subr.mxu0 0.0
          %2184 = vmatpush1.msra.mxu0 0.0
          %2185 = vmatprep.subr.mxu0 0.0
          %2186 = vmatpush1.msra.mxu0 0.0
          %2187 = vmatprep.subr.mxu0 0.0
          %2188 = vmatpush1.msra.mxu0 0.0
          %2189 = vmatprep.subr.mxu0 0.0
          %2190 = vmatpush1.msra.mxu0 0.0
          %2191 = vmatprep.subr.mxu0 0.0
          %2192 = vmatpush1.msra.mxu0 0.0
          %2193 = vmatprep.subr.mxu0 0.0
          %2194 = vmatpush1.msra.mxu0 0.0
          %2195 = vmatprep.subr.mxu0 0.0
          %2196 = vmatpush1.msra.mxu0 0.0
          %2197 = vmatprep.subr.mxu0 0.0
          %2198 = vmatpush1.msra.mxu0 0.0
          %2199 = vmatprep.subr.mxu0 0.0
          %2200 = vmatpush1.msra.mxu0 0.0
          %2201 = vmatprep.subr.mxu0 0.0
          %2202 = vmatpush1.msra.mxu0 0.0
          %2203 = vmatprep.subr.mxu0 0.0
          %2204 = vmatpush1.msra.mxu0 0.0
          %2205 = vmatprep.subr.mxu0 0.0
          %2206 = vmatpush1.msra.mxu0 0.0
          %2207 = vmatprep.subr.mxu0 0.0
          %2208 = vmatpush1.msra.mxu0 0.0
          %2209 = vmatprep.subr.mxu0 0.0
          %2210 = vmatpush1.msra.mxu0 0.0
          %2211 = vmatprep.subr.mxu0 0.0
          %2212 = vmatpush1.msra.mxu0 0.0
          %2213 = vmatprep.subr.mxu0 0.0
          %2214 = vmatpush1.msra.mxu0 0.0
          %2215 = vmatprep.subr.mxu0 0.0
          %2216 = vmatpush1.msra.mxu0 0.0
          %2217 = vmatprep.subr.mxu0 0.0
          %2218 = vmatpush1.msra.mxu0 0.0
          %2219 = vmatprep.subr.mxu0 0.0
          %2220 = vmatpush1.msra.mxu0 0.0
          %2221 = vmatprep.subr.mxu0 0.0
          %2222 = vmatpush1.msra.mxu0 0.0
          %2223 = vmatprep.subr.mxu0 0.0
          %2224 = vmatpush1.msra.mxu0 0.0
          %2225 = vmatprep.subr.mxu0 0.0
          %2226 = vmatpush1.msra.mxu0 0.0
          %2227 = vmatprep.subr.mxu0 0.0
          %2228 = vmatpush1.msra.mxu0 0.0
          %2229 = vmatprep.subr.mxu0 0.0
          %2230 = vmatpush1.msra.mxu0 0.0
          %2231 = vmatprep.subr.mxu0 0.0
          %2232 = vmatpush1.msra.mxu0 0.0
          %2233 = vmatprep.subr.mxu0 0.0
          %2234 = vmatpush1.msra.mxu0 0.0
          %2235 = vmatprep.subr.mxu0 0.0
          %2236 = vmatpush1.msra.mxu0 0.0
          %2237 = vmatprep.subr.mxu0 0.0
          %2238 = vmatpush1.msra.mxu0 0.0
          %2239 = vmatprep.subr.mxu0 0.0
          %2240 = vmatpush1.msra.mxu0 0.0
          %2241 = vmatprep.mubr.f32.mxu0 0.0
          %2242 = vmatmul.mubr.f32.gmra.mrb[0].mxu0 %v2169
          %v2243 = vpop.f32.mrb[0].mxu0
          %v2244 = vadd.f32 0.0, %v2243
          %v2245 = vpop.f32.mrb[0].mxu0
          %2246 = vmatprep.mubr.f32.mxu0 0.0
          %2247 = vmatmul.mubr.f32.gmra.mrb[0].mxu0 %v2172
          %v2248 = vpop.f32.mrb[0].mxu0
          %v2249 = vadd.f32 0.0, %v2248
          %v2250 = vpop.f32.mrb[0].mxu0
          %2251 = vdwg.mxu0
          %v2252 = vadd.f32 %v2162, %v2244
          %v2253 = vadd.f32 %v2163, %v2249
          %s2254 = sadd.s32 %s1800, 1
          %s2255 = smul.u32 %s2254, 16
          %s2256 = scalar_lea.vmem [#allocation4], %s2255
          %v2257 = vld [vmem:[%s2256] sm:$0xff]
          %v2258 = vld [vmem:[%s2256 + $0x8] sm:$0x3]
          %s2259 = scalar_lea.vmem %s3, 40
          %v2260 = vld [vmem:[%s2259] sm:$0x3f]
          %v2262 = vsel %vm1814, %v2257, 0
          %v2265 = vsel %vm1814, %v2258, 0
          %v2268 = vsel %vm1821, %v2260, 0
          %2270 = vmatprep.subr.mxu0 0.0
          %2271 = vmatpush1.msra.mxu0 %v2268
          %2272 = vmatprep.subr.mxu0 0.0
          %2273 = vmatpush1.msra.mxu0 0.0
          %2274 = vmatprep.subr.mxu0 0.0
          %2275 = vmatpush1.msra.mxu0 0.0
          %2276 = vmatprep.subr.mxu0 0.0
          %2277 = vmatpush1.msra.mxu0 0.0
          %2278 = vmatprep.subr.mxu0 0.0
          %2279 = vmatpush1.msra.mxu0 0.0
          %2280 = vmatprep.subr.mxu0 0.0
          %2281 = vmatpush1.msra.mxu0 0.0
          %2282 = vmatprep.subr.mxu0 0.0
          %2283 = vmatpush1.msra.mxu0 0.0
          %2284 = vmatprep.subr.mxu0 0.0
          %2285 = vmatpush1.msra.mxu0 0.0
          %2286 = vmatprep.subr.mxu0 0.0
          %2287 = vmatpush1.msra.mxu0 0.0
          %2288 = vmatprep.subr.mxu0 0.0
          %2289 = vmatpush1.msra.mxu0 0.0
          %2290 = vmatprep.subr.mxu0 0.0
          %2291 = vmatpush1.msra.mxu0 0.0
          %2292 = vmatprep.subr.mxu0 0.0
          %2293 = vmatpush1.msra.mxu0 0.0
          %2294 = vmatprep.subr.mxu0 0.0
          %2295 = vmatpush1.msra.mxu0 0.0
          %2296 = vmatprep.subr.mxu0 0.0
          %2297 = vmatpush1.msra.mxu0 0.0
          %2298 = vmatprep.subr.mxu0 0.0
          %2299 = vmatpush1.msra.mxu0 0.0
          %2300 = vmatprep.subr.mxu0 0.0
          %2301 = vmatpush1.msra.mxu0 0.0
          %2302 = vmatprep.subr.mxu0 0.0
          %2303 = vmatpush1.msra.mxu0 0.0
          %2304 = vmatprep.subr.mxu0 0.0
          %2305 = vmatpush1.msra.mxu0 0.0
          %2306 = vmatprep.subr.mxu0 0.0
          %2307 = vmatpush1.msra.mxu0 0.0
          %2308 = vmatprep.subr.mxu0 0.0
          %2309 = vmatpush1.msra.mxu0 0.0
          %2310 = vmatprep.subr.mxu0 0.0
          %2311 = vmatpush1.msra.mxu0 0.0
          %2312 = vmatprep.subr.mxu0 0.0
          %2313 = vmatpush1.msra.mxu0 0.0
          %2314 = vmatprep.subr.mxu0 0.0
          %2315 = vmatpush1.msra.mxu0 0.0
          %2316 = vmatprep.subr.mxu0 0.0
          %2317 = vmatpush1.msra.mxu0 0.0
          %2318 = vmatprep.subr.mxu0 0.0
          %2319 = vmatpush1.msra.mxu0 0.0
          %2320 = vmatprep.subr.mxu0 0.0
          %2321 = vmatpush1.msra.mxu0 0.0
          %2322 = vmatprep.subr.mxu0 0.0
          %2323 = vmatpush1.msra.mxu0 0.0
          %2324 = vmatprep.subr.mxu0 0.0
          %2325 = vmatpush1.msra.mxu0 0.0
          %2326 = vmatprep.subr.mxu0 0.0
          %2327 = vmatpush1.msra.mxu0 0.0
          %2328 = vmatprep.subr.mxu0 0.0
          %2329 = vmatpush1.msra.mxu0 0.0
          %2330 = vmatprep.subr.mxu0 0.0
          %2331 = vmatpush1.msra.mxu0 0.0
          %2332 = vmatprep.subr.mxu0 0.0
          %2333 = vmatpush1.msra.mxu0 0.0
          %2334 = vmatprep.mubr.f32.mxu0 0.0
          %2335 = vmatmul.mubr.f32.gmra.mrb[0].mxu0 %v2262
          %v2336 = vpop.f32.mrb[0].mxu0
          %v2337 = vadd.f32 0.0, %v2336
          %v2338 = vpop.f32.mrb[0].mxu0
          %2339 = vmatprep.mubr.f32.mxu0 0.0
          %2340 = vmatmul.mubr.f32.gmra.mrb[0].mxu0 %v2265
          %v2341 = vpop.f32.mrb[0].mxu0
          %v2342 = vadd.f32 0.0, %v2341
          %v2343 = vpop.f32.mrb[0].mxu0
          %2344 = vdwg.mxu0
          %v2345 = vadd.f32 %v2252, %v2337
          %v2346 = vadd.f32 %v2253, %v2342
          %v2347 = vld [vmem:[%s2256 + $0x1] sm:$0xff]
          %v2348 = vld [vmem:[%s2256 + $0x9] sm:$0x3]
          %s2349 = scalar_lea.vmem %s3, 48
          %v2350 = vld [vmem:[%s2349] sm:$0x3f]
          %v2352 = vsel %vm1814, %v2347, 0
          %v2355 = vsel %vm1814, %v2348, 0
          %v2358 = vsel %vm1821, %v2350, 0
          %2360 = vmatprep.subr.mxu0 0.0
          %2361 = vmatpush1.msra.mxu0 %v2358
          %2362 = vmatprep.subr.mxu0 0.0
          %2363 = vmatpush1.msra.mxu0 0.0
          %2364 = vmatprep.subr.mxu0 0.0
          %2365 = vmatpush1.msra.mxu0 0.0
          %2366 = vmatprep.subr.mxu0 0.0
          %2367 = vmatpush1.msra.mxu0 0.0
          %2368 = vmatprep.subr.mxu0 0.0
          %2369 = vmatpush1.msra.mxu0 0.0
          %2370 = vmatprep.subr.mxu0 0.0
          %2371 = vmatpush1.msra.mxu0 0.0
          %2372 = vmatprep.subr.mxu0 0.0
          %2373 = vmatpush1.msra.mxu0 0.0
          %2374 = vmatprep.subr.mxu0 0.0
          %2375 = vmatpush1.msra.mxu0 0.0
          %2376 = vmatprep.subr.mxu0 0.0
          %2377 = vmatpush1.msra.mxu0 0.0
          %2378 = vmatprep.subr.mxu0 0.0
          %2379 = vmatpush1.msra.mxu0 0.0
          %2380 = vmatprep.subr.mxu0 0.0
          %2381 = vmatpush1.msra.mxu0 0.0
          %2382 = vmatprep.subr.mxu0 0.0
          %2383 = vmatpush1.msra.mxu0 0.0
          %2384 = vmatprep.subr.mxu0 0.0
          %2385 = vmatpush1.msra.mxu0 0.0
          %2386 = vmatprep.subr.mxu0 0.0
          %2387 = vmatpush1.msra.mxu0 0.0
          %2388 = vmatprep.subr.mxu0 0.0
          %2389 = vmatpush1.msra.mxu0 0.0
          %2390 = vmatprep.subr.mxu0 0.0
          %2391 = vmatpush1.msra.mxu0 0.0
          %2392 = vmatprep.subr.mxu0 0.0
          %2393 = vmatpush1.msra.mxu0 0.0
          %2394 = vmatprep.subr.mxu0 0.0
          %2395 = vmatpush1.msra.mxu0 0.0
          %2396 = vmatprep.subr.mxu0 0.0
          %2397 = vmatpush1.msra.mxu0 0.0
          %2398 = vmatprep.subr.mxu0 0.0
          %2399 = vmatpush1.msra.mxu0 0.0
          %2400 = vmatprep.subr.mxu0 0.0
          %2401 = vmatpush1.msra.mxu0 0.0
          %2402 = vmatprep.subr.mxu0 0.0
          %2403 = vmatpush1.msra.mxu0 0.0
          %2404 = vmatprep.subr.mxu0 0.0
          %2405 = vmatpush1.msra.mxu0 0.0
          %2406 = vmatprep.subr.mxu0 0.0
          %2407 = vmatpush1.msra.mxu0 0.0
          %2408 = vmatprep.subr.mxu0 0.0
          %2409 = vmatpush1.msra.mxu0 0.0
          %2410 = vmatprep.subr.mxu0 0.0
          %2411 = vmatpush1.msra.mxu0 0.0
          %2412 = vmatprep.subr.mxu0 0.0
          %2413 = vmatpush1.msra.mxu0 0.0
          %2414 = vmatprep.subr.mxu0 0.0
          %2415 = vmatpush1.msra.mxu0 0.0
          %2416 = vmatprep.subr.mxu0 0.0
          %2417 = vmatpush1.msra.mxu0 0.0
          %2418 = vmatprep.subr.mxu0 0.0
          %2419 = vmatpush1.msra.mxu0 0.0
          %2420 = vmatprep.subr.mxu0 0.0
          %2421 = vmatpush1.msra.mxu0 0.0
          %2422 = vmatprep.subr.mxu0 0.0
          %2423 = vmatpush1.msra.mxu0 0.0
          %2424 = vmatprep.mubr.f32.mxu0 0.0
          %2425 = vmatmul.mubr.f32.gmra.mrb[0].mxu0 %v2352
          %v2426 = vpop.f32.mrb[0].mxu0
          %v2427 = vadd.f32 0.0, %v2426
          %v2428 = vpop.f32.mrb[0].mxu0
          %2429 = vmatprep.mubr.f32.mxu0 0.0
          %2430 = vmatmul.mubr.f32.gmra.mrb[0].mxu0 %v2355
          %v2431 = vpop.f32.mrb[0].mxu0
          %v2432 = vadd.f32 0.0, %v2431
          %v2433 = vpop.f32.mrb[0].mxu0
          %2434 = vdwg.mxu0
          %v2435 = vadd.f32 %v2345, %v2427
          %v2436 = vadd.f32 %v2346, %v2432
          %v2437 = vld [vmem:[%s2256 + $0x2] sm:$0xff]
          %v2438 = vld [vmem:[%s2256 + $0xa] sm:$0x3]
          %s2439 = scalar_lea.vmem %s3, 56
          %v2440 = vld [vmem:[%s2439] sm:$0x3f]
          %v2442 = vsel %vm1814, %v2437, 0
          %v2445 = vsel %vm1814, %v2438, 0
          %v2448 = vsel %vm1821, %v2440, 0
          %2450 = vmatprep.subr.mxu0 0.0
          %2451 = vmatpush1.msra.mxu0 %v2448
          %2452 = vmatprep.subr.mxu0 0.0
          %2453 = vmatpush1.msra.mxu0 0.0
          %2454 = vmatprep.subr.mxu0 0.0
          %2455 = vmatpush1.msra.mxu0 0.0
          %2456 = vmatprep.subr.mxu0 0.0
          %2457 = vmatpush1.msra.mxu0 0.0
          %2458 = vmatprep.subr.mxu0 0.0
          %2459 = vmatpush1.msra.mxu0 0.0
          %2460 = vmatprep.subr.mxu0 0.0
          %2461 = vmatpush1.msra.mxu0 0.0
          %2462 = vmatprep.subr.mxu0 0.0
          %2463 = vmatpush1.msra.mxu0 0.0
          %2464 = vmatprep.subr.mxu0 0.0
          %2465 = vmatpush1.msra.mxu0 0.0
          %2466 = vmatprep.subr.mxu0 0.0
          %2467 = vmatpush1.msra.mxu0 0.0
          %2468 = vmatprep.subr.mxu0 0.0
          %2469 = vmatpush1.msra.mxu0 0.0
          %2470 = vmatprep.subr.mxu0 0.0
          %2471 = vmatpush1.msra.mxu0 0.0
          %2472 = vmatprep.subr.mxu0 0.0
          %2473 = vmatpush1.msra.mxu0 0.0
          %2474 = vmatprep.subr.mxu0 0.0
          %2475 = vmatpush1.msra.mxu0 0.0
          %2476 = vmatprep.subr.mxu0 0.0
          %2477 = vmatpush1.msra.mxu0 0.0
          %2478 = vmatprep.subr.mxu0 0.0
          %2479 = vmatpush1.msra.mxu0 0.0
          %2480 = vmatprep.subr.mxu0 0.0
          %2481 = vmatpush1.msra.mxu0 0.0
          %2482 = vmatprep.subr.mxu0 0.0
          %2483 = vmatpush1.msra.mxu0 0.0
          %2484 = vmatprep.subr.mxu0 0.0
          %2485 = vmatpush1.msra.mxu0 0.0
          %2486 = vmatprep.subr.mxu0 0.0
          %2487 = vmatpush1.msra.mxu0 0.0
          %2488 = vmatprep.subr.mxu0 0.0
          %2489 = vmatpush1.msra.mxu0 0.0
          %2490 = vmatprep.subr.mxu0 0.0
          %2491 = vmatpush1.msra.mxu0 0.0
          %2492 = vmatprep.subr.mxu0 0.0
          %2493 = vmatpush1.msra.mxu0 0.0
          %2494 = vmatprep.subr.mxu0 0.0
          %2495 = vmatpush1.msra.mxu0 0.0
          %2496 = vmatprep.subr.mxu0 0.0
          %2497 = vmatpush1.msra.mxu0 0.0
          %2498 = vmatprep.subr.mxu0 0.0
          %2499 = vmatpush1.msra.mxu0 0.0
          %2500 = vmatprep.subr.mxu0 0.0
          %2501 = vmatpush1.msra.mxu0 0.0
          %2502 = vmatprep.subr.mxu0 0.0
          %2503 = vmatpush1.msra.mxu0 0.0
          %2504 = vmatprep.subr.mxu0 0.0
          %2505 = vmatpush1.msra.mxu0 0.0
          %2506 = vmatprep.subr.mxu0 0.0
          %2507 = vmatpush1.msra.mxu0 0.0
          %2508 = vmatprep.subr.mxu0 0.0
          %2509 = vmatpush1.msra.mxu0 0.0
          %2510 = vmatprep.subr.mxu0 0.0
          %2511 = vmatpush1.msra.mxu0 0.0
          %2512 = vmatprep.subr.mxu0 0.0
          %2513 = vmatpush1.msra.mxu0 0.0
          %2514 = vmatprep.mubr.f32.mxu0 0.0
          %2515 = vmatmul.mubr.f32.gmra.mrb[0].mxu0 %v2442
          %v2516 = vpop.f32.mrb[0].mxu0
          %v2517 = vadd.f32 0.0, %v2516
          %v2518 = vpop.f32.mrb[0].mxu0
          %2519 = vmatprep.mubr.f32.mxu0 0.0
          %2520 = vmatmul.mubr.f32.gmra.mrb[0].mxu0 %v2445
          %v2521 = vpop.f32.mrb[0].mxu0
          %v2522 = vadd.f32 0.0, %v2521
          %v2523 = vpop.f32.mrb[0].mxu0
          %2524 = vdwg.mxu0
          %v2525 = vadd.f32 %v2435, %v2517
          %v2526 = vadd.f32 %v2436, %v2522
          %v2527 = vld [vmem:[%s2256 + $0x3] sm:$0xff]
          %v2528 = vld [vmem:[%s2256 + $0xb] sm:$0x3]
          %s2529 = scalar_lea.vmem %s3, 64
          %v2530 = vld [vmem:[%s2529] sm:$0x3f]
          %v2532 = vsel %vm1814, %v2527, 0
          %v2535 = vsel %vm1814, %v2528, 0
          %v2538 = vsel %vm1821, %v2530, 0
          %2540 = vmatprep.subr.mxu0 0.0
          %2541 = vmatpush1.msra.mxu0 %v2538
          %2542 = vmatprep.subr.mxu0 0.0
          %2543 = vmatpush1.msra.mxu0 0.0
          %2544 = vmatprep.subr.mxu0 0.0
          %2545 = vmatpush1.msra.mxu0 0.0
          %2546 = vmatprep.subr.mxu0 0.0
          %2547 = vmatpush1.msra.mxu0 0.0
          %2548 = vmatprep.subr.mxu0 0.0
          %2549 = vmatpush1.msra.mxu0 0.0
          %2550 = vmatprep.subr.mxu0 0.0
          %2551 = vmatpush1.msra.mxu0 0.0
          %2552 = vmatprep.subr.mxu0 0.0
          %2553 = vmatpush1.msra.mxu0 0.0
          %2554 = vmatprep.subr.mxu0 0.0
          %2555 = vmatpush1.msra.mxu0 0.0
          %2556 = vmatprep.subr.mxu0 0.0
          %2557 = vmatpush1.msra.mxu0 0.0
          %2558 = vmatprep.subr.mxu0 0.0
          %2559 = vmatpush1.msra.mxu0 0.0
          %2560 = vmatprep.subr.mxu0 0.0
          %2561 = vmatpush1.msra.mxu0 0.0
          %2562 = vmatprep.subr.mxu0 0.0
          %2563 = vmatpush1.msra.mxu0 0.0
          %2564 = vmatprep.subr.mxu0 0.0
          %2565 = vmatpush1.msra.mxu0 0.0
          %2566 = vmatprep.subr.mxu0 0.0
          %2567 = vmatpush1.msra.mxu0 0.0
          %2568 = vmatprep.subr.mxu0 0.0
          %2569 = vmatpush1.msra.mxu0 0.0
          %2570 = vmatprep.subr.mxu0 0.0
          %2571 = vmatpush1.msra.mxu0 0.0
          %2572 = vmatprep.subr.mxu0 0.0
          %2573 = vmatpush1.msra.mxu0 0.0
          %2574 = vmatprep.subr.mxu0 0.0
          %2575 = vmatpush1.msra.mxu0 0.0
          %2576 = vmatprep.subr.mxu0 0.0
          %2577 = vmatpush1.msra.mxu0 0.0
          %2578 = vmatprep.subr.mxu0 0.0
          %2579 = vmatpush1.msra.mxu0 0.0
          %2580 = vmatprep.subr.mxu0 0.0
          %2581 = vmatpush1.msra.mxu0 0.0
          %2582 = vmatprep.subr.mxu0 0.0
          %2583 = vmatpush1.msra.mxu0 0.0
          %2584 = vmatprep.subr.mxu0 0.0
          %2585 = vmatpush1.msra.mxu0 0.0
          %2586 = vmatprep.subr.mxu0 0.0
          %2587 = vmatpush1.msra.mxu0 0.0
          %2588 = vmatprep.subr.mxu0 0.0
          %2589 = vmatpush1.msra.mxu0 0.0
          %2590 = vmatprep.subr.mxu0 0.0
          %2591 = vmatpush1.msra.mxu0 0.0
          %2592 = vmatprep.subr.mxu0 0.0
          %2593 = vmatpush1.msra.mxu0 0.0
          %2594 = vmatprep.subr.mxu0 0.0
          %2595 = vmatpush1.msra.mxu0 0.0
          %2596 = vmatprep.subr.mxu0 0.0
          %2597 = vmatpush1.msra.mxu0 0.0
          %2598 = vmatprep.subr.mxu0 0.0
          %2599 = vmatpush1.msra.mxu0 0.0
          %2600 = vmatprep.subr.mxu0 0.0
          %2601 = vmatpush1.msra.mxu0 0.0
          %2602 = vmatprep.subr.mxu0 0.0
          %2603 = vmatpush1.msra.mxu0 0.0
          %2604 = vmatprep.mubr.f32.mxu0 0.0
          %2605 = vmatmul.mubr.f32.gmra.mrb[0].mxu0 %v2532
          %v2606 = vpop.f32.mrb[0].mxu0
          %v2607 = vadd.f32 0.0, %v2606
          %v2608 = vpop.f32.mrb[0].mxu0
          %2609 = vmatprep.mubr.f32.mxu0 0.0
          %2610 = vmatmul.mubr.f32.gmra.mrb[0].mxu0 %v2535
          %v2611 = vpop.f32.mrb[0].mxu0
          %v2612 = vadd.f32 0.0, %v2611
          %v2613 = vpop.f32.mrb[0].mxu0
          %2614 = vdwg.mxu0
          %v2615 = vadd.f32 %v2525, %v2607
          %v2616 = vadd.f32 %v2526, %v2612
          %v2617 = vld [vmem:[%s2256 + $0x4] sm:$0xff]
          %v2618 = vld [vmem:[%s2256 + $0xc] sm:$0x3]
          %s2619 = scalar_lea.vmem %s3, 72
          %v2620 = vld [vmem:[%s2619] sm:$0x3f]
          %v2622 = vsel %vm1814, %v2617, 0
          %v2625 = vsel %vm1814, %v2618, 0
          %v2628 = vsel %vm1821, %v2620, 0
          %2630 = vmatprep.subr.mxu0 0.0
          %2631 = vmatpush1.msra.mxu0 %v2628
          %2632 = vmatprep.subr.mxu0 0.0
          %2633 = vmatpush1.msra.mxu0 0.0
          %2634 = vmatprep.subr.mxu0 0.0
          %2635 = vmatpush1.msra.mxu0 0.0
          %2636 = vmatprep.subr.mxu0 0.0
          %2637 = vmatpush1.msra.mxu0 0.0
          %2638 = vmatprep.subr.mxu0 0.0
          %2639 = vmatpush1.msra.mxu0 0.0
          %2640 = vmatprep.subr.mxu0 0.0
          %2641 = vmatpush1.msra.mxu0 0.0
          %2642 = vmatprep.subr.mxu0 0.0
          %2643 = vmatpush1.msra.mxu0 0.0
          %2644 = vmatprep.subr.mxu0 0.0
          %2645 = vmatpush1.msra.mxu0 0.0
          %2646 = vmatprep.subr.mxu0 0.0
          %2647 = vmatpush1.msra.mxu0 0.0
          %2648 = vmatprep.subr.mxu0 0.0
          %2649 = vmatpush1.msra.mxu0 0.0
          %2650 = vmatprep.subr.mxu0 0.0
          %2651 = vmatpush1.msra.mxu0 0.0
          %2652 = vmatprep.subr.mxu0 0.0
          %2653 = vmatpush1.msra.mxu0 0.0
          %2654 = vmatprep.subr.mxu0 0.0
          %2655 = vmatpush1.msra.mxu0 0.0
          %2656 = vmatprep.subr.mxu0 0.0
          %2657 = vmatpush1.msra.mxu0 0.0
          %2658 = vmatprep.subr.mxu0 0.0
          %2659 = vmatpush1.msra.mxu0 0.0
          %2660 = vmatprep.subr.mxu0 0.0
          %2661 = vmatpush1.msra.mxu0 0.0
          %2662 = vmatprep.subr.mxu0 0.0
          %2663 = vmatpush1.msra.mxu0 0.0
          %2664 = vmatprep.subr.mxu0 0.0
          %2665 = vmatpush1.msra.mxu0 0.0
          %2666 = vmatprep.subr.mxu0 0.0
          %2667 = vmatpush1.msra.mxu0 0.0
          %2668 = vmatprep.subr.mxu0 0.0
          %2669 = vmatpush1.msra.mxu0 0.0
          %2670 = vmatprep.subr.mxu0 0.0
          %2671 = vmatpush1.msra.mxu0 0.0
          %2672 = vmatprep.subr.mxu0 0.0
          %2673 = vmatpush1.msra.mxu0 0.0
          %2674 = vmatprep.subr.mxu0 0.0
          %2675 = vmatpush1.msra.mxu0 0.0
          %2676 = vmatprep.subr.mxu0 0.0
          %2677 = vmatpush1.msra.mxu0 0.0
          %2678 = vmatprep.subr.mxu0 0.0
          %2679 = vmatpush1.msra.mxu0 0.0
          %2680 = vmatprep.subr.mxu0 0.0
          %2681 = vmatpush1.msra.mxu0 0.0
          %2682 = vmatprep.subr.mxu0 0.0
          %2683 = vmatpush1.msra.mxu0 0.0
          %2684 = vmatprep.subr.mxu0 0.0
          %2685 = vmatpush1.msra.mxu0 0.0
          %2686 = vmatprep.subr.mxu0 0.0
          %2687 = vmatpush1.msra.mxu0 0.0
          %2688 = vmatprep.subr.mxu0 0.0
          %2689 = vmatpush1.msra.mxu0 0.0
          %2690 = vmatprep.subr.mxu0 0.0
          %2691 = vmatpush1.msra.mxu0 0.0
          %2692 = vmatprep.subr.mxu0 0.0
          %2693 = vmatpush1.msra.mxu0 0.0
          %2694 = vmatprep.mubr.f32.mxu0 0.0
          %2695 = vmatmul.mubr.f32.gmra.mrb[0].mxu0 %v2622
          %v2696 = vpop.f32.mrb[0].mxu0
          %v2697 = vadd.f32 0.0, %v2696
          %v2698 = vpop.f32.mrb[0].mxu0
          %2699 = vmatprep.mubr.f32.mxu0 0.0
          %2700 = vmatmul.mubr.f32.gmra.mrb[0].mxu0 %v2625
          %v2701 = vpop.f32.mrb[0].mxu0
          %v2702 = vadd.f32 0.0, %v2701
          %v2703 = vpop.f32.mrb[0].mxu0
          %2704 = vdwg.mxu0
          %v2705 = vadd.f32 %v2615, %v2697
          %v2706 = vadd.f32 %v2616, %v2702
          %s2707 = sadd.s32 %s1800, 2
          %s2708 = smul.u32 %s2707, 16
          %s2709 = scalar_lea.vmem [#allocation4], %s2708
          %v2710 = vld [vmem:[%s2709] sm:$0xff]
          %v2711 = vld [vmem:[%s2709 + $0x8] sm:$0x3]
          %s2712 = scalar_lea.vmem %s3, 80
          %v2713 = vld [vmem:[%s2712] sm:$0x3f]
          %v2715 = vsel %vm1814, %v2710, 0
          %v2718 = vsel %vm1814, %v2711, 0
          %v2721 = vsel %vm1821, %v2713, 0
          %2723 = vmatprep.subr.mxu0 0.0
          %2724 = vmatpush1.msra.mxu0 %v2721
          %2725 = vmatprep.subr.mxu0 0.0
          %2726 = vmatpush1.msra.mxu0 0.0
          %2727 = vmatprep.subr.mxu0 0.0
          %2728 = vmatpush1.msra.mxu0 0.0
          %2729 = vmatprep.subr.mxu0 0.0
          %2730 = vmatpush1.msra.mxu0 0.0
          %2731 = vmatprep.subr.mxu0 0.0
          %2732 = vmatpush1.msra.mxu0 0.0
          %2733 = vmatprep.subr.mxu0 0.0
          %2734 = vmatpush1.msra.mxu0 0.0
          %2735 = vmatprep.subr.mxu0 0.0
          %2736 = vmatpush1.msra.mxu0 0.0
          %2737 = vmatprep.subr.mxu0 0.0
          %2738 = vmatpush1.msra.mxu0 0.0
          %2739 = vmatprep.subr.mxu0 0.0
          %2740 = vmatpush1.msra.mxu0 0.0
          %2741 = vmatprep.subr.mxu0 0.0
          %2742 = vmatpush1.msra.mxu0 0.0
          %2743 = vmatprep.subr.mxu0 0.0
          %2744 = vmatpush1.msra.mxu0 0.0
          %2745 = vmatprep.subr.mxu0 0.0
          %2746 = vmatpush1.msra.mxu0 0.0
          %2747 = vmatprep.subr.mxu0 0.0
          %2748 = vmatpush1.msra.mxu0 0.0
          %2749 = vmatprep.subr.mxu0 0.0
          %2750 = vmatpush1.msra.mxu0 0.0
          %2751 = vmatprep.subr.mxu0 0.0
          %2752 = vmatpush1.msra.mxu0 0.0
          %2753 = vmatprep.subr.mxu0 0.0
          %2754 = vmatpush1.msra.mxu0 0.0
          %2755 = vmatprep.subr.mxu0 0.0
          %2756 = vmatpush1.msra.mxu0 0.0
          %2757 = vmatprep.subr.mxu0 0.0
          %2758 = vmatpush1.msra.mxu0 0.0
          %2759 = vmatprep.subr.mxu0 0.0
          %2760 = vmatpush1.msra.mxu0 0.0
          %2761 = vmatprep.subr.mxu0 0.0
          %2762 = vmatpush1.msra.mxu0 0.0
          %2763 = vmatprep.subr.mxu0 0.0
          %2764 = vmatpush1.msra.mxu0 0.0
          %2765 = vmatprep.subr.mxu0 0.0
          %2766 = vmatpush1.msra.mxu0 0.0
          %2767 = vmatprep.subr.mxu0 0.0
          %2768 = vmatpush1.msra.mxu0 0.0
          %2769 = vmatprep.subr.mxu0 0.0
          %2770 = vmatpush1.msra.mxu0 0.0
          %2771 = vmatprep.subr.mxu0 0.0
          %2772 = vmatpush1.msra.mxu0 0.0
          %2773 = vmatprep.subr.mxu0 0.0
          %2774 = vmatpush1.msra.mxu0 0.0
          %2775 = vmatprep.subr.mxu0 0.0
          %2776 = vmatpush1.msra.mxu0 0.0
          %2777 = vmatprep.subr.mxu0 0.0
          %2778 = vmatpush1.msra.mxu0 0.0
          %2779 = vmatprep.subr.mxu0 0.0
          %2780 = vmatpush1.msra.mxu0 0.0
          %2781 = vmatprep.subr.mxu0 0.0
          %2782 = vmatpush1.msra.mxu0 0.0
          %2783 = vmatprep.subr.mxu0 0.0
          %2784 = vmatpush1.msra.mxu0 0.0
          %2785 = vmatprep.subr.mxu0 0.0
          %2786 = vmatpush1.msra.mxu0 0.0
          %2787 = vmatprep.mubr.f32.mxu0 0.0
          %2788 = vmatmul.mubr.f32.gmra.mrb[0].mxu0 %v2715
          %v2789 = vpop.f32.mrb[0].mxu0
          %v2790 = vadd.f32 0.0, %v2789
          %v2791 = vpop.f32.mrb[0].mxu0
          %2792 = vmatprep.mubr.f32.mxu0 0.0
          %2793 = vmatmul.mubr.f32.gmra.mrb[0].mxu0 %v2718
          %v2794 = vpop.f32.mrb[0].mxu0
          %v2795 = vadd.f32 0.0, %v2794
          %v2796 = vpop.f32.mrb[0].mxu0
          %2797 = vdwg.mxu0
          %v2798 = vadd.f32 %v2705, %v2790
          %v2799 = vadd.f32 %v2706, %v2795
          %v2800 = vld [vmem:[%s2709 + $0x1] sm:$0xff]
          %v2801 = vld [vmem:[%s2709 + $0x9] sm:$0x3]
          %s2802 = scalar_lea.vmem %s3, 88
          %v2803 = vld [vmem:[%s2802] sm:$0x3f]
          %v2805 = vsel %vm1814, %v2800, 0
          %v2808 = vsel %vm1814, %v2801, 0
          %v2811 = vsel %vm1821, %v2803, 0
          %2813 = vmatprep.subr.mxu0 0.0
          %2814 = vmatpush1.msra.mxu0 %v2811
          %2815 = vmatprep.subr.mxu0 0.0
          %2816 = vmatpush1.msra.mxu0 0.0
          %2817 = vmatprep.subr.mxu0 0.0
          %2818 = vmatpush1.msra.mxu0 0.0
          %2819 = vmatprep.subr.mxu0 0.0
          %2820 = vmatpush1.msra.mxu0 0.0
          %2821 = vmatprep.subr.mxu0 0.0
          %2822 = vmatpush1.msra.mxu0 0.0
          %2823 = vmatprep.subr.mxu0 0.0
          %2824 = vmatpush1.msra.mxu0 0.0
          %2825 = vmatprep.subr.mxu0 0.0
          %2826 = vmatpush1.msra.mxu0 0.0
          %2827 = vmatprep.subr.mxu0 0.0
          %2828 = vmatpush1.msra.mxu0 0.0
          %2829 = vmatprep.subr.mxu0 0.0
          %2830 = vmatpush1.msra.mxu0 0.0
          %2831 = vmatprep.subr.mxu0 0.0
          %2832 = vmatpush1.msra.mxu0 0.0
          %2833 = vmatprep.subr.mxu0 0.0
          %2834 = vmatpush1.msra.mxu0 0.0
          %2835 = vmatprep.subr.mxu0 0.0
          %2836 = vmatpush1.msra.mxu0 0.0
          %2837 = vmatprep.subr.mxu0 0.0
          %2838 = vmatpush1.msra.mxu0 0.0
          %2839 = vmatprep.subr.mxu0 0.0
          %2840 = vmatpush1.msra.mxu0 0.0
          %2841 = vmatprep.subr.mxu0 0.0
          %2842 = vmatpush1.msra.mxu0 0.0
          %2843 = vmatprep.subr.mxu0 0.0
          %2844 = vmatpush1.msra.mxu0 0.0
          %2845 = vmatprep.subr.mxu0 0.0
          %2846 = vmatpush1.msra.mxu0 0.0
          %2847 = vmatprep.subr.mxu0 0.0
          %2848 = vmatpush1.msra.mxu0 0.0
          %2849 = vmatprep.subr.mxu0 0.0
          %2850 = vmatpush1.msra.mxu0 0.0
          %2851 = vmatprep.subr.mxu0 0.0
          %2852 = vmatpush1.msra.mxu0 0.0
          %2853 = vmatprep.subr.mxu0 0.0
          %2854 = vmatpush1.msra.mxu0 0.0
          %2855 = vmatprep.subr.mxu0 0.0
          %2856 = vmatpush1.msra.mxu0 0.0
          %2857 = vmatprep.subr.mxu0 0.0
          %2858 = vmatpush1.msra.mxu0 0.0
          %2859 = vmatprep.subr.mxu0 0.0
          %2860 = vmatpush1.msra.mxu0 0.0
          %2861 = vmatprep.subr.mxu0 0.0
          %2862 = vmatpush1.msra.mxu0 0.0
          %2863 = vmatprep.subr.mxu0 0.0
          %2864 = vmatpush1.msra.mxu0 0.0
          %2865 = vmatprep.subr.mxu0 0.0
          %2866 = vmatpush1.msra.mxu0 0.0
          %2867 = vmatprep.subr.mxu0 0.0
          %2868 = vmatpush1.msra.mxu0 0.0
          %2869 = vmatprep.subr.mxu0 0.0
          %2870 = vmatpush1.msra.mxu0 0.0
          %2871 = vmatprep.subr.mxu0 0.0
          %2872 = vmatpush1.msra.mxu0 0.0
          %2873 = vmatprep.subr.mxu0 0.0
          %2874 = vmatpush1.msra.mxu0 0.0
          %2875 = vmatprep.subr.mxu0 0.0
          %2876 = vmatpush1.msra.mxu0 0.0
          %2877 = vmatprep.mubr.f32.mxu0 0.0
          %2878 = vmatmul.mubr.f32.gmra.mrb[0].mxu0 %v2805
          %v2879 = vpop.f32.mrb[0].mxu0
          %v2880 = vadd.f32 0.0, %v2879
          %v2881 = vpop.f32.mrb[0].mxu0
          %2882 = vmatprep.mubr.f32.mxu0 0.0
          %2883 = vmatmul.mubr.f32.gmra.mrb[0].mxu0 %v2808
          %v2884 = vpop.f32.mrb[0].mxu0
          %v2885 = vadd.f32 0.0, %v2884
          %v2886 = vpop.f32.mrb[0].mxu0
          %2887 = vdwg.mxu0
          %v2888 = vadd.f32 %v2798, %v2880
          %v2889 = vadd.f32 %v2799, %v2885
          %v2890 = vld [vmem:[%s2709 + $0x2] sm:$0xff]
          %v2891 = vld [vmem:[%s2709 + $0xa] sm:$0x3]
          %s2892 = scalar_lea.vmem %s3, 96
          %v2893 = vld [vmem:[%s2892] sm:$0x3f]
          %v2895 = vsel %vm1814, %v2890, 0
          %v2898 = vsel %vm1814, %v2891, 0
          %v2901 = vsel %vm1821, %v2893, 0
          %2903 = vmatprep.subr.mxu0 0.0
          %2904 = vmatpush1.msra.mxu0 %v2901
          %2905 = vmatprep.subr.mxu0 0.0
          %2906 = vmatpush1.msra.mxu0 0.0
          %2907 = vmatprep.subr.mxu0 0.0
          %2908 = vmatpush1.msra.mxu0 0.0
          %2909 = vmatprep.subr.mxu0 0.0
          %2910 = vmatpush1.msra.mxu0 0.0
          %2911 = vmatprep.subr.mxu0 0.0
          %2912 = vmatpush1.msra.mxu0 0.0
          %2913 = vmatprep.subr.mxu0 0.0
          %2914 = vmatpush1.msra.mxu0 0.0
          %2915 = vmatprep.subr.mxu0 0.0
          %2916 = vmatpush1.msra.mxu0 0.0
          %2917 = vmatprep.subr.mxu0 0.0
          %2918 = vmatpush1.msra.mxu0 0.0
          %2919 = vmatprep.subr.mxu0 0.0
          %2920 = vmatpush1.msra.mxu0 0.0
          %2921 = vmatprep.subr.mxu0 0.0
          %2922 = vmatpush1.msra.mxu0 0.0
          %2923 = vmatprep.subr.mxu0 0.0
          %2924 = vmatpush1.msra.mxu0 0.0
          %2925 = vmatprep.subr.mxu0 0.0
          %2926 = vmatpush1.msra.mxu0 0.0
          %2927 = vmatprep.subr.mxu0 0.0
          %2928 = vmatpush1.msra.mxu0 0.0
          %2929 = vmatprep.subr.mxu0 0.0
          %2930 = vmatpush1.msra.mxu0 0.0
          %2931 = vmatprep.subr.mxu0 0.0
          %2932 = vmatpush1.msra.mxu0 0.0
          %2933 = vmatprep.subr.mxu0 0.0
          %2934 = vmatpush1.msra.mxu0 0.0
          %2935 = vmatprep.subr.mxu0 0.0
          %2936 = vmatpush1.msra.mxu0 0.0
          %2937 = vmatprep.subr.mxu0 0.0
          %2938 = vmatpush1.msra.mxu0 0.0
          %2939 = vmatprep.subr.mxu0 0.0
          %2940 = vmatpush1.msra.mxu0 0.0
          %2941 = vmatprep.subr.mxu0 0.0
          %2942 = vmatpush1.msra.mxu0 0.0
          %2943 = vmatprep.subr.mxu0 0.0
          %2944 = vmatpush1.msra.mxu0 0.0
          %2945 = vmatprep.subr.mxu0 0.0
          %2946 = vmatpush1.msra.mxu0 0.0
          %2947 = vmatprep.subr.mxu0 0.0
          %2948 = vmatpush1.msra.mxu0 0.0
          %2949 = vmatprep.subr.mxu0 0.0
          %2950 = vmatpush1.msra.mxu0 0.0
          %2951 = vmatprep.subr.mxu0 0.0
          %2952 = vmatpush1.msra.mxu0 0.0
          %2953 = vmatprep.subr.mxu0 0.0
          %2954 = vmatpush1.msra.mxu0 0.0
          %2955 = vmatprep.subr.mxu0 0.0
          %2956 = vmatpush1.msra.mxu0 0.0
          %2957 = vmatprep.subr.mxu0 0.0
          %2958 = vmatpush1.msra.mxu0 0.0
          %2959 = vmatprep.subr.mxu0 0.0
          %2960 = vmatpush1.msra.mxu0 0.0
          %2961 = vmatprep.subr.mxu0 0.0
          %2962 = vmatpush1.msra.mxu0 0.0
          %2963 = vmatprep.subr.mxu0 0.0
          %2964 = vmatpush1.msra.mxu0 0.0
          %2965 = vmatprep.subr.mxu0 0.0
          %2966 = vmatpush1.msra.mxu0 0.0
          %2967 = vmatprep.mubr.f32.mxu0 0.0
          %2968 = vmatmul.mubr.f32.gmra.mrb[0].mxu0 %v2895
          %v2969 = vpop.f32.mrb[0].mxu0
          %v2970 = vadd.f32 0.0, %v2969
          %v2971 = vpop.f32.mrb[0].mxu0
          %2972 = vmatprep.mubr.f32.mxu0 0.0
          %2973 = vmatmul.mubr.f32.gmra.mrb[0].mxu0 %v2898
          %v2974 = vpop.f32.mrb[0].mxu0
          %v2975 = vadd.f32 0.0, %v2974
          %v2976 = vpop.f32.mrb[0].mxu0
          %2977 = vdwg.mxu0
          %v2978 = vadd.f32 %v2888, %v2970
          %v2979 = vadd.f32 %v2889, %v2975
          %v2980 = vld [vmem:[%s2709 + $0x3] sm:$0xff]
          %v2981 = vld [vmem:[%s2709 + $0xb] sm:$0x3]
          %s2982 = scalar_lea.vmem %s3, 104
          %v2983 = vld [vmem:[%s2982] sm:$0x3f]
          %v2985 = vsel %vm1814, %v2980, 0
          %v2988 = vsel %vm1814, %v2981, 0
          %v2991 = vsel %vm1821, %v2983, 0
          %2993 = vmatprep.subr.mxu0 0.0
          %2994 = vmatpush1.msra.mxu0 %v2991
          %2995 = vmatprep.subr.mxu0 0.0
          %2996 = vmatpush1.msra.mxu0 0.0
          %2997 = vmatprep.subr.mxu0 0.0
          %2998 = vmatpush1.msra.mxu0 0.0
          %2999 = vmatprep.subr.mxu0 0.0
          %3000 = vmatpush1.msra.mxu0 0.0
          %3001 = vmatprep.subr.mxu0 0.0
          %3002 = vmatpush1.msra.mxu0 0.0
          %3003 = vmatprep.subr.mxu0 0.0
          %3004 = vmatpush1.msra.mxu0 0.0
          %3005 = vmatprep.subr.mxu0 0.0
          %3006 = vmatpush1.msra.mxu0 0.0
          %3007 = vmatprep.subr.mxu0 0.0
          %3008 = vmatpush1.msra.mxu0 0.0
          %3009 = vmatprep.subr.mxu0 0.0
          %3010 = vmatpush1.msra.mxu0 0.0
          %3011 = vmatprep.subr.mxu0 0.0
          %3012 = vmatpush1.msra.mxu0 0.0
          %3013 = vmatprep.subr.mxu0 0.0
          %3014 = vmatpush1.msra.mxu0 0.0
          %3015 = vmatprep.subr.mxu0 0.0
          %3016 = vmatpush1.msra.mxu0 0.0
          %3017 = vmatprep.subr.mxu0 0.0
          %3018 = vmatpush1.msra.mxu0 0.0
          %3019 = vmatprep.subr.mxu0 0.0
          %3020 = vmatpush1.msra.mxu0 0.0
          %3021 = vmatprep.subr.mxu0 0.0
          %3022 = vmatpush1.msra.mxu0 0.0
          %3023 = vmatprep.subr.mxu0 0.0
          %3024 = vmatpush1.msra.mxu0 0.0
          %3025 = vmatprep.subr.mxu0 0.0
          %3026 = vmatpush1.msra.mxu0 0.0
          %3027 = vmatprep.subr.mxu0 0.0
          %3028 = vmatpush1.msra.mxu0 0.0
          %3029 = vmatprep.subr.mxu0 0.0
          %3030 = vmatpush1.msra.mxu0 0.0
          %3031 = vmatprep.subr.mxu0 0.0
          %3032 = vmatpush1.msra.mxu0 0.0
          %3033 = vmatprep.subr.mxu0 0.0
          %3034 = vmatpush1.msra.mxu0 0.0
          %3035 = vmatprep.subr.mxu0 0.0
          %3036 = vmatpush1.msra.mxu0 0.0
          %3037 = vmatprep.subr.mxu0 0.0
          %3038 = vmatpush1.msra.mxu0 0.0
          %3039 = vmatprep.subr.mxu0 0.0
          %3040 = vmatpush1.msra.mxu0 0.0
          %3041 = vmatprep.subr.mxu0 0.0
          %3042 = vmatpush1.msra.mxu0 0.0
          %3043 = vmatprep.subr.mxu0 0.0
          %3044 = vmatpush1.msra.mxu0 0.0
          %3045 = vmatprep.subr.mxu0 0.0
          %3046 = vmatpush1.msra.mxu0 0.0
          %3047 = vmatprep.subr.mxu0 0.0
          %3048 = vmatpush1.msra.mxu0 0.0
          %3049 = vmatprep.subr.mxu0 0.0
          %3050 = vmatpush1.msra.mxu0 0.0
          %3051 = vmatprep.subr.mxu0 0.0
          %3052 = vmatpush1.msra.mxu0 0.0
          %3053 = vmatprep.subr.mxu0 0.0
          %3054 = vmatpush1.msra.mxu0 0.0
          %3055 = vmatprep.subr.mxu0 0.0
          %3056 = vmatpush1.msra.mxu0 0.0
          %3057 = vmatprep.mubr.f32.mxu0 0.0
          %3058 = vmatmul.mubr.f32.gmra.mrb[0].mxu0 %v2985
          %v3059 = vpop.f32.mrb[0].mxu0
          %v3060 = vadd.f32 0.0, %v3059
          %v3061 = vpop.f32.mrb[0].mxu0
          %3062 = vmatprep.mubr.f32.mxu0 0.0
          %3063 = vmatmul.mubr.f32.gmra.mrb[0].mxu0 %v2988
          %v3064 = vpop.f32.mrb[0].mxu0
          %v3065 = vadd.f32 0.0, %v3064
          %v3066 = vpop.f32.mrb[0].mxu0
          %3067 = vdwg.mxu0
          %v3068 = vadd.f32 %v2978, %v3060
          %v3069 = vadd.f32 %v2979, %v3065
          %v3070 = vld [vmem:[%s2709 + $0x4] sm:$0xff]
          %v3071 = vld [vmem:[%s2709 + $0xc] sm:$0x3]
          %s3072 = scalar_lea.vmem %s3, 112
          %v3073 = vld [vmem:[%s3072] sm:$0x3f]
          %v3075 = vsel %vm1814, %v3070, 0
          %v3078 = vsel %vm1814, %v3071, 0
          %v3081 = vsel %vm1821, %v3073, 0
          %3083 = vmatprep.subr.mxu0 0.0
          %3084 = vmatpush1.msra.mxu0 %v3081
          %3085 = vmatprep.subr.mxu0 0.0
          %3086 = vmatpush1.msra.mxu0 0.0
          %3087 = vmatprep.subr.mxu0 0.0
          %3088 = vmatpush1.msra.mxu0 0.0
          %3089 = vmatprep.subr.mxu0 0.0
          %3090 = vmatpush1.msra.mxu0 0.0
          %3091 = vmatprep.subr.mxu0 0.0
          %3092 = vmatpush1.msra.mxu0 0.0
          %3093 = vmatprep.subr.mxu0 0.0
          %3094 = vmatpush1.msra.mxu0 0.0
          %3095 = vmatprep.subr.mxu0 0.0
          %3096 = vmatpush1.msra.mxu0 0.0
          %3097 = vmatprep.subr.mxu0 0.0
          %3098 = vmatpush1.msra.mxu0 0.0
          %3099 = vmatprep.subr.mxu0 0.0
          %3100 = vmatpush1.msra.mxu0 0.0
          %3101 = vmatprep.subr.mxu0 0.0
          %3102 = vmatpush1.msra.mxu0 0.0
          %3103 = vmatprep.subr.mxu0 0.0
          %3104 = vmatpush1.msra.mxu0 0.0
          %3105 = vmatprep.subr.mxu0 0.0
          %3106 = vmatpush1.msra.mxu0 0.0
          %3107 = vmatprep.subr.mxu0 0.0
          %3108 = vmatpush1.msra.mxu0 0.0
          %3109 = vmatprep.subr.mxu0 0.0
          %3110 = vmatpush1.msra.mxu0 0.0
          %3111 = vmatprep.subr.mxu0 0.0
          %3112 = vmatpush1.msra.mxu0 0.0
          %3113 = vmatprep.subr.mxu0 0.0
          %3114 = vmatpush1.msra.mxu0 0.0
          %3115 = vmatprep.subr.mxu0 0.0
          %3116 = vmatpush1.msra.mxu0 0.0
          %3117 = vmatprep.subr.mxu0 0.0
          %3118 = vmatpush1.msra.mxu0 0.0
          %3119 = vmatprep.subr.mxu0 0.0
          %3120 = vmatpush1.msra.mxu0 0.0
          %3121 = vmatprep.subr.mxu0 0.0
          %3122 = vmatpush1.msra.mxu0 0.0
          %3123 = vmatprep.subr.mxu0 0.0
          %3124 = vmatpush1.msra.mxu0 0.0
          %3125 = vmatprep.subr.mxu0 0.0
          %3126 = vmatpush1.msra.mxu0 0.0
          %3127 = vmatprep.subr.mxu0 0.0
          %3128 = vmatpush1.msra.mxu0 0.0
          %3129 = vmatprep.subr.mxu0 0.0
          %3130 = vmatpush1.msra.mxu0 0.0
          %3131 = vmatprep.subr.mxu0 0.0
          %3132 = vmatpush1.msra.mxu0 0.0
          %3133 = vmatprep.subr.mxu0 0.0
          %3134 = vmatpush1.msra.mxu0 0.0
          %3135 = vmatprep.subr.mxu0 0.0
          %3136 = vmatpush1.msra.mxu0 0.0
          %3137 = vmatprep.subr.mxu0 0.0
          %3138 = vmatpush1.msra.mxu0 0.0
          %3139 = vmatprep.subr.mxu0 0.0
          %3140 = vmatpush1.msra.mxu0 0.0
          %3141 = vmatprep.subr.mxu0 0.0
          %3142 = vmatpush1.msra.mxu0 0.0
          %3143 = vmatprep.subr.mxu0 0.0
          %3144 = vmatpush1.msra.mxu0 0.0
          %3145 = vmatprep.subr.mxu0 0.0
          %3146 = vmatpush1.msra.mxu0 0.0
          %3147 = vmatprep.mubr.f32.mxu0 0.0
          %3148 = vmatmul.mubr.f32.gmra.mrb[0].mxu0 %v3075
          %v3149 = vpop.f32.mrb[0].mxu0
          %v3150 = vadd.f32 0.0, %v3149
          %v3151 = vpop.f32.mrb[0].mxu0
          %3152 = vmatprep.mubr.f32.mxu0 0.0
          %3153 = vmatmul.mubr.f32.gmra.mrb[0].mxu0 %v3078
          %v3154 = vpop.f32.mrb[0].mxu0
          %v3155 = vadd.f32 0.0, %v3154
          %v3156 = vpop.f32.mrb[0].mxu0
          %3157 = vdwg.mxu0
          %v3158 = vadd.f32 %v3068, %v3150
          %v3159 = vadd.f32 %v3069, %v3155
          %s3160 = sadd.s32 %s1800, 3
          %s3161 = smul.u32 %s3160, 16
          %s3162 = scalar_lea.vmem [#allocation4], %s3161
          %v3163 = vld [vmem:[%s3162] sm:$0xff]
          %v3164 = vld [vmem:[%s3162 + $0x8] sm:$0x3]
          %s3165 = scalar_lea.vmem %s3, 120
          %v3166 = vld [vmem:[%s3165] sm:$0x3f]
          %v3168 = vsel %vm1814, %v3163, 0
          %v3171 = vsel %vm1814, %v3164, 0
          %v3174 = vsel %vm1821, %v3166, 0
          %3176 = vmatprep.subr.mxu0 0.0
          %3177 = vmatpush1.msra.mxu0 %v3174
          %3178 = vmatprep.subr.mxu0 0.0
          %3179 = vmatpush1.msra.mxu0 0.0
          %3180 = vmatprep.subr.mxu0 0.0
          %3181 = vmatpush1.msra.mxu0 0.0
          %3182 = vmatprep.subr.mxu0 0.0
          %3183 = vmatpush1.msra.mxu0 0.0
          %3184 = vmatprep.subr.mxu0 0.0
          %3185 = vmatpush1.msra.mxu0 0.0
          %3186 = vmatprep.subr.mxu0 0.0
          %3187 = vmatpush1.msra.mxu0 0.0
          %3188 = vmatprep.subr.mxu0 0.0
          %3189 = vmatpush1.msra.mxu0 0.0
          %3190 = vmatprep.subr.mxu0 0.0
          %3191 = vmatpush1.msra.mxu0 0.0
          %3192 = vmatprep.subr.mxu0 0.0
          %3193 = vmatpush1.msra.mxu0 0.0
          %3194 = vmatprep.subr.mxu0 0.0
          %3195 = vmatpush1.msra.mxu0 0.0
          %3196 = vmatprep.subr.mxu0 0.0
          %3197 = vmatpush1.msra.mxu0 0.0
          %3198 = vmatprep.subr.mxu0 0.0
          %3199 = vmatpush1.msra.mxu0 0.0
          %3200 = vmatprep.subr.mxu0 0.0
          %3201 = vmatpush1.msra.mxu0 0.0
          %3202 = vmatprep.subr.mxu0 0.0
          %3203 = vmatpush1.msra.mxu0 0.0
          %3204 = vmatprep.subr.mxu0 0.0
          %3205 = vmatpush1.msra.mxu0 0.0
          %3206 = vmatprep.subr.mxu0 0.0
          %3207 = vmatpush1.msra.mxu0 0.0
          %3208 = vmatprep.subr.mxu0 0.0
          %3209 = vmatpush1.msra.mxu0 0.0
          %3210 = vmatprep.subr.mxu0 0.0
          %3211 = vmatpush1.msra.mxu0 0.0
          %3212 = vmatprep.subr.mxu0 0.0
          %3213 = vmatpush1.msra.mxu0 0.0
          %3214 = vmatprep.subr.mxu0 0.0
          %3215 = vmatpush1.msra.mxu0 0.0
          %3216 = vmatprep.subr.mxu0 0.0
          %3217 = vmatpush1.msra.mxu0 0.0
          %3218 = vmatprep.subr.mxu0 0.0
          %3219 = vmatpush1.msra.mxu0 0.0
          %3220 = vmatprep.subr.mxu0 0.0
          %3221 = vmatpush1.msra.mxu0 0.0
          %3222 = vmatprep.subr.mxu0 0.0
          %3223 = vmatpush1.msra.mxu0 0.0
          %3224 = vmatprep.subr.mxu0 0.0
          %3225 = vmatpush1.msra.mxu0 0.0
          %3226 = vmatprep.subr.mxu0 0.0
          %3227 = vmatpush1.msra.mxu0 0.0
          %3228 = vmatprep.subr.mxu0 0.0
          %3229 = vmatpush1.msra.mxu0 0.0
          %3230 = vmatprep.subr.mxu0 0.0
          %3231 = vmatpush1.msra.mxu0 0.0
          %3232 = vmatprep.subr.mxu0 0.0
          %3233 = vmatpush1.msra.mxu0 0.0
          %3234 = vmatprep.subr.mxu0 0.0
          %3235 = vmatpush1.msra.mxu0 0.0
          %3236 = vmatprep.subr.mxu0 0.0
          %3237 = vmatpush1.msra.mxu0 0.0
          %3238 = vmatprep.subr.mxu0 0.0
          %3239 = vmatpush1.msra.mxu0 0.0
          %3240 = vmatprep.mubr.f32.mxu0 0.0
          %3241 = vmatmul.mubr.f32.gmra.mrb[0].mxu0 %v3168
          %v3242 = vpop.f32.mrb[0].mxu0
          %v3243 = vadd.f32 0.0, %v3242
          %v3244 = vpop.f32.mrb[0].mxu0
          %3245 = vmatprep.mubr.f32.mxu0 0.0
          %3246 = vmatmul.mubr.f32.gmra.mrb[0].mxu0 %v3171
          %v3247 = vpop.f32.mrb[0].mxu0
          %v3248 = vadd.f32 0.0, %v3247
          %v3249 = vpop.f32.mrb[0].mxu0
          %3250 = vdwg.mxu0
          %v3251 = vadd.f32 %v3158, %v3243
          %v3252 = vadd.f32 %v3159, %v3248
          %v3253 = vld [vmem:[%s3162 + $0x1] sm:$0xff]
          %v3254 = vld [vmem:[%s3162 + $0x9] sm:$0x3]
          %s3255 = scalar_lea.vmem %s3, 128
          %v3256 = vld [vmem:[%s3255] sm:$0x3f]
          %v3258 = vsel %vm1814, %v3253, 0
          %v3261 = vsel %vm1814, %v3254, 0
          %v3264 = vsel %vm1821, %v3256, 0
          %3266 = vmatprep.subr.mxu0 0.0
          %3267 = vmatpush1.msra.mxu0 %v3264
          %3268 = vmatprep.subr.mxu0 0.0
          %3269 = vmatpush1.msra.mxu0 0.0
          %3270 = vmatprep.subr.mxu0 0.0
          %3271 = vmatpush1.msra.mxu0 0.0
          %3272 = vmatprep.subr.mxu0 0.0
          %3273 = vmatpush1.msra.mxu0 0.0
          %3274 = vmatprep.subr.mxu0 0.0
          %3275 = vmatpush1.msra.mxu0 0.0
          %3276 = vmatprep.subr.mxu0 0.0
          %3277 = vmatpush1.msra.mxu0 0.0
          %3278 = vmatprep.subr.mxu0 0.0
          %3279 = vmatpush1.msra.mxu0 0.0
          %3280 = vmatprep.subr.mxu0 0.0
          %3281 = vmatpush1.msra.mxu0 0.0
          %3282 = vmatprep.subr.mxu0 0.0
          %3283 = vmatpush1.msra.mxu0 0.0
          %3284 = vmatprep.subr.mxu0 0.0
          %3285 = vmatpush1.msra.mxu0 0.0
          %3286 = vmatprep.subr.mxu0 0.0
          %3287 = vmatpush1.msra.mxu0 0.0
          %3288 = vmatprep.subr.mxu0 0.0
          %3289 = vmatpush1.msra.mxu0 0.0
          %3290 = vmatprep.subr.mxu0 0.0
          %3291 = vmatpush1.msra.mxu0 0.0
          %3292 = vmatprep.subr.mxu0 0.0
          %3293 = vmatpush1.msra.mxu0 0.0
          %3294 = vmatprep.subr.mxu0 0.0
          %3295 = vmatpush1.msra.mxu0 0.0
          %3296 = vmatprep.subr.mxu0 0.0
          %3297 = vmatpush1.msra.mxu0 0.0
          %3298 = vmatprep.subr.mxu0 0.0
          %3299 = vmatpush1.msra.mxu0 0.0
          %3300 = vmatprep.subr.mxu0 0.0
          %3301 = vmatpush1.msra.mxu0 0.0
          %3302 = vmatprep.subr.mxu0 0.0
          %3303 = vmatpush1.msra.mxu0 0.0
          %3304 = vmatprep.subr.mxu0 0.0
          %3305 = vmatpush1.msra.mxu0 0.0
          %3306 = vmatprep.subr.mxu0 0.0
          %3307 = vmatpush1.msra.mxu0 0.0
          %3308 = vmatprep.subr.mxu0 0.0
          %3309 = vmatpush1.msra.mxu0 0.0
          %3310 = vmatprep.subr.mxu0 0.0
          %3311 = vmatpush1.msra.mxu0 0.0
          %3312 = vmatprep.subr.mxu0 0.0
          %3313 = vmatpush1.msra.mxu0 0.0
          %3314 = vmatprep.subr.mxu0 0.0
          %3315 = vmatpush1.msra.mxu0 0.0
          %3316 = vmatprep.subr.mxu0 0.0
          %3317 = vmatpush1.msra.mxu0 0.0
          %3318 = vmatprep.subr.mxu0 0.0
          %3319 = vmatpush1.msra.mxu0 0.0
          %3320 = vmatprep.subr.mxu0 0.0
          %3321 = vmatpush1.msra.mxu0 0.0
          %3322 = vmatprep.subr.mxu0 0.0
          %3323 = vmatpush1.msra.mxu0 0.0
          %3324 = vmatprep.subr.mxu0 0.0
          %3325 = vmatpush1.msra.mxu0 0.0
          %3326 = vmatprep.subr.mxu0 0.0
          %3327 = vmatpush1.msra.mxu0 0.0
          %3328 = vmatprep.subr.mxu0 0.0
          %3329 = vmatpush1.msra.mxu0 0.0
          %3330 = vmatprep.mubr.f32.mxu0 0.0
          %3331 = vmatmul.mubr.f32.gmra.mrb[0].mxu0 %v3258
          %v3332 = vpop.f32.mrb[0].mxu0
          %v3333 = vadd.f32 0.0, %v3332
          %v3334 = vpop.f32.mrb[0].mxu0
          %3335 = vmatprep.mubr.f32.mxu0 0.0
          %3336 = vmatmul.mubr.f32.gmra.mrb[0].mxu0 %v3261
          %v3337 = vpop.f32.mrb[0].mxu0
          %v3338 = vadd.f32 0.0, %v3337
          %v3339 = vpop.f32.mrb[0].mxu0
          %3340 = vdwg.mxu0
          %v3341 = vadd.f32 %v3251, %v3333
          %v3342 = vadd.f32 %v3252, %v3338
          %v3343 = vld [vmem:[%s3162 + $0x2] sm:$0xff]
          %v3344 = vld [vmem:[%s3162 + $0xa] sm:$0x3]
          %s3345 = scalar_lea.vmem %s3, 136
          %v3346 = vld [vmem:[%s3345] sm:$0x3f]
          %v3348 = vsel %vm1814, %v3343, 0
          %v3351 = vsel %vm1814, %v3344, 0
          %v3354 = vsel %vm1821, %v3346, 0
          %3356 = vmatprep.subr.mxu0 0.0
          %3357 = vmatpush1.msra.mxu0 %v3354
          %3358 = vmatprep.subr.mxu0 0.0
          %3359 = vmatpush1.msra.mxu0 0.0
          %3360 = vmatprep.subr.mxu0 0.0
          %3361 = vmatpush1.msra.mxu0 0.0
          %3362 = vmatprep.subr.mxu0 0.0
          %3363 = vmatpush1.msra.mxu0 0.0
          %3364 = vmatprep.subr.mxu0 0.0
          %3365 = vmatpush1.msra.mxu0 0.0
          %3366 = vmatprep.subr.mxu0 0.0
          %3367 = vmatpush1.msra.mxu0 0.0
          %3368 = vmatprep.subr.mxu0 0.0
          %3369 = vmatpush1.msra.mxu0 0.0
          %3370 = vmatprep.subr.mxu0 0.0
          %3371 = vmatpush1.msra.mxu0 0.0
          %3372 = vmatprep.subr.mxu0 0.0
          %3373 = vmatpush1.msra.mxu0 0.0
          %3374 = vmatprep.subr.mxu0 0.0
          %3375 = vmatpush1.msra.mxu0 0.0
          %3376 = vmatprep.subr.mxu0 0.0
          %3377 = vmatpush1.msra.mxu0 0.0
          %3378 = vmatprep.subr.mxu0 0.0
          %3379 = vmatpush1.msra.mxu0 0.0
          %3380 = vmatprep.subr.mxu0 0.0
          %3381 = vmatpush1.msra.mxu0 0.0
          %3382 = vmatprep.subr.mxu0 0.0
          %3383 = vmatpush1.msra.mxu0 0.0
          %3384 = vmatprep.subr.mxu0 0.0
          %3385 = vmatpush1.msra.mxu0 0.0
          %3386 = vmatprep.subr.mxu0 0.0
          %3387 = vmatpush1.msra.mxu0 0.0
          %3388 = vmatprep.subr.mxu0 0.0
          %3389 = vmatpush1.msra.mxu0 0.0
          %3390 = vmatprep.subr.mxu0 0.0
          %3391 = vmatpush1.msra.mxu0 0.0
          %3392 = vmatprep.subr.mxu0 0.0
          %3393 = vmatpush1.msra.mxu0 0.0
          %3394 = vmatprep.subr.mxu0 0.0
          %3395 = vmatpush1.msra.mxu0 0.0
          %3396 = vmatprep.subr.mxu0 0.0
          %3397 = vmatpush1.msra.mxu0 0.0
          %3398 = vmatprep.subr.mxu0 0.0
          %3399 = vmatpush1.msra.mxu0 0.0
          %3400 = vmatprep.subr.mxu0 0.0
          %3401 = vmatpush1.msra.mxu0 0.0
          %3402 = vmatprep.subr.mxu0 0.0
          %3403 = vmatpush1.msra.mxu0 0.0
          %3404 = vmatprep.subr.mxu0 0.0
          %3405 = vmatpush1.msra.mxu0 0.0
          %3406 = vmatprep.subr.mxu0 0.0
          %3407 = vmatpush1.msra.mxu0 0.0
          %3408 = vmatprep.subr.mxu0 0.0
          %3409 = vmatpush1.msra.mxu0 0.0
          %3410 = vmatprep.subr.mxu0 0.0
          %3411 = vmatpush1.msra.mxu0 0.0
          %3412 = vmatprep.subr.mxu0 0.0
          %3413 = vmatpush1.msra.mxu0 0.0
          %3414 = vmatprep.subr.mxu0 0.0
          %3415 = vmatpush1.msra.mxu0 0.0
          %3416 = vmatprep.subr.mxu0 0.0
          %3417 = vmatpush1.msra.mxu0 0.0
          %3418 = vmatprep.subr.mxu0 0.0
          %3419 = vmatpush1.msra.mxu0 0.0
          %3420 = vmatprep.mubr.f32.mxu0 0.0
          %3421 = vmatmul.mubr.f32.gmra.mrb[0].mxu0 %v3348
          %v3422 = vpop.f32.mrb[0].mxu0
          %v3423 = vadd.f32 0.0, %v3422
          %v3424 = vpop.f32.mrb[0].mxu0
          %3425 = vmatprep.mubr.f32.mxu0 0.0
          %3426 = vmatmul.mubr.f32.gmra.mrb[0].mxu0 %v3351
          %v3427 = vpop.f32.mrb[0].mxu0
          %v3428 = vadd.f32 0.0, %v3427
          %v3429 = vpop.f32.mrb[0].mxu0
          %3430 = vdwg.mxu0
          %v3431 = vadd.f32 %v3341, %v3423
          %v3432 = vadd.f32 %v3342, %v3428
          %v3433 = vld [vmem:[%s3162 + $0x3] sm:$0xff]
          %v3434 = vld [vmem:[%s3162 + $0xb] sm:$0x3]
          %s3435 = scalar_lea.vmem %s3, 144
          %v3436 = vld [vmem:[%s3435] sm:$0x3f]
          %v3438 = vsel %vm1814, %v3433, 0
          %v3441 = vsel %vm1814, %v3434, 0
          %v3444 = vsel %vm1821, %v3436, 0
          %3446 = vmatprep.subr.mxu0 0.0
          %3447 = vmatpush1.msra.mxu0 %v3444
          %3448 = vmatprep.subr.mxu0 0.0
          %3449 = vmatpush1.msra.mxu0 0.0
          %3450 = vmatprep.subr.mxu0 0.0
          %3451 = vmatpush1.msra.mxu0 0.0
          %3452 = vmatprep.subr.mxu0 0.0
          %3453 = vmatpush1.msra.mxu0 0.0
          %3454 = vmatprep.subr.mxu0 0.0
          %3455 = vmatpush1.msra.mxu0 0.0
          %3456 = vmatprep.subr.mxu0 0.0
          %3457 = vmatpush1.msra.mxu0 0.0
          %3458 = vmatprep.subr.mxu0 0.0
          %3459 = vmatpush1.msra.mxu0 0.0
          %3460 = vmatprep.subr.mxu0 0.0
          %3461 = vmatpush1.msra.mxu0 0.0
          %3462 = vmatprep.subr.mxu0 0.0
          %3463 = vmatpush1.msra.mxu0 0.0
          %3464 = vmatprep.subr.mxu0 0.0
          %3465 = vmatpush1.msra.mxu0 0.0
          %3466 = vmatprep.subr.mxu0 0.0
          %3467 = vmatpush1.msra.mxu0 0.0
          %3468 = vmatprep.subr.mxu0 0.0
          %3469 = vmatpush1.msra.mxu0 0.0
          %3470 = vmatprep.subr.mxu0 0.0
          %3471 = vmatpush1.msra.mxu0 0.0
          %3472 = vmatprep.subr.mxu0 0.0
          %3473 = vmatpush1.msra.mxu0 0.0
          %3474 = vmatprep.subr.mxu0 0.0
          %3475 = vmatpush1.msra.mxu0 0.0
          %3476 = vmatprep.subr.mxu0 0.0
          %3477 = vmatpush1.msra.mxu0 0.0
          %3478 = vmatprep.subr.mxu0 0.0
          %3479 = vmatpush1.msra.mxu0 0.0
          %3480 = vmatprep.subr.mxu0 0.0
          %3481 = vmatpush1.msra.mxu0 0.0
          %3482 = vmatprep.subr.mxu0 0.0
          %3483 = vmatpush1.msra.mxu0 0.0
          %3484 = vmatprep.subr.mxu0 0.0
          %3485 = vmatpush1.msra.mxu0 0.0
          %3486 = vmatprep.subr.mxu0 0.0
          %3487 = vmatpush1.msra.mxu0 0.0
          %3488 = vmatprep.subr.mxu0 0.0
          %3489 = vmatpush1.msra.mxu0 0.0
          %3490 = vmatprep.subr.mxu0 0.0
          %3491 = vmatpush1.msra.mxu0 0.0
          %3492 = vmatprep.subr.mxu0 0.0
          %3493 = vmatpush1.msra.mxu0 0.0
          %3494 = vmatprep.subr.mxu0 0.0
          %3495 = vmatpush1.msra.mxu0 0.0
          %3496 = vmatprep.subr.mxu0 0.0
          %3497 = vmatpush1.msra.mxu0 0.0
          %3498 = vmatprep.subr.mxu0 0.0
          %3499 = vmatpush1.msra.mxu0 0.0
          %3500 = vmatprep.subr.mxu0 0.0
          %3501 = vmatpush1.msra.mxu0 0.0
          %3502 = vmatprep.subr.mxu0 0.0
          %3503 = vmatpush1.msra.mxu0 0.0
          %3504 = vmatprep.subr.mxu0 0.0
          %3505 = vmatpush1.msra.mxu0 0.0
          %3506 = vmatprep.subr.mxu0 0.0
          %3507 = vmatpush1.msra.mxu0 0.0
          %3508 = vmatprep.subr.mxu0 0.0
          %3509 = vmatpush1.msra.mxu0 0.0
          %3510 = vmatprep.mubr.f32.mxu0 0.0
          %3511 = vmatmul.mubr.f32.gmra.mrb[0].mxu0 %v3438
          %v3512 = vpop.f32.mrb[0].mxu0
          %v3513 = vadd.f32 0.0, %v3512
          %v3514 = vpop.f32.mrb[0].mxu0
          %3515 = vmatprep.mubr.f32.mxu0 0.0
          %3516 = vmatmul.mubr.f32.gmra.mrb[0].mxu0 %v3441
          %v3517 = vpop.f32.mrb[0].mxu0
          %v3518 = vadd.f32 0.0, %v3517
          %v3519 = vpop.f32.mrb[0].mxu0
          %3520 = vdwg.mxu0
          %v3521 = vadd.f32 %v3431, %v3513
          %v3522 = vadd.f32 %v3432, %v3518
          %v3523 = vld [vmem:[%s3162 + $0x4] sm:$0xff]
          %v3524 = vld [vmem:[%s3162 + $0xc] sm:$0x3]
          %s3525 = scalar_lea.vmem %s3, 152
          %v3526 = vld [vmem:[%s3525] sm:$0x3f]
          %v3528 = vsel %vm1814, %v3523, 0
          %v3531 = vsel %vm1814, %v3524, 0
          %v3534 = vsel %vm1821, %v3526, 0
          %3536 = vmatprep.subr.mxu0 0.0
          %3537 = vmatpush1.msra.mxu0 %v3534
          %3538 = vmatprep.subr.mxu0 0.0
          %3539 = vmatpush1.msra.mxu0 0.0
          %3540 = vmatprep.subr.mxu0 0.0
          %3541 = vmatpush1.msra.mxu0 0.0
          %3542 = vmatprep.subr.mxu0 0.0
          %3543 = vmatpush1.msra.mxu0 0.0
          %3544 = vmatprep.subr.mxu0 0.0
          %3545 = vmatpush1.msra.mxu0 0.0
          %3546 = vmatprep.subr.mxu0 0.0
          %3547 = vmatpush1.msra.mxu0 0.0
          %3548 = vmatprep.subr.mxu0 0.0
          %3549 = vmatpush1.msra.mxu0 0.0
          %3550 = vmatprep.subr.mxu0 0.0
          %3551 = vmatpush1.msra.mxu0 0.0
          %3552 = vmatprep.subr.mxu0 0.0
          %3553 = vmatpush1.msra.mxu0 0.0
          %3554 = vmatprep.subr.mxu0 0.0
          %3555 = vmatpush1.msra.mxu0 0.0
          %3556 = vmatprep.subr.mxu0 0.0
          %3557 = vmatpush1.msra.mxu0 0.0
          %3558 = vmatprep.subr.mxu0 0.0
          %3559 = vmatpush1.msra.mxu0 0.0
          %3560 = vmatprep.subr.mxu0 0.0
          %3561 = vmatpush1.msra.mxu0 0.0
          %3562 = vmatprep.subr.mxu0 0.0
          %3563 = vmatpush1.msra.mxu0 0.0
          %3564 = vmatprep.subr.mxu0 0.0
          %3565 = vmatpush1.msra.mxu0 0.0
          %3566 = vmatprep.subr.mxu0 0.0
          %3567 = vmatpush1.msra.mxu0 0.0
          %3568 = vmatprep.subr.mxu0 0.0
          %3569 = vmatpush1.msra.mxu0 0.0
          %3570 = vmatprep.subr.mxu0 0.0
          %3571 = vmatpush1.msra.mxu0 0.0
          %3572 = vmatprep.subr.mxu0 0.0
          %3573 = vmatpush1.msra.mxu0 0.0
          %3574 = vmatprep.subr.mxu0 0.0
          %3575 = vmatpush1.msra.mxu0 0.0
          %3576 = vmatprep.subr.mxu0 0.0
          %3577 = vmatpush1.msra.mxu0 0.0
          %3578 = vmatprep.subr.mxu0 0.0
          %3579 = vmatpush1.msra.mxu0 0.0
          %3580 = vmatprep.subr.mxu0 0.0
          %3581 = vmatpush1.msra.mxu0 0.0
          %3582 = vmatprep.subr.mxu0 0.0
          %3583 = vmatpush1.msra.mxu0 0.0
          %3584 = vmatprep.subr.mxu0 0.0
          %3585 = vmatpush1.msra.mxu0 0.0
          %3586 = vmatprep.subr.mxu0 0.0
          %3587 = vmatpush1.msra.mxu0 0.0
          %3588 = vmatprep.subr.mxu0 0.0
          %3589 = vmatpush1.msra.mxu0 0.0
          %3590 = vmatprep.subr.mxu0 0.0
          %3591 = vmatpush1.msra.mxu0 0.0
          %3592 = vmatprep.subr.mxu0 0.0
          %3593 = vmatpush1.msra.mxu0 0.0
          %3594 = vmatprep.subr.mxu0 0.0
          %3595 = vmatpush1.msra.mxu0 0.0
          %3596 = vmatprep.subr.mxu0 0.0
          %3597 = vmatpush1.msra.mxu0 0.0
          %3598 = vmatprep.subr.mxu0 0.0
          %3599 = vmatpush1.msra.mxu0 0.0
          %3600 = vmatprep.mubr.f32.mxu0 0.0
          %3601 = vmatmul.mubr.f32.gmra.mrb[0].mxu0 %v3528
          %v3602 = vpop.f32.mrb[0].mxu0
          %v3603 = vadd.f32 0.0, %v3602
          %v3604 = vpop.f32.mrb[0].mxu0
          %3605 = vmatprep.mubr.f32.mxu0 0.0
          %3606 = vmatmul.mubr.f32.gmra.mrb[0].mxu0 %v3531
          %v3607 = vpop.f32.mrb[0].mxu0
          %v3608 = vadd.f32 0.0, %v3607
          %v3609 = vpop.f32.mrb[0].mxu0
          %3610 = vdwg.mxu0
          %v3611 = vadd.f32 %v3521, %v3603
          %v3612 = vadd.f32 %v3522, %v3608
          %s3613 = sadd.s32 %s1800, 4
          %s3614 = smul.u32 %s3613, 16
          %s3615 = scalar_lea.vmem [#allocation4], %s3614
          %v3616 = vld [vmem:[%s3615] sm:$0xff]
          %v3617 = vld [vmem:[%s3615 + $0x8] sm:$0x3]
          %s3618 = scalar_lea.vmem %s3, 160
          %v3619 = vld [vmem:[%s3618] sm:$0x3f]
          %v3621 = vsel %vm1814, %v3616, 0
          %v3624 = vsel %vm1814, %v3617, 0
          %v3627 = vsel %vm1821, %v3619, 0
          %3629 = vmatprep.subr.mxu0 0.0
          %3630 = vmatpush1.msra.mxu0 %v3627
          %3631 = vmatprep.subr.mxu0 0.0
          %3632 = vmatpush1.msra.mxu0 0.0
          %3633 = vmatprep.subr.mxu0 0.0
          %3634 = vmatpush1.msra.mxu0 0.0
          %3635 = vmatprep.subr.mxu0 0.0
          %3636 = vmatpush1.msra.mxu0 0.0
          %3637 = vmatprep.subr.mxu0 0.0
          %3638 = vmatpush1.msra.mxu0 0.0
          %3639 = vmatprep.subr.mxu0 0.0
          %3640 = vmatpush1.msra.mxu0 0.0
          %3641 = vmatprep.subr.mxu0 0.0
          %3642 = vmatpush1.msra.mxu0 0.0
          %3643 = vmatprep.subr.mxu0 0.0
          %3644 = vmatpush1.msra.mxu0 0.0
          %3645 = vmatprep.subr.mxu0 0.0
          %3646 = vmatpush1.msra.mxu0 0.0
          %3647 = vmatprep.subr.mxu0 0.0
          %3648 = vmatpush1.msra.mxu0 0.0
          %3649 = vmatprep.subr.mxu0 0.0
          %3650 = vmatpush1.msra.mxu0 0.0
          %3651 = vmatprep.subr.mxu0 0.0
          %3652 = vmatpush1.msra.mxu0 0.0
          %3653 = vmatprep.subr.mxu0 0.0
          %3654 = vmatpush1.msra.mxu0 0.0
          %3655 = vmatprep.subr.mxu0 0.0
          %3656 = vmatpush1.msra.mxu0 0.0
          %3657 = vmatprep.subr.mxu0 0.0
          %3658 = vmatpush1.msra.mxu0 0.0
          %3659 = vmatprep.subr.mxu0 0.0
          %3660 = vmatpush1.msra.mxu0 0.0
          %3661 = vmatprep.subr.mxu0 0.0
          %3662 = vmatpush1.msra.mxu0 0.0
          %3663 = vmatprep.subr.mxu0 0.0
          %3664 = vmatpush1.msra.mxu0 0.0
          %3665 = vmatprep.subr.mxu0 0.0
          %3666 = vmatpush1.msra.mxu0 0.0
          %3667 = vmatprep.subr.mxu0 0.0
          %3668 = vmatpush1.msra.mxu0 0.0
          %3669 = vmatprep.subr.mxu0 0.0
          %3670 = vmatpush1.msra.mxu0 0.0
          %3671 = vmatprep.subr.mxu0 0.0
          %3672 = vmatpush1.msra.mxu0 0.0
          %3673 = vmatprep.subr.mxu0 0.0
          %3674 = vmatpush1.msra.mxu0 0.0
          %3675 = vmatprep.subr.mxu0 0.0
          %3676 = vmatpush1.msra.mxu0 0.0
          %3677 = vmatprep.subr.mxu0 0.0
          %3678 = vmatpush1.msra.mxu0 0.0
          %3679 = vmatprep.subr.mxu0 0.0
          %3680 = vmatpush1.msra.mxu0 0.0
          %3681 = vmatprep.subr.mxu0 0.0
          %3682 = vmatpush1.msra.mxu0 0.0
          %3683 = vmatprep.subr.mxu0 0.0
          %3684 = vmatpush1.msra.mxu0 0.0
          %3685 = vmatprep.subr.mxu0 0.0
          %3686 = vmatpush1.msra.mxu0 0.0
          %3687 = vmatprep.subr.mxu0 0.0
          %3688 = vmatpush1.msra.mxu0 0.0
          %3689 = vmatprep.subr.mxu0 0.0
          %3690 = vmatpush1.msra.mxu0 0.0
          %3691 = vmatprep.subr.mxu0 0.0
          %3692 = vmatpush1.msra.mxu0 0.0
          %3693 = vmatprep.mubr.f32.mxu0 0.0
          %3694 = vmatmul.mubr.f32.gmra.mrb[0].mxu0 %v3621
          %v3695 = vpop.f32.mrb[0].mxu0
          %v3696 = vadd.f32 0.0, %v3695
          %v3697 = vpop.f32.mrb[0].mxu0
          %3698 = vmatprep.mubr.f32.mxu0 0.0
          %3699 = vmatmul.mubr.f32.gmra.mrb[0].mxu0 %v3624
          %v3700 = vpop.f32.mrb[0].mxu0
          %v3701 = vadd.f32 0.0, %v3700
          %v3702 = vpop.f32.mrb[0].mxu0
          %3703 = vdwg.mxu0
          %v3704 = vadd.f32 %v3611, %v3696
          %v3705 = vadd.f32 %v3612, %v3701
          %v3706 = vld [vmem:[%s3615 + $0x1] sm:$0xff]
          %v3707 = vld [vmem:[%s3615 + $0x9] sm:$0x3]
          %s3708 = scalar_lea.vmem %s3, 168
          %v3709 = vld [vmem:[%s3708] sm:$0x3f]
          %v3711 = vsel %vm1814, %v3706, 0
          %v3714 = vsel %vm1814, %v3707, 0
          %v3717 = vsel %vm1821, %v3709, 0
          %3719 = vmatprep.subr.mxu0 0.0
          %3720 = vmatpush1.msra.mxu0 %v3717
          %3721 = vmatprep.subr.mxu0 0.0
          %3722 = vmatpush1.msra.mxu0 0.0
          %3723 = vmatprep.subr.mxu0 0.0
          %3724 = vmatpush1.msra.mxu0 0.0
          %3725 = vmatprep.subr.mxu0 0.0
          %3726 = vmatpush1.msra.mxu0 0.0
          %3727 = vmatprep.subr.mxu0 0.0
          %3728 = vmatpush1.msra.mxu0 0.0
          %3729 = vmatprep.subr.mxu0 0.0
          %3730 = vmatpush1.msra.mxu0 0.0
          %3731 = vmatprep.subr.mxu0 0.0
          %3732 = vmatpush1.msra.mxu0 0.0
          %3733 = vmatprep.subr.mxu0 0.0
          %3734 = vmatpush1.msra.mxu0 0.0
          %3735 = vmatprep.subr.mxu0 0.0
          %3736 = vmatpush1.msra.mxu0 0.0
          %3737 = vmatprep.subr.mxu0 0.0
          %3738 = vmatpush1.msra.mxu0 0.0
          %3739 = vmatprep.subr.mxu0 0.0
          %3740 = vmatpush1.msra.mxu0 0.0
          %3741 = vmatprep.subr.mxu0 0.0
          %3742 = vmatpush1.msra.mxu0 0.0
          %3743 = vmatprep.subr.mxu0 0.0
          %3744 = vmatpush1.msra.mxu0 0.0
          %3745 = vmatprep.subr.mxu0 0.0
          %3746 = vmatpush1.msra.mxu0 0.0
          %3747 = vmatprep.subr.mxu0 0.0
          %3748 = vmatpush1.msra.mxu0 0.0
          %3749 = vmatprep.subr.mxu0 0.0
          %3750 = vmatpush1.msra.mxu0 0.0
          %3751 = vmatprep.subr.mxu0 0.0
          %3752 = vmatpush1.msra.mxu0 0.0
          %3753 = vmatprep.subr.mxu0 0.0
          %3754 = vmatpush1.msra.mxu0 0.0
          %3755 = vmatprep.subr.mxu0 0.0
          %3756 = vmatpush1.msra.mxu0 0.0
          %3757 = vmatprep.subr.mxu0 0.0
          %3758 = vmatpush1.msra.mxu0 0.0
          %3759 = vmatprep.subr.mxu0 0.0
          %3760 = vmatpush1.msra.mxu0 0.0
          %3761 = vmatprep.subr.mxu0 0.0
          %3762 = vmatpush1.msra.mxu0 0.0
          %3763 = vmatprep.subr.mxu0 0.0
          %3764 = vmatpush1.msra.mxu0 0.0
          %3765 = vmatprep.subr.mxu0 0.0
          %3766 = vmatpush1.msra.mxu0 0.0
          %3767 = vmatprep.subr.mxu0 0.0
          %3768 = vmatpush1.msra.mxu0 0.0
          %3769 = vmatprep.subr.mxu0 0.0
          %3770 = vmatpush1.msra.mxu0 0.0
          %3771 = vmatprep.subr.mxu0 0.0
          %3772 = vmatpush1.msra.mxu0 0.0
          %3773 = vmatprep.subr.mxu0 0.0
          %3774 = vmatpush1.msra.mxu0 0.0
          %3775 = vmatprep.subr.mxu0 0.0
          %3776 = vmatpush1.msra.mxu0 0.0
          %3777 = vmatprep.subr.mxu0 0.0
          %3778 = vmatpush1.msra.mxu0 0.0
          %3779 = vmatprep.subr.mxu0 0.0
          %3780 = vmatpush1.msra.mxu0 0.0
          %3781 = vmatprep.subr.mxu0 0.0
          %3782 = vmatpush1.msra.mxu0 0.0
          %3783 = vmatprep.mubr.f32.mxu0 0.0
          %3784 = vmatmul.mubr.f32.gmra.mrb[0].mxu0 %v3711
          %v3785 = vpop.f32.mrb[0].mxu0
          %v3786 = vadd.f32 0.0, %v3785
          %v3787 = vpop.f32.mrb[0].mxu0
          %3788 = vmatprep.mubr.f32.mxu0 0.0
          %3789 = vmatmul.mubr.f32.gmra.mrb[0].mxu0 %v3714
          %v3790 = vpop.f32.mrb[0].mxu0
          %v3791 = vadd.f32 0.0, %v3790
          %v3792 = vpop.f32.mrb[0].mxu0
          %3793 = vdwg.mxu0
          %v3794 = vadd.f32 %v3704, %v3786
          %v3795 = vadd.f32 %v3705, %v3791
          %v3796 = vld [vmem:[%s3615 + $0x2] sm:$0xff]
          %v3797 = vld [vmem:[%s3615 + $0xa] sm:$0x3]
          %s3798 = scalar_lea.vmem %s3, 176
          %v3799 = vld [vmem:[%s3798] sm:$0x3f]
          %v3801 = vsel %vm1814, %v3796, 0
          %v3804 = vsel %vm1814, %v3797, 0
          %v3807 = vsel %vm1821, %v3799, 0
          %3809 = vmatprep.subr.mxu0 0.0
          %3810 = vmatpush1.msra.mxu0 %v3807
          %3811 = vmatprep.subr.mxu0 0.0
          %3812 = vmatpush1.msra.mxu0 0.0
          %3813 = vmatprep.subr.mxu0 0.0
          %3814 = vmatpush1.msra.mxu0 0.0
          %3815 = vmatprep.subr.mxu0 0.0
          %3816 = vmatpush1.msra.mxu0 0.0
          %3817 = vmatprep.subr.mxu0 0.0
          %3818 = vmatpush1.msra.mxu0 0.0
          %3819 = vmatprep.subr.mxu0 0.0
          %3820 = vmatpush1.msra.mxu0 0.0
          %3821 = vmatprep.subr.mxu0 0.0
          %3822 = vmatpush1.msra.mxu0 0.0
          %3823 = vmatprep.subr.mxu0 0.0
          %3824 = vmatpush1.msra.mxu0 0.0
          %3825 = vmatprep.subr.mxu0 0.0
          %3826 = vmatpush1.msra.mxu0 0.0
          %3827 = vmatprep.subr.mxu0 0.0
          %3828 = vmatpush1.msra.mxu0 0.0
          %3829 = vmatprep.subr.mxu0 0.0
          %3830 = vmatpush1.msra.mxu0 0.0
          %3831 = vmatprep.subr.mxu0 0.0
          %3832 = vmatpush1.msra.mxu0 0.0
          %3833 = vmatprep.subr.mxu0 0.0
          %3834 = vmatpush1.msra.mxu0 0.0
          %3835 = vmatprep.subr.mxu0 0.0
          %3836 = vmatpush1.msra.mxu0 0.0
          %3837 = vmatprep.subr.mxu0 0.0
          %3838 = vmatpush1.msra.mxu0 0.0
          %3839 = vmatprep.subr.mxu0 0.0
          %3840 = vmatpush1.msra.mxu0 0.0
          %3841 = vmatprep.subr.mxu0 0.0
          %3842 = vmatpush1.msra.mxu0 0.0
          %3843 = vmatprep.subr.mxu0 0.0
          %3844 = vmatpush1.msra.mxu0 0.0
          %3845 = vmatprep.subr.mxu0 0.0
          %3846 = vmatpush1.msra.mxu0 0.0
          %3847 = vmatprep.subr.mxu0 0.0
          %3848 = vmatpush1.msra.mxu0 0.0
          %3849 = vmatprep.subr.mxu0 0.0
          %3850 = vmatpush1.msra.mxu0 0.0
          %3851 = vmatprep.subr.mxu0 0.0
          %3852 = vmatpush1.msra.mxu0 0.0
          %3853 = vmatprep.subr.mxu0 0.0
          %3854 = vmatpush1.msra.mxu0 0.0
          %3855 = vmatprep.subr.mxu0 0.0
          %3856 = vmatpush1.msra.mxu0 0.0
          %3857 = vmatprep.subr.mxu0 0.0
          %3858 = vmatpush1.msra.mxu0 0.0
          %3859 = vmatprep.subr.mxu0 0.0
          %3860 = vmatpush1.msra.mxu0 0.0
          %3861 = vmatprep.subr.mxu0 0.0
          %3862 = vmatpush1.msra.mxu0 0.0
          %3863 = vmatprep.subr.mxu0 0.0
          %3864 = vmatpush1.msra.mxu0 0.0
          %3865 = vmatprep.subr.mxu0 0.0
          %3866 = vmatpush1.msra.mxu0 0.0
          %3867 = vmatprep.subr.mxu0 0.0
          %3868 = vmatpush1.msra.mxu0 0.0
          %3869 = vmatprep.subr.mxu0 0.0
          %3870 = vmatpush1.msra.mxu0 0.0
          %3871 = vmatprep.subr.mxu0 0.0
          %3872 = vmatpush1.msra.mxu0 0.0
          %3873 = vmatprep.mubr.f32.mxu0 0.0
          %3874 = vmatmul.mubr.f32.gmra.mrb[0].mxu0 %v3801
          %v3875 = vpop.f32.mrb[0].mxu0
          %v3876 = vadd.f32 0.0, %v3875
          %v3877 = vpop.f32.mrb[0].mxu0
          %3878 = vmatprep.mubr.f32.mxu0 0.0
          %3879 = vmatmul.mubr.f32.gmra.mrb[0].mxu0 %v3804
          %v3880 = vpop.f32.mrb[0].mxu0
          %v3881 = vadd.f32 0.0, %v3880
          %v3882 = vpop.f32.mrb[0].mxu0
          %3883 = vdwg.mxu0
          %v3884 = vadd.f32 %v3794, %v3876
          %v3885 = vadd.f32 %v3795, %v3881
          %v3886 = vld [vmem:[%s3615 + $0x3] sm:$0xff]
          %v3887 = vld [vmem:[%s3615 + $0xb] sm:$0x3]
          %s3888 = scalar_lea.vmem %s3, 184
          %v3889 = vld [vmem:[%s3888] sm:$0x3f]
          %v3891 = vsel %vm1814, %v3886, 0
          %v3894 = vsel %vm1814, %v3887, 0
          %v3897 = vsel %vm1821, %v3889, 0
          %3899 = vmatprep.subr.mxu0 0.0
          %3900 = vmatpush1.msra.mxu0 %v3897
          %3901 = vmatprep.subr.mxu0 0.0
          %3902 = vmatpush1.msra.mxu0 0.0
          %3903 = vmatprep.subr.mxu0 0.0
          %3904 = vmatpush1.msra.mxu0 0.0
          %3905 = vmatprep.subr.mxu0 0.0
          %3906 = vmatpush1.msra.mxu0 0.0
          %3907 = vmatprep.subr.mxu0 0.0
          %3908 = vmatpush1.msra.mxu0 0.0
          %3909 = vmatprep.subr.mxu0 0.0
          %3910 = vmatpush1.msra.mxu0 0.0
          %3911 = vmatprep.subr.mxu0 0.0
          %3912 = vmatpush1.msra.mxu0 0.0
          %3913 = vmatprep.subr.mxu0 0.0
          %3914 = vmatpush1.msra.mxu0 0.0
          %3915 = vmatprep.subr.mxu0 0.0
          %3916 = vmatpush1.msra.mxu0 0.0
          %3917 = vmatprep.subr.mxu0 0.0
          %3918 = vmatpush1.msra.mxu0 0.0
          %3919 = vmatprep.subr.mxu0 0.0
          %3920 = vmatpush1.msra.mxu0 0.0
          %3921 = vmatprep.subr.mxu0 0.0
          %3922 = vmatpush1.msra.mxu0 0.0
          %3923 = vmatprep.subr.mxu0 0.0
          %3924 = vmatpush1.msra.mxu0 0.0
          %3925 = vmatprep.subr.mxu0 0.0
          %3926 = vmatpush1.msra.mxu0 0.0
          %3927 = vmatprep.subr.mxu0 0.0
          %3928 = vmatpush1.msra.mxu0 0.0
          %3929 = vmatprep.subr.mxu0 0.0
          %3930 = vmatpush1.msra.mxu0 0.0
          %3931 = vmatprep.subr.mxu0 0.0
          %3932 = vmatpush1.msra.mxu0 0.0
          %3933 = vmatprep.subr.mxu0 0.0
          %3934 = vmatpush1.msra.mxu0 0.0
          %3935 = vmatprep.subr.mxu0 0.0
          %3936 = vmatpush1.msra.mxu0 0.0
          %3937 = vmatprep.subr.mxu0 0.0
          %3938 = vmatpush1.msra.mxu0 0.0
          %3939 = vmatprep.subr.mxu0 0.0
          %3940 = vmatpush1.msra.mxu0 0.0
          %3941 = vmatprep.subr.mxu0 0.0
          %3942 = vmatpush1.msra.mxu0 0.0
          %3943 = vmatprep.subr.mxu0 0.0
          %3944 = vmatpush1.msra.mxu0 0.0
          %3945 = vmatprep.subr.mxu0 0.0
          %3946 = vmatpush1.msra.mxu0 0.0
          %3947 = vmatprep.subr.mxu0 0.0
          %3948 = vmatpush1.msra.mxu0 0.0
          %3949 = vmatprep.subr.mxu0 0.0
          %3950 = vmatpush1.msra.mxu0 0.0
          %3951 = vmatprep.subr.mxu0 0.0
          %3952 = vmatpush1.msra.mxu0 0.0
          %3953 = vmatprep.subr.mxu0 0.0
          %3954 = vmatpush1.msra.mxu0 0.0
          %3955 = vmatprep.subr.mxu0 0.0
          %3956 = vmatpush1.msra.mxu0 0.0
          %3957 = vmatprep.subr.mxu0 0.0
          %3958 = vmatpush1.msra.mxu0 0.0
          %3959 = vmatprep.subr.mxu0 0.0
          %3960 = vmatpush1.msra.mxu0 0.0
          %3961 = vmatprep.subr.mxu0 0.0
          %3962 = vmatpush1.msra.mxu0 0.0
          %3963 = vmatprep.mubr.f32.mxu0 0.0
          %3964 = vmatmul.mubr.f32.gmra.mrb[0].mxu0 %v3891
          %v3965 = vpop.f32.mrb[0].mxu0
          %v3966 = vadd.f32 0.0, %v3965
          %v3967 = vpop.f32.mrb[0].mxu0
          %3968 = vmatprep.mubr.f32.mxu0 0.0
          %3969 = vmatmul.mubr.f32.gmra.mrb[0].mxu0 %v3894
          %v3970 = vpop.f32.mrb[0].mxu0
          %v3971 = vadd.f32 0.0, %v3970
          %v3972 = vpop.f32.mrb[0].mxu0
          %3973 = vdwg.mxu0
          %v3974 = vadd.f32 %v3884, %v3966
          %v3975 = vadd.f32 %v3885, %v3971
          %v3976 = vld [vmem:[%s3615 + $0x4] sm:$0xff]
          %v3977 = vld [vmem:[%s3615 + $0xc] sm:$0x3]
          %s3978 = scalar_lea.vmem %s3, 192
          %v3979 = vld [vmem:[%s3978] sm:$0x3f]
          %v3981 = vsel %vm1814, %v3976, 0
          %v3984 = vsel %vm1814, %v3977, 0
          %v3987 = vsel %vm1821, %v3979, 0
          %3989 = vmatprep.subr.mxu0 0.0
          %3990 = vmatpush1.msra.mxu0 %v3987
          %3991 = vmatprep.subr.mxu0 0.0
          %3992 = vmatpush1.msra.mxu0 0.0
          %3993 = vmatprep.subr.mxu0 0.0
          %3994 = vmatpush1.msra.mxu0 0.0
          %3995 = vmatprep.subr.mxu0 0.0
          %3996 = vmatpush1.msra.mxu0 0.0
          %3997 = vmatprep.subr.mxu0 0.0
          %3998 = vmatpush1.msra.mxu0 0.0
          %3999 = vmatprep.subr.mxu0 0.0
          %4000 = vmatpush1.msra.mxu0 0.0
          %4001 = vmatprep.subr.mxu0 0.0
          %4002 = vmatpush1.msra.mxu0 0.0
          %4003 = vmatprep.subr.mxu0 0.0
          %4004 = vmatpush1.msra.mxu0 0.0
          %4005 = vmatprep.subr.mxu0 0.0
          %4006 = vmatpush1.msra.mxu0 0.0
          %4007 = vmatprep.subr.mxu0 0.0
          %4008 = vmatpush1.msra.mxu0 0.0
          %4009 = vmatprep.subr.mxu0 0.0
          %4010 = vmatpush1.msra.mxu0 0.0
          %4011 = vmatprep.subr.mxu0 0.0
          %4012 = vmatpush1.msra.mxu0 0.0
          %4013 = vmatprep.subr.mxu0 0.0
          %4014 = vmatpush1.msra.mxu0 0.0
          %4015 = vmatprep.subr.mxu0 0.0
          %4016 = vmatpush1.msra.mxu0 0.0
          %4017 = vmatprep.subr.mxu0 0.0
          %4018 = vmatpush1.msra.mxu0 0.0
          %4019 = vmatprep.subr.mxu0 0.0
          %4020 = vmatpush1.msra.mxu0 0.0
          %4021 = vmatprep.subr.mxu0 0.0
          %4022 = vmatpush1.msra.mxu0 0.0
          %4023 = vmatprep.subr.mxu0 0.0
          %4024 = vmatpush1.msra.mxu0 0.0
          %4025 = vmatprep.subr.mxu0 0.0
          %4026 = vmatpush1.msra.mxu0 0.0
          %4027 = vmatprep.subr.mxu0 0.0
          %4028 = vmatpush1.msra.mxu0 0.0
          %4029 = vmatprep.subr.mxu0 0.0
          %4030 = vmatpush1.msra.mxu0 0.0
          %4031 = vmatprep.subr.mxu0 0.0
          %4032 = vmatpush1.msra.mxu0 0.0
          %4033 = vmatprep.subr.mxu0 0.0
          %4034 = vmatpush1.msra.mxu0 0.0
          %4035 = vmatprep.subr.mxu0 0.0
          %4036 = vmatpush1.msra.mxu0 0.0
          %4037 = vmatprep.subr.mxu0 0.0
          %4038 = vmatpush1.msra.mxu0 0.0
          %4039 = vmatprep.subr.mxu0 0.0
          %4040 = vmatpush1.msra.mxu0 0.0
          %4041 = vmatprep.subr.mxu0 0.0
          %4042 = vmatpush1.msra.mxu0 0.0
          %4043 = vmatprep.subr.mxu0 0.0
          %4044 = vmatpush1.msra.mxu0 0.0
          %4045 = vmatprep.subr.mxu0 0.0
          %4046 = vmatpush1.msra.mxu0 0.0
          %4047 = vmatprep.subr.mxu0 0.0
          %4048 = vmatpush1.msra.mxu0 0.0
          %4049 = vmatprep.subr.mxu0 0.0
          %4050 = vmatpush1.msra.mxu0 0.0
          %4051 = vmatprep.subr.mxu0 0.0
          %4052 = vmatpush1.msra.mxu0 0.0
          %4053 = vmatprep.mubr.f32.mxu0 0.0
          %4054 = vmatmul.mubr.f32.gmra.mrb[0].mxu0 %v3981
          %v4055 = vpop.f32.mrb[0].mxu0
          %v4056 = vadd.f32 0.0, %v4055
          %v4057 = vpop.f32.mrb[0].mxu0
          %4058 = vmatprep.mubr.f32.mxu0 0.0
          %4059 = vmatmul.mubr.f32.gmra.mrb[0].mxu0 %v3984
          %v4060 = vpop.f32.mrb[0].mxu0
          %v4061 = vadd.f32 0.0, %v4060
          %v4062 = vpop.f32.mrb[0].mxu0
          %4063 = vdwg.mxu0
          %v4064 = vadd.f32 %v3974, %v4056
          %v4065 = vadd.f32 %v3975, %v4061
          %v4066 = vld [vmem:[%s4] sm:$0x1]
          %v4068 = vlaneseq
          %v4069 = vshrl.u32 %v4068, 7
          %v4070 = vsub.s32 0, %v4069
          %v4071 = vrot.slane %v4066, %v4070
          %v4073 = vadd.f32 %v4064, %v4071
          %v4074 = vadd.f32 %v4065, %v4071
          %v4075 = vmax.f32 %v4073, 0.0
          %v4076 = vmax.f32 %v4074, 0.0
          %s4077 = scalar_lea.vmem [#allocation5], %s1805
          %vm4078 = vcmask 130048
          %4079 = vst.msk [vmem:[%s4077] sm:$0xff] %vm4078, %v4075
          %vm4080 = vcmask 123904
          %4081 = vst.msk [vmem:[%s4077 + $0x8] sm:$0x3] %vm4080, %v4076
        $region83: #{lenet_forward.1} parent=63 // loop_footer
          %s1804 = sadd.s32 1, %s1800
        $region84: #{lenet_forward.1} parent=63 // loop_footer_branch
          %1799 = sbr.rel target = $region80
        $region85: #{lenet_forward.1} parent=63 // loop_exit
          _
        loop: start=0, step=1, limit=5
        $region86: #{lenet_forward.1} parent=63 // loop_pre_header
          _
        $region87: #{lenet_forward.1} parent=63 // loop_header
          %s4083 = sphi 0, %s4087
          %p4084 = scmp.ge.s32.totalorder %s4083, 5
        $region88: #{lenet_forward.1} parent=63 // loop_header_branch
          %4086 = sbr.rel (%p4084) target = $region92
        $region89: #{lenet_forward.1} parent=63 // loop_body
          %s4088 = smul.u32 %s4083, 2
          %s4089 = smul.u32 %s4088, 16
          %s4090 = scalar_lea.vmem [#allocation5], %s4089
          %v4091 = vld [vmem:[%s4090] sm:$0xff]
          %v4092 = vld [vmem:[%s4090 + $0x8] sm:$0x3]
          %s4093 = sadd.s32 %s4088, 1
          %s4094 = smul.u32 %s4093, 16
          %s4095 = scalar_lea.vmem [#allocation5], %s4094
          %v4096 = vld [vmem:[%s4095] sm:$0xff]
          %v4097 = vld [vmem:[%s4095 + $0x8] sm:$0x3]
          %v4098 = vmax.f32 %v4091, %v4096
          %v4099 = vmax.f32 %v4092, %v4097
          %v4101 = vrot.slane %v4098, 1
          %v4103 = vmax.f32 %v4098, %v4101
          %v4105 = vrot.slane %v4099, 1
          %v4107 = vmax.f32 %v4099, %v4105
          %v4109 = vrot.slane %v4103, 1
          %v4111 = vrot.slane %v4103, 2
          %v4113 = vrot.slane %v4103, 3
          %v4116 = vrot.slane %v4107, 4
          %vm4118 = vcmask 1040384
          %v4119 = vsel %vm4118, %v4103, %v4109
          %vm4120 = vcmask 1041408
          %v4121 = vsel %vm4120, %v4119, %v4111
          %vm4122 = vcmask 1042432
          %v4123 = vsel %vm4122, %v4121, %v4113
          %vm4124 = vcmask 1043456
          %v4125 = vsel %vm4124, %v4123, %v4116
          %s4126 = smul.u32 %s4083, 8
          %s4127 = scalar_lea.vmem [#allocation6], %s4126
          %vm4128 = vcmask 126976
          %4129 = vst.msk [vmem:[%s4127] sm:$0x1f] %vm4128, %v4125
        $region90: #{lenet_forward.1} parent=63 // loop_footer
          %s4087 = sadd.s32 1, %s4083
        $region91: #{lenet_forward.1} parent=63 // loop_footer_branch
          %4082 = sbr.rel target = $region87
        $region92: #{lenet_forward.1} parent=63 // loop_exit
          _
        %v4130 = vld [vmem:[#allocation6] sm:$0x1]
        %v4131 = vld [vmem:[#allocation6 + $0x1] sm:$0x1]
        %v4132 = vld [vmem:[#allocation6 + $0x2] sm:$0x1]
        %v4133 = vld [vmem:[#allocation6 + $0x3] sm:$0x1]
        %v4134 = vld [vmem:[#allocation6 + $0x4] sm:$0x1]
        %s4135 = scalar_lea.vmem [#allocation6], 8
        %v4136 = vld [vmem:[%s4135] sm:$0x1]
        %v4137 = vld [vmem:[%s4135 + $0x1] sm:$0x1]
        %v4138 = vld [vmem:[%s4135 + $0x2] sm:$0x1]
        %v4139 = vld [vmem:[%s4135 + $0x3] sm:$0x1]
        %v4140 = vld [vmem:[%s4135 + $0x4] sm:$0x1]
        %s4141 = scalar_lea.vmem [#allocation6], 16
        %v4142 = vld [vmem:[%s4141] sm:$0x1]
        %v4143 = vld [vmem:[%s4141 + $0x1] sm:$0x1]
        %v4144 = vld [vmem:[%s4141 + $0x2] sm:$0x1]
        %v4145 = vld [vmem:[%s4141 + $0x3] sm:$0x1]
        %v4146 = vld [vmem:[%s4141 + $0x4] sm:$0x1]
        %s4147 = scalar_lea.vmem [#allocation6], 24
        %v4148 = vld [vmem:[%s4147] sm:$0x1]
        %v4149 = vld [vmem:[%s4147 + $0x1] sm:$0x1]
        %v4150 = vld [vmem:[%s4147 + $0x2] sm:$0x1]
        %v4151 = vld [vmem:[%s4147 + $0x3] sm:$0x1]
        %v4152 = vld [vmem:[%s4147 + $0x4] sm:$0x1]
        %s4153 = scalar_lea.vmem [#allocation6], 32
        %v4154 = vld [vmem:[%s4153] sm:$0x1]
        %v4155 = vld [vmem:[%s4153 + $0x1] sm:$0x1]
        %v4156 = vld [vmem:[%s4153 + $0x2] sm:$0x1]
        %v4157 = vld [vmem:[%s4153 + $0x3] sm:$0x1]
        %v4158 = vld [vmem:[%s4153 + $0x4] sm:$0x1]
        %4160 = vrot.lane.b32.xlu0 %v4131, 16
        %v4161 = vpop.permute.xlu0 %4160
        %4164 = vrot.lane.b32.xlu0 %v4132, 32
        %v4165 = vpop.permute.xlu0 %4164
        %4168 = vrot.lane.b32.xlu0 %v4133, 48
        %v4169 = vpop.permute.xlu0 %4168
        %4172 = vrot.lane.b32.xlu0 %v4134, 64
        %v4173 = vpop.permute.xlu0 %4172
        %4176 = vrot.lane.b32.xlu0 %v4136, 80
        %v4177 = vpop.permute.xlu0 %4176
        %4180 = vrot.lane.b32.xlu0 %v4137, 96
        %v4181 = vpop.permute.xlu0 %4180
        %4184 = vrot.lane.b32.xlu0 %v4138, 112
        %v4185 = vpop.permute.xlu0 %4184
        %4188 = vrot.lane.b32.xlu0 %v4140, 16
        %v4189 = vpop.permute.xlu0 %4188
        %4192 = vrot.lane.b32.xlu0 %v4142, 32
        %v4193 = vpop.permute.xlu0 %4192
        %4196 = vrot.lane.b32.xlu0 %v4143, 48
        %v4197 = vpop.permute.xlu0 %4196
        %4200 = vrot.lane.b32.xlu0 %v4144, 64
        %v4201 = vpop.permute.xlu0 %4200
        %4204 = vrot.lane.b32.xlu0 %v4145, 80
        %v4205 = vpop.permute.xlu0 %4204
        %4208 = vrot.lane.b32.xlu0 %v4146, 96
        %v4209 = vpop.permute.xlu0 %4208
        %4212 = vrot.lane.b32.xlu0 %v4148, 112
        %v4213 = vpop.permute.xlu0 %4212
        %vm4215 = vcmask 130048
        %v4216 = vsel %vm4215, %v4130, %v4161
        %vm4217 = vcmask 261120
        %v4218 = vsel %vm4217, %v4216, %v4165
        %vm4219 = vcmask 392192
        %v4220 = vsel %vm4219, %v4218, %v4169
        %vm4221 = vcmask 523264
        %v4222 = vsel %vm4221, %v4220, %v4173
        %vm4223 = vcmask 654336
        %v4224 = vsel %vm4223, %v4222, %v4177
        %vm4225 = vcmask 785408
        %v4226 = vsel %vm4225, %v4224, %v4181
        %vm4227 = vcmask 916480
        %v4228 = vsel %vm4227, %v4226, %v4185
        %v4229 = vsel %vm4215, %v4139, %v4189
        %v4230 = vsel %vm4217, %v4229, %v4193
        %v4231 = vsel %vm4219, %v4230, %v4197
        %v4232 = vsel %vm4221, %v4231, %v4201
        %v4233 = vsel %vm4223, %v4232, %v4205
        %v4234 = vsel %vm4225, %v4233, %v4209
        %v4235 = vsel %vm4227, %v4234, %v4213
        %4237 = vrot.lane.b32.xlu0 %v4150, 16
        %v4238 = vpop.permute.xlu0 %4237
        %4241 = vrot.lane.b32.xlu0 %v4151, 32
        %v4242 = vpop.permute.xlu0 %4241
        %4245 = vrot.lane.b32.xlu0 %v4152, 48
        %v4246 = vpop.permute.xlu0 %4245
        %4249 = vrot.lane.b32.xlu0 %v4154, 64
        %v4250 = vpop.permute.xlu0 %4249
        %4253 = vrot.lane.b32.xlu0 %v4155, 80
        %v4254 = vpop.permute.xlu0 %4253
        %4257 = vrot.lane.b32.xlu0 %v4156, 96
        %v4258 = vpop.permute.xlu0 %4257
        %4261 = vrot.lane.b32.xlu0 %v4157, 112
        %v4262 = vpop.permute.xlu0 %4261
        %v4264 = vsel %vm4215, %v4149, %v4238
        %v4265 = vsel %vm4217, %v4264, %v4242
        %v4266 = vsel %vm4219, %v4265, %v4246
        %v4267 = vsel %vm4221, %v4266, %v4250
        %v4268 = vsel %vm4223, %v4267, %v4254
        %v4269 = vsel %vm4225, %v4268, %v4258
        %v4270 = vsel %vm4227, %v4269, %v4262
        %v4271 = vld [vmem:[%s5] sm:$0xff]
        %v4272 = vld [vmem:[%s5 + $0x8] sm:$0xff]
        %v4273 = vld [vmem:[%s5 + $0x10] sm:$0xff]
        %v4274 = vld [vmem:[%s5 + $0x18] sm:$0xff]
        %v4275 = vld [vmem:[%s5 + $0x20] sm:$0xff]
        %v4276 = vld [vmem:[%s5 + $0x28] sm:$0xff]
        %v4277 = vld [vmem:[%s5 + $0x30] sm:$0xff]
        %v4278 = vld [vmem:[%s5 + $0x38] sm:$0xff]
        %v4279 = vld [vmem:[%s5 + $0x40] sm:$0xff]
        %v4280 = vld [vmem:[%s5 + $0x48] sm:$0xff]
        %v4281 = vld [vmem:[%s5 + $0x50] sm:$0xff]
        %v4282 = vld [vmem:[%s5 + $0x58] sm:$0xff]
        %v4283 = vld [vmem:[%s5 + $0x60] sm:$0xff]
        %v4284 = vld [vmem:[%s5 + $0x68] sm:$0xff]
        %v4285 = vld [vmem:[%s5 + $0x70] sm:$0xff]
        %v4286 = vld [vmem:[%s5 + $0x78] sm:$0xff]
        %v4287 = vld [vmem:[%s5 + $0x80] sm:$0xff]
        %v4288 = vld [vmem:[%s5 + $0x88] sm:$0xff]
        %v4289 = vld [vmem:[%s5 + $0x90] sm:$0xff]
        %v4290 = vld [vmem:[%s5 + $0x98] sm:$0xff]
        %v4291 = vld [vmem:[%s5 + $0xa0] sm:$0xff]
        %v4292 = vld [vmem:[%s5 + $0xa8] sm:$0xff]
        %v4293 = vld [vmem:[%s5 + $0xb0] sm:$0xff]
        %v4294 = vld [vmem:[%s5 + $0xb8] sm:$0xff]
        %v4295 = vld [vmem:[%s5 + $0xc0] sm:$0xff]
        %v4296 = vld [vmem:[%s5 + $0xc8] sm:$0xff]
        %v4297 = vld [vmem:[%s5 + $0xd0] sm:$0xff]
        %v4298 = vld [vmem:[%s5 + $0xd8] sm:$0xff]
        %v4299 = vld [vmem:[%s5 + $0xe0] sm:$0xff]
        %v4300 = vld [vmem:[%s5 + $0xe8] sm:$0xff]
        %v4301 = vld [vmem:[%s5 + $0xf0] sm:$0xff]
        %v4302 = vld [vmem:[%s5 + $0xf8] sm:$0xff]
        %v4303 = vld [vmem:[%s5 + $0x100] sm:$0xff]
        %v4304 = vld [vmem:[%s5 + $0x108] sm:$0xff]
        %v4305 = vld [vmem:[%s5 + $0x110] sm:$0xff]
        %v4306 = vld [vmem:[%s5 + $0x118] sm:$0xff]
        %v4307 = vld [vmem:[%s5 + $0x120] sm:$0xff]
        %v4308 = vld [vmem:[%s5 + $0x128] sm:$0xff]
        %v4309 = vld [vmem:[%s5 + $0x130] sm:$0xff]
        %v4310 = vld [vmem:[%s5 + $0x138] sm:$0xff]
        %v4311 = vld [vmem:[%s5 + $0x140] sm:$0xff]
        %v4312 = vld [vmem:[%s5 + $0x148] sm:$0xff]
        %v4313 = vld [vmem:[%s5 + $0x150] sm:$0xff]
        %v4314 = vld [vmem:[%s5 + $0x158] sm:$0xff]
        %v4315 = vld [vmem:[%s5 + $0x160] sm:$0xff]
        %v4316 = vld [vmem:[%s5 + $0x168] sm:$0xff]
        %v4317 = vld [vmem:[%s5 + $0x170] sm:$0xff]
        %v4318 = vld [vmem:[%s5 + $0x178] sm:$0xff]
        %v4319 = vld [vmem:[%s5 + $0x180] sm:$0xff]
        %v4320 = vld [vmem:[%s5 + $0x188] sm:$0xff]
        %v4321 = vld [vmem:[%s6] sm:$0x1]
        %v4323 = vsel %vm4215, %v4158, 0
        %4325 = vmatprep.subr.mxu0 0.0
        %4326 = vmatpush1.msra.mxu0 %v4271
        %4327 = vmatprep.subr.mxu0 0.0
        %4328 = vmatpush1.msra.mxu0 %v4272
        %4329 = vmatprep.subr.mxu0 0.0
        %4330 = vmatpush1.msra.mxu0 %v4273
        %4331 = vmatprep.subr.mxu0 0.0
        %4332 = vmatpush1.msra.mxu0 %v4274
        %4333 = vmatprep.subr.mxu0 0.0
        %4334 = vmatpush1.msra.mxu0 %v4275
        %4335 = vmatprep.subr.mxu0 0.0
        %4336 = vmatpush1.msra.mxu0 %v4276
        %4337 = vmatprep.subr.mxu0 0.0
        %4338 = vmatpush1.msra.mxu0 %v4277
        %4339 = vmatprep.subr.mxu0 0.0
        %4340 = vmatpush1.msra.mxu0 %v4278
        %4341 = vmatprep.subr.mxu0 0.0
        %4342 = vmatpush1.msra.mxu0 %v4279
        %4343 = vmatprep.subr.mxu0 0.0
        %4344 = vmatpush1.msra.mxu0 %v4280
        %4345 = vmatprep.subr.mxu0 0.0
        %4346 = vmatpush1.msra.mxu0 %v4281
        %4347 = vmatprep.subr.mxu0 0.0
        %4348 = vmatpush1.msra.mxu0 %v4282
        %4349 = vmatprep.subr.mxu0 0.0
        %4350 = vmatpush1.msra.mxu0 %v4283
        %4351 = vmatprep.subr.mxu0 0.0
        %4352 = vmatpush1.msra.mxu0 %v4284
        %4353 = vmatprep.subr.mxu0 0.0
        %4354 = vmatpush1.msra.mxu0 %v4285
        %4355 = vmatprep.subr.mxu0 0.0
        %4356 = vmatpush1.msra.mxu0 %v4286
        %4357 = vmatprep.subr.mxu0 0.0
        %4358 = vmatpush1.msra.mxu0 %v4287
        %4359 = vmatprep.subr.mxu0 0.0
        %4360 = vmatpush1.msra.mxu0 %v4288
        %4361 = vmatprep.subr.mxu0 0.0
        %4362 = vmatpush1.msra.mxu0 %v4289
        %4363 = vmatprep.subr.mxu0 0.0
        %4364 = vmatpush1.msra.mxu0 %v4290
        %4365 = vmatprep.subr.mxu0 0.0
        %4366 = vmatpush1.msra.mxu0 %v4291
        %4367 = vmatprep.subr.mxu0 0.0
        %4368 = vmatpush1.msra.mxu0 %v4292
        %4369 = vmatprep.subr.mxu0 0.0
        %4370 = vmatpush1.msra.mxu0 %v4293
        %4371 = vmatprep.subr.mxu0 0.0
        %4372 = vmatpush1.msra.mxu0 %v4294
        %4373 = vmatprep.subr.mxu0 0.0
        %4374 = vmatpush1.msra.mxu0 %v4295
        %4375 = vmatprep.subr.mxu0 0.0
        %4376 = vmatpush1.msra.mxu0 %v4296
        %4377 = vmatprep.subr.mxu0 0.0
        %4378 = vmatpush1.msra.mxu0 %v4297
        %4379 = vmatprep.subr.mxu0 0.0
        %4380 = vmatpush1.msra.mxu0 %v4298
        %4381 = vmatprep.subr.mxu0 0.0
        %4382 = vmatpush1.msra.mxu0 %v4299
        %4383 = vmatprep.subr.mxu0 0.0
        %4384 = vmatpush1.msra.mxu0 %v4300
        %4385 = vmatprep.subr.mxu0 0.0
        %4386 = vmatpush1.msra.mxu0 %v4301
        %4387 = vmatprep.subr.mxu0 0.0
        %4388 = vmatpush1.msra.mxu0 %v4302
        %4389 = vmatprep.mubr.f32.mxu0 %v4235
        %4390 = vmatmul.mubr.f32.gmra.mrb[0].mxu0 %v4228
        %v4391 = vpop.f32.mrb[0].mxu0
        %v4392 = vadd.f32 %v4321, %v4391
        %v4393 = vpop.f32.mrb[0].mxu0
        %4394 = vdwg.mxu0
        %4395 = vmatprep.subr.mxu0 0.0
        %4396 = vmatpush1.msra.mxu0 %v4303
        %4397 = vmatprep.subr.mxu0 0.0
        %4398 = vmatpush1.msra.mxu0 %v4304
        %4399 = vmatprep.subr.mxu0 0.0
        %4400 = vmatpush1.msra.mxu0 %v4305
        %4401 = vmatprep.subr.mxu0 0.0
        %4402 = vmatpush1.msra.mxu0 %v4306
        %4403 = vmatprep.subr.mxu0 0.0
        %4404 = vmatpush1.msra.mxu0 %v4307
        %4405 = vmatprep.subr.mxu0 0.0
        %4406 = vmatpush1.msra.mxu0 %v4308
        %4407 = vmatprep.subr.mxu0 0.0
        %4408 = vmatpush1.msra.mxu0 %v4309
        %4409 = vmatprep.subr.mxu0 0.0
        %4410 = vmatpush1.msra.mxu0 %v4310
        %4411 = vmatprep.subr.mxu0 0.0
        %4412 = vmatpush1.msra.mxu0 %v4311
        %4413 = vmatprep.subr.mxu0 0.0
        %4414 = vmatpush1.msra.mxu0 %v4312
        %4415 = vmatprep.subr.mxu0 0.0
        %4416 = vmatpush1.msra.mxu0 %v4313
        %4417 = vmatprep.subr.mxu0 0.0
        %4418 = vmatpush1.msra.mxu0 %v4314
        %4419 = vmatprep.subr.mxu0 0.0
        %4420 = vmatpush1.msra.mxu0 %v4315
        %4421 = vmatprep.subr.mxu0 0.0
        %4422 = vmatpush1.msra.mxu0 %v4316
        %4423 = vmatprep.subr.mxu0 0.0
        %4424 = vmatpush1.msra.mxu0 %v4317
        %4425 = vmatprep.subr.mxu0 0.0
        %4426 = vmatpush1.msra.mxu0 %v4318
        %4427 = vmatprep.subr.mxu0 0.0
        %4428 = vmatpush1.msra.mxu0 %v4319
        %4429 = vmatprep.subr.mxu0 0.0
        %4430 = vmatpush1.msra.mxu0 %v4320
        %4431 = vmatprep.subr.mxu0 0.0
        %4432 = vmatpush1.msra.mxu0 0.0
        %4433 = vmatprep.subr.mxu0 0.0
        %4434 = vmatpush1.msra.mxu0 0.0
        %4435 = vmatprep.subr.mxu0 0.0
        %4436 = vmatpush1.msra.mxu0 0.0
        %4437 = vmatprep.subr.mxu0 0.0
        %4438 = vmatpush1.msra.mxu0 0.0
        %4439 = vmatprep.subr.mxu0 0.0
        %4440 = vmatpush1.msra.mxu0 0.0
        %4441 = vmatprep.subr.mxu0 0.0
        %4442 = vmatpush1.msra.mxu0 0.0
        %4443 = vmatprep.subr.mxu0 0.0
        %4444 = vmatpush1.msra.mxu0 0.0
        %4445 = vmatprep.subr.mxu0 0.0
        %4446 = vmatpush1.msra.mxu0 0.0
        %4447 = vmatprep.subr.mxu0 0.0
        %4448 = vmatpush1.msra.mxu0 0.0
        %4449 = vmatprep.subr.mxu0 0.0
        %4450 = vmatpush1.msra.mxu0 0.0
        %4451 = vmatprep.subr.mxu0 0.0
        %4452 = vmatpush1.msra.mxu0 0.0
        %4453 = vmatprep.subr.mxu0 0.0
        %4454 = vmatpush1.msra.mxu0 0.0
        %4455 = vmatprep.subr.mxu0 0.0
        %4456 = vmatpush1.msra.mxu0 0.0
        %4457 = vmatprep.subr.mxu0 0.0
        %4458 = vmatpush1.msra.mxu0 0.0
        %4459 = vmatprep.mubr.f32.mxu0 %v4323
        %4460 = vmatmul.mubr.f32.gmra.mrb[0].mxu0 %v4270
        %v4461 = vpop.f32.mrb[0].mxu0
        %v4462 = vadd.f32 %v4392, %v4461
        %v4463 = vpop.f32.mrb[0].mxu0
        %4464 = vdwg.mxu0
        %v4465 = vmax.f32 %v4462, 0.0
        %v4466 = vld [vmem:[%s7] sm:$0xff]
        %v4467 = vld [vmem:[%s7 + $0x8] sm:$0xff]
        %v4468 = vld [vmem:[%s7 + $0x10] sm:$0xff]
        %v4469 = vld [vmem:[%s7 + $0x18] sm:$0xff]
        %v4470 = vld [vmem:[%s7 + $0x20] sm:$0xff]
        %v4471 = vld [vmem:[%s7 + $0x28] sm:$0xff]
        %v4472 = vld [vmem:[%s7 + $0x30] sm:$0xff]
        %v4473 = vld [vmem:[%s7 + $0x38] sm:$0xff]
        %v4474 = vld [vmem:[%s7 + $0x40] sm:$0xff]
        %v4475 = vld [vmem:[%s7 + $0x48] sm:$0xff]
        %v4476 = vld [vmem:[%s7 + $0x50] sm:$0xff]
        %v4477 = vld [vmem:[%s7 + $0x58] sm:$0xff]
        %v4478 = vld [vmem:[%s7 + $0x60] sm:$0xff]
        %v4479 = vld [vmem:[%s7 + $0x68] sm:$0xff]
        %v4480 = vld [vmem:[%s7 + $0x70] sm:$0xff]
        %v4481 = vld [vmem:[%s8] sm:$0x1]
        %vm4482 = vcmask 982016
        %v4484 = vsel %vm4482, %v4465, 0
        %4486 = vmatprep.subr.mxu0 0.0
        %4487 = vmatpush1.msra.mxu0 %v4466
        %4488 = vmatprep.subr.mxu0 0.0
        %4489 = vmatpush1.msra.mxu0 %v4467
        %4490 = vmatprep.subr.mxu0 0.0
        %4491 = vmatpush1.msra.mxu0 %v4468
        %4492 = vmatprep.subr.mxu0 0.0
        %4493 = vmatpush1.msra.mxu0 %v4469
        %4494 = vmatprep.subr.mxu0 0.0
        %4495 = vmatpush1.msra.mxu0 %v4470
        %4496 = vmatprep.subr.mxu0 0.0
        %4497 = vmatpush1.msra.mxu0 %v4471
        %4498 = vmatprep.subr.mxu0 0.0
        %4499 = vmatpush1.msra.mxu0 %v4472
        %4500 = vmatprep.subr.mxu0 0.0
        %4501 = vmatpush1.msra.mxu0 %v4473
        %4502 = vmatprep.subr.mxu0 0.0
        %4503 = vmatpush1.msra.mxu0 %v4474
        %4504 = vmatprep.subr.mxu0 0.0
        %4505 = vmatpush1.msra.mxu0 %v4475
        %4506 = vmatprep.subr.mxu0 0.0
        %4507 = vmatpush1.msra.mxu0 %v4476
        %4508 = vmatprep.subr.mxu0 0.0
        %4509 = vmatpush1.msra.mxu0 %v4477
        %4510 = vmatprep.subr.mxu0 0.0
        %4511 = vmatpush1.msra.mxu0 %v4478
        %4512 = vmatprep.subr.mxu0 0.0
        %4513 = vmatpush1.msra.mxu0 %v4479
        %4514 = vmatprep.subr.mxu0 0.0
        %4515 = vmatpush1.msra.mxu0 %v4480
        %4516 = vmatprep.subr.mxu0 0.0
        %4517 = vmatpush1.msra.mxu0 0.0
        %4518 = vmatprep.subr.mxu0 0.0
        %4519 = vmatpush1.msra.mxu0 0.0
        %4520 = vmatprep.subr.mxu0 0.0
        %4521 = vmatpush1.msra.mxu0 0.0
        %4522 = vmatprep.subr.mxu0 0.0
        %4523 = vmatpush1.msra.mxu0 0.0
        %4524 = vmatprep.subr.mxu0 0.0
        %4525 = vmatpush1.msra.mxu0 0.0
        %4526 = vmatprep.subr.mxu0 0.0
        %4527 = vmatpush1.msra.mxu0 0.0
        %4528 = vmatprep.subr.mxu0 0.0
        %4529 = vmatpush1.msra.mxu0 0.0
        %4530 = vmatprep.subr.mxu0 0.0
        %4531 = vmatpush1.msra.mxu0 0.0
        %4532 = vmatprep.subr.mxu0 0.0
        %4533 = vmatpush1.msra.mxu0 0.0
        %4534 = vmatprep.subr.mxu0 0.0
        %4535 = vmatpush1.msra.mxu0 0.0
        %4536 = vmatprep.subr.mxu0 0.0
        %4537 = vmatpush1.msra.mxu0 0.0
        %4538 = vmatprep.subr.mxu0 0.0
        %4539 = vmatpush1.msra.mxu0 0.0
        %4540 = vmatprep.subr.mxu0 0.0
        %4541 = vmatpush1.msra.mxu0 0.0
        %4542 = vmatprep.subr.mxu0 0.0
        %4543 = vmatpush1.msra.mxu0 0.0
        %4544 = vmatprep.subr.mxu0 0.0
        %4545 = vmatpush1.msra.mxu0 0.0
        %4546 = vmatprep.subr.mxu0 0.0
        %4547 = vmatpush1.msra.mxu0 0.0
        %4548 = vmatprep.subr.mxu0 0.0
        %4549 = vmatpush1.msra.mxu0 0.0
        %4550 = vmatprep.mubr.f32.mxu0 0.0
        %4551 = vmatmul.mubr.f32.gmra.mrb[0].mxu0 %v4484
        %v4552 = vpop.f32.mrb[0].mxu0
        %v4553 = vadd.f32 %v4481, %v4552
        %v4554 = vpop.f32.mrb[0].mxu0
        %4555 = vdwg.mxu0
        %v4556 = vmax.f32 %v4553, 0.0
        %v4557 = vld [vmem:[%s9] sm:$0xff]
        %v4558 = vld [vmem:[%s9 + $0x8] sm:$0xff]
        %v4559 = vld [vmem:[%s9 + $0x10] sm:$0xff]
        %v4560 = vld [vmem:[%s9 + $0x18] sm:$0xff]
        %v4561 = vld [vmem:[%s9 + $0x20] sm:$0xff]
        %v4562 = vld [vmem:[%s9 + $0x28] sm:$0xff]
        %v4563 = vld [vmem:[%s9 + $0x30] sm:$0xff]
        %v4564 = vld [vmem:[%s9 + $0x38] sm:$0xff]
        %v4565 = vld [vmem:[%s9 + $0x40] sm:$0xff]
        %v4566 = vld [vmem:[%s9 + $0x48] sm:$0xff]
        %v4567 = vld [vmem:[%s9 + $0x50] sm:$0xf]
        %v4568 = vld [vmem:[%s10] sm:$0x1]
        %vm4569 = vcmask 687104
        %v4571 = vsel %vm4569, %v4556, 0
        %vm4573 = vcmask 1043456
        %v4575 = vsel %vm4573, %v4567, 0
        %4577 = vmatprep.subr.mxu0 0.0
        %4578 = vmatpush1.msra.mxu0 %v4557
        %4579 = vmatprep.subr.mxu0 0.0
        %4580 = vmatpush1.msra.mxu0 %v4558
        %4581 = vmatprep.subr.mxu0 0.0
        %4582 = vmatpush1.msra.mxu0 %v4559
        %4583 = vmatprep.subr.mxu0 0.0
        %4584 = vmatpush1.msra.mxu0 %v4560
        %4585 = vmatprep.subr.mxu0 0.0
        %4586 = vmatpush1.msra.mxu0 %v4561
        %4587 = vmatprep.subr.mxu0 0.0
        %4588 = vmatpush1.msra.mxu0 %v4562
        %4589 = vmatprep.subr.mxu0 0.0
        %4590 = vmatpush1.msra.mxu0 %v4563
        %4591 = vmatprep.subr.mxu0 0.0
        %4592 = vmatpush1.msra.mxu0 %v4564
        %4593 = vmatprep.subr.mxu0 0.0
        %4594 = vmatpush1.msra.mxu0 %v4565
        %4595 = vmatprep.subr.mxu0 0.0
        %4596 = vmatpush1.msra.mxu0 %v4566
        %4597 = vmatprep.subr.mxu0 0.0
        %4598 = vmatpush1.msra.mxu0 %v4575
        %4599 = vmatprep.subr.mxu0 0.0
        %4600 = vmatpush1.msra.mxu0 0.0
        %4601 = vmatprep.subr.mxu0 0.0
        %4602 = vmatpush1.msra.mxu0 0.0
        %4603 = vmatprep.subr.mxu0 0.0
        %4604 = vmatpush1.msra.mxu0 0.0
        %4605 = vmatprep.subr.mxu0 0.0
        %4606 = vmatpush1.msra.mxu0 0.0
        %4607 = vmatprep.subr.mxu0 0.0
        %4608 = vmatpush1.msra.mxu0 0.0
        %4609 = vmatprep.subr.mxu0 0.0
        %4610 = vmatpush1.msra.mxu0 0.0
        %4611 = vmatprep.subr.mxu0 0.0
        %4612 = vmatpush1.msra.mxu0 0.0
        %4613 = vmatprep.subr.mxu0 0.0
        %4614 = vmatpush1.msra.mxu0 0.0
        %4615 = vmatprep.subr.mxu0 0.0
        %4616 = vmatpush1.msra.mxu0 0.0
        %4617 = vmatprep.subr.mxu0 0.0
        %4618 = vmatpush1.msra.mxu0 0.0
        %4619 = vmatprep.subr.mxu0 0.0
        %4620 = vmatpush1.msra.mxu0 0.0
        %4621 = vmatprep.subr.mxu0 0.0
        %4622 = vmatpush1.msra.mxu0 0.0
        %4623 = vmatprep.subr.mxu0 0.0
        %4624 = vmatpush1.msra.mxu0 0.0
        %4625 = vmatprep.subr.mxu0 0.0
        %4626 = vmatpush1.msra.mxu0 0.0
        %4627 = vmatprep.subr.mxu0 0.0
        %4628 = vmatpush1.msra.mxu0 0.0
        %4629 = vmatprep.subr.mxu0 0.0
        %4630 = vmatpush1.msra.mxu0 0.0
        %4631 = vmatprep.subr.mxu0 0.0
        %4632 = vmatpush1.msra.mxu0 0.0
        %4633 = vmatprep.subr.mxu0 0.0
        %4634 = vmatpush1.msra.mxu0 0.0
        %4635 = vmatprep.subr.mxu0 0.0
        %4636 = vmatpush1.msra.mxu0 0.0
        %4637 = vmatprep.subr.mxu0 0.0
        %4638 = vmatpush1.msra.mxu0 0.0
        %4639 = vmatprep.subr.mxu0 0.0
        %4640 = vmatpush1.msra.mxu0 0.0
        %4641 = vmatprep.mubr.f32.mxu0 0.0
        %4642 = vmatmul.mubr.f32.gmra.mrb[0].mxu0 %v4571
        %v4643 = vpop.f32.mrb[0].mxu0
        %v4644 = vadd.f32 %v4568, %v4643
        %v4645 = vpop.f32.mrb[0].mxu0
        %4646 = vdwg.mxu0
        %vm4647 = vcmask 73728
        %4648 = vst.msk [vmem:[%s378] sm:$0x1] %vm4647, %v4644
        %s4649 = sand.u32 %s269, 1
        %s4650 = scalar_lea.sflag [#allocation8], %s4649
        %s4651 = sand.u32 %s269, 1
        %s4652 = scalar_lea.vmem [#allocation7], %s4651
        // Predicated region
        $region93: #{lenet_forward.1} parent=63 // pred_check
          %p4653 = pneg %p279
        $region94: #{lenet_forward.1} parent=63 // pred_check_branch
          %4655 = sbr.rel (%p4653) target = $region96
        $region95: #{lenet_forward.1} parent=63 // pred_region
          %s4657 = ssub.s32 16, 16
          %4658 = vsyncadd %s4650, %s4657
          %s4659 = smul.addr %s25, 16
          %s4660 = scalar_lea.hbm %s11, %s4659
          %s4662 = sshll.u32 %s4652, 4
          %s4663 = int_to_ptr.vmem [resolvable:$true] %s4662
          %4665 = dma.vmem_to_hbm [thread:$0]  %s4663, 16, %s4660, %s4650
        $region96: #{lenet_forward.1} parent=63 // pred_fallthru
          _
      $region64: #{lenet_forward.1} parent=5 // pred_fallthru
        _
      %p4666 = scmp.le.s32.totalorder 2, %s20
      // Predicated region
      $region97: #{lenet_forward.1} parent=5 // pred_check
        %p4667 = pneg %p4666
      $region98: #{lenet_forward.1} parent=5 // pred_check_branch
        %4669 = sbr.rel (%p4667) target = $region100
      $region99: #{lenet_forward.1} parent=5 // pred_region
        %s4670 = ssub.s32 %s20, 2
        // Predicated region
        $region101: #{lenet_forward.1} parent=99 // pred_check
          %p4671 = pneg %p285
        $region102: #{lenet_forward.1} parent=99 // pred_check_branch
          %4673 = sbr.rel (%p4671) target = $region104
        $region103: #{lenet_forward.1} parent=99 // pred_region
          %s4674 = sand.u32 %s270, 1
          %s4675 = scalar_lea.sflag [#allocation8], %s4674
          %s4676 = sand.u32 %s270, 1
          %s4677 = scalar_lea.vmem [#allocation7], %s4676
          %4678 = dma.done %s4675, 16
        $region104: #{lenet_forward.1} parent=99 // pred_fallthru
          _
      $region100: #{lenet_forward.1} parent=5 // pred_fallthru
        _
    $region6: #{lenet_forward.1} parent=1 // loop_footer
      %s24 = sadd.s32 1, %s20
    $region7: #{lenet_forward.1} parent=1 // loop_footer_branch
      %19 = sbr.rel target = $region3
    $region8: #{lenet_forward.1} parent=1 // loop_exit
      _
    %4679 = vsyncpa [#allocation8], 1
    %s4680 = scalar_lea.sflag [#allocation8], 1
    %4681 = vsyncpa %s4680, 1

</llo_original>
